<compile_context>
chip_gen: v7x
topology: tpu7x:2x2x1
jax: 0.10.0
libtpu: 0.0.40
codegen_flags: <defaults>
</compile_context>

<pallas_src>
import jax
import jax.numpy as jnp
import numpy as np
from jax.experimental import pallas as pl
from jax.experimental.pallas import tpu as pltpu


# ------------------------------ fused kernel --------------------------------
def _decoder_kernel(x_ref, w1_ref, b1_ref, w2_ref, b2_ref, w3_ref, b3_ref,
                    o_ref, h1_sc, e2_sc):
    f32 = jnp.float32

    # ---- layer 1: ConvTranspose2d(64, 32, 7) + ReLU -------------------------
    # x_ref[0]: (1, 256) = latent flattened (ci, i, j).  w1 columns are ordered
    # (h, w, c); the whole transposed-conv stencil is baked into the weight.
    u = jnp.dot(x_ref[0], w1_ref[...], preferred_element_type=f32)      # (1, 2048)
    b1 = b1_ref[...]                                                    # (1, 256)
    h1_sc[pl.ds(8, 1), :] = jnp.zeros((1, 256), f32)   # zero pad row (m+1 shift)
    for h in range(8):                                 # small static unroll
        row = u[:, 256 * h:256 * (h + 1)] + b1         # (1, 256) = (w, c) of row h
        h1_sc[pl.ds(h, 1), :] = jnp.maximum(row, 0.0)

    # ---- layer 2: ConvTranspose2d(32, 16, 3, s=2, p=1, op=1) + ReLU ---------
    # Sub-pixel decomposition: even output rows use h1[m] only, odd rows use
    # h1[m] and h1[m+1]; the W-direction stencil is inside the packed weights.
    a0 = h1_sc[pl.ds(0, 8), :]                         # h1 rows m      (8, 256)
    a1 = h1_sc[pl.ds(1, 8), :]                         # h1 rows m + 1  (row 8 = 0)
    r2 = (jnp.dot(a0, w2_ref[pl.ds(0, 256), :], preferred_element_type=f32)
          + jnp.dot(a1, w2_ref[pl.ds(256, 256), :], preferred_element_type=f32)
          + b2_ref[...])
    r2 = jnp.maximum(r2, 0.0)          # (8, 512) = [even rows E2 | odd rows O2]

    # ---- layer 3: ConvTranspose2d(16, 1, 3, s=2, p=1, op=1) + Sigmoid -------
    # Composed 4-phase row structure over the 8-row base grid:
    #   row 4m+0: E2[m]         row 4m+1: E2[m], O2[m]
    #   row 4m+2: O2[m]         row 4m+3: O2[m], E2[m+1]
    e2_sc[pl.ds(8, 1), :] = jnp.zeros((1, 256), f32)
    e2_sc[pl.ds(0, 8), :] = r2[:, 0:256]               # E2
    e2s = e2_sc[pl.ds(1, 8), :]                        # E2 rows m + 1 (row 8 = 0)
    r3 = (jnp.dot(r2, w3_ref[pl.ds(0, 512), :], preferred_element_type=f32)
          + jnp.dot(e2s, w3_ref[pl.ds(512, 256), :], preferred_element_type=f32)
          + b3_ref[...])
    # r3: (8, 128) = (m, (phase, w)); row-major this is exactly the 32x32 image.
    o_ref[0] = jax.nn.sigmoid(r3)


# ------------------------- host-side weight repacking -----------------------
def _stencil_mats(win):
    """S[kw, w_in, w_out] placement for stride-2 / pad-1 / out-pad-1 ConvTranspose."""
    s = np.zeros((3, win, 2 * win), np.float32)
    for w in range(win):
        s[1, w, 2 * w] = 1.0               # out[2w]   += x[w]   * k[1]
        s[2, w, 2 * w + 1] = 1.0           # out[2w+1] += x[w]   * k[2]
        if w + 1 < win:
            s[0, w + 1, 2 * w + 1] = 1.0   # out[2w+1] += x[w+1] * k[0]
    return s


def _phase_weight(wt, kh, win):
    """Dense ((win*Cin), (2*win*Cout)) matrix for kernel row kh of a 3x3 stride-2
    ConvTranspose, acting on (w, c)-flattened rows."""
    s = _stencil_mats(win)
    return sum(jnp.kron(jnp.asarray(s[kw]), wt[:, :, kh, kw]) for kw in range(3))


def prepare_params(p):
    """Repack PyTorch-layout ConvTranspose2d params into the dense matrices the
    fused kernel consumes (one-time, outside the hot path)."""
    w1, b1 = p["w1"], p["b1"]          # (64, 32, 7, 7), (32,)
    w2, b2 = p["w2"], p["b2"]          # (32, 16, 3, 3), (16,)
    w3, b3 = p["w3"], p["b3"]          # (16, 1, 3, 3),  (1,)

    # Layer 1: w1m[(ci, i, j), (h, w, co)] = w1[ci, co, h - i, w - j] (valid taps).
    w1t = jnp.transpose(w1, (0, 2, 3, 1))                      # (ci, kh, kw, co)
    blocks = []
    for i in range(2):
        for j in range(2):
            blk = jnp.pad(w1t, ((0, 0), (i, 1 - i), (j, 1 - j), (0, 0)))  # (64,8,8,32)
            blocks.append(blk.reshape(64, 8 * 8 * 32))
    w1m = jnp.stack(blocks, axis=1).reshape(256, 2048)
    b1v = jnp.tile(b1, 8).reshape(1, 256)

    # Layer 2: rows [h1[m] | h1[m+1]] blocks, cols [even rows | odd rows].
    w2m = jnp.block(
        [[_phase_weight(w2, 1, 8), _phase_weight(w2, 2, 8)],
         [jnp.zeros((256, 256), jnp.float32), _phase_weight(w2, 0, 8)]])   # (512, 512)
    b2v = jnp.tile(b2, 32).reshape(1, 512)

    # Layer 3: rows [E2 | O2 | E2 shifted], cols = 4 output row phases x 32 cols.
    z3 = jnp.zeros((256, 32), jnp.float32)
    q0, q1, q2 = (_phase_weight(w3, k, 16) for k in range(3))
    w3m = jnp.block([[q1, q2, z3, z3],
                     [z3, q0, q1, q2],
                     [z3, z3, z3, q0]])                                    # (768, 128)
    b3v = jnp.full((1, 128), b3[0], jnp.float32)
    return w1m, b1v, w2m, b2v, w3m, b3v


# ------------------------------- forward pass -------------------------------
@jax.jit
def decoder_forward(x_nchw, prep):
    """Fused Pallas forward of ConvolutionalDecoder. Input NCHW (N, 64, 2, 2)."""
    w1m, b1v, w2m, b2v, w3m, b3v = prep
    n = x_nchw.shape[0]
    assert x_nchw.shape[1:] == (64, 2, 2), x_nchw.shape
    x_flat = x_nchw.reshape(n, 1, 256)      # (ci, i, j) row-major -> free reshape

    out = pl.pallas_call(
        _decoder_kernel,
        out_shape=jax.ShapeDtypeStruct((n, 8, 128), jnp.float32),
        grid_spec=pltpu.PrefetchScalarGridSpec(
            num_scalar_prefetch=0,
            grid=(n,),
            in_specs=[
                pl.BlockSpec((1, 1, 256), lambda b: (b, 0, 0)),    # latent
                pl.BlockSpec((256, 2048), lambda b: (0, 0)),       # w1 (resident)
                pl.BlockSpec((1, 256), lambda b: (0, 0)),          # b1
                pl.BlockSpec((512, 512), lambda b: (0, 0)),        # w2
                pl.BlockSpec((1, 512), lambda b: (0, 0)),          # b2
                pl.BlockSpec((768, 128), lambda b: (0, 0)),        # w3
                pl.BlockSpec((1, 128), lambda b: (0, 0)),          # b3
            ],
            out_specs=pl.BlockSpec((1, 8, 128), lambda b: (b, 0, 0)),
            scratch_shapes=[pltpu.VMEM((9, 256), jnp.float32),     # h1  (+ pad row)
                            pltpu.VMEM((9, 256), jnp.float32)],    # E2  (+ pad row)
        ),
        compiler_params=pltpu.CompilerParams(dimension_semantics=("parallel",)),
    )(x_flat, w1m, b1v, w2m, b2v, w3m, b3v)

    # (n, 8, 128) row-major == (n, 32, 32): free reshape, no transpose.
    return out.reshape(n, 1, 32, 32)


# ----------------------------- reference (XLA) ------------------------------
def _ref_conv_transpose(x_nchw, w_t, bias, stride, padding, output_padding):
    Cin, Cout, kH, kW = w_t.shape
    w_conv = jnp.transpose(w_t, (2, 3, 0, 1))[::-1, ::-1, :, :]
    lo = kH - 1 - padding
    hi = kH - 1 - padding + output_padding
    y = jax.lax.conv_general_dilated(
        x_nchw, w_conv,
        window_strides=(1, 1),
        padding=[(lo, hi), (lo, hi)],
        lhs_dilation=(stride, stride),
        dimension_numbers=("NCHW", "HWIO", "NCHW"))
    return y + bias[None, :, None, None]


def _ref_forward(x_nchw, p):
    r = jax.nn.relu(_ref_conv_transpose(x_nchw, p["w1"], p["b1"], 1, 0, 0))
    r = jax.nn.relu(_ref_conv_transpose(r, p["w2"], p["b2"], 2, 1, 1))
    return jax.nn.sigmoid(_ref_conv_transpose(r, p["w3"], p["b3"], 2, 1, 1))


# ------------------------------- param init ---------------------------------
def init_params(key):
    def init_layer(k, cin, cout, ksz):
        kw, kb = jax.random.split(k)
        bound = 1.0 / float(cin * ksz * ksz) ** 0.5
        w = jax.random.uniform(kw, (cin, cout, ksz, ksz), jnp.float32, -bound, bound)
        b = jax.random.uniform(kb, (cout,), jnp.float32, -bound, bound)
        return w, b

    k1, k2, k3 = jax.random.split(key, 3)
    w1, b1 = init_layer(k1, 64, 32, 7)   # ConvTranspose2d(64, 32, 7)
    w2, b2 = init_layer(k2, 32, 16, 3)   # ConvTranspose2d(32, 16, 3, s=2, p=1, op=1)
    w3, b3 = init_layer(k3, 16, 1, 3)    # ConvTranspose2d(16, 1, 3, s=2, p=1, op=1)
    return dict(w1=w1, b1=b1, w2=w2, b2=b2, w3=w3, b3=b3)


if __name__ == "__main__":
    key = jax.random.PRNGKey(0)
    kx, kp = jax.random.split(key)

    # Latent feature map (NCHW, as the PyTorch module expects): (2, 64, 2, 2)
    x = jax.random.normal(kx, (2, 64, 2, 2), jnp.float32)
    params = init_params(kp)

    prep = prepare_params(params)        # one-time weight repacking
    y = jax.block_until_ready(decoder_forward(x, prep))
    assert y.shape == (2, 1, 32, 32), y.shape   # (2-1)*1+7=8 -> 16 -> 32

    y_ref = jax.block_until_ready(_ref_forward(x, params))
    err = float(jnp.max(jnp.abs(y - y_ref)))
    assert jnp.allclose(y, y_ref, atol=1e-4, rtol=1e-4), err

    print("KERNEL_OK")
</pallas_src>

<mosaic_0001>
module attributes {stable_mosaic.version = 11 : i64} {
  func.func @_decoder_kernel(%arg0: i32, %arg1: memref<1x1x256xf32, #tpu.memory_space<vmem>>, %arg2: memref<256x2048xf32, #tpu.memory_space<vmem>>, %arg3: memref<1x256xf32, #tpu.memory_space<vmem>>, %arg4: memref<512x512xf32, #tpu.memory_space<vmem>>, %arg5: memref<1x512xf32, #tpu.memory_space<vmem>>, %arg6: memref<768x128xf32, #tpu.memory_space<vmem>>, %arg7: memref<1x128xf32, #tpu.memory_space<vmem>>, %arg8: memref<1x8x128xf32, #tpu.memory_space<vmem>>, %arg9: memref<9x256xf32, #tpu.memory_space<vmem>>, %arg10: memref<9x256xf32, #tpu.memory_space<vmem>>) attributes {dimension_semantics = [#tpu.dimension_semantics<parallel>], iteration_bounds = array<i64: 2>, scalar_prefetch = 0 : i64, scratch_operands = 2 : i64, tpu.core_type = #tpu.core_type<tc>, window_params = [{transform_indices = @transform_0, window_bounds = array<i64: 1, 1, 256>}, {pipeline_mode = #tpu.pipeline_mode<synchronous>, transform_indices = @transform_1, window_bounds = array<i64: 256, 2048>}, {pipeline_mode = #tpu.pipeline_mode<synchronous>, transform_indices = @transform_2, window_bounds = array<i64: 1, 256>}, {pipeline_mode = #tpu.pipeline_mode<synchronous>, transform_indices = @transform_3, window_bounds = array<i64: 512, 512>}, {pipeline_mode = #tpu.pipeline_mode<synchronous>, transform_indices = @transform_4, window_bounds = array<i64: 1, 512>}, {pipeline_mode = #tpu.pipeline_mode<synchronous>, transform_indices = @transform_5, window_bounds = array<i64: 768, 128>}, {pipeline_mode = #tpu.pipeline_mode<synchronous>, transform_indices = @transform_6, window_bounds = array<i64: 1, 128>}, {transform_indices = @transform_7, window_bounds = array<i64: 1, 8, 128>}]} {
    %c0 = arith.constant 0 : index
    %c0_0 = arith.constant 0 : index
    %c0_1 = arith.constant 0 : index
    %0 = vector.load %arg1[%c0, %c0_0, %c0_1] : memref<1x1x256xf32, #tpu.memory_space<vmem>>, vector<1x1x256xf32>
    %1 = vector.shape_cast %0 : vector<1x1x256xf32> to vector<1x256xf32>
    %c0_2 = arith.constant 0 : index
    %c0_3 = arith.constant 0 : index
    %2 = vector.load %arg2[%c0_2, %c0_3] : memref<256x2048xf32, #tpu.memory_space<vmem>>, vector<256x2048xf32>
    %cst = arith.constant dense<0.000000e+00> : vector<1x2048xf32>
    %3 = tpu.matmul %1, %2, %cst {dimension_numbers = #tpu.dot_dimension_numbers<[1], [0], [0], [1], [0, 0, 1, 1], [], []>} : vector<1x256xf32>, vector<256x2048xf32>, vector<1x2048xf32> -> vector<1x2048xf32>
    %c0_4 = arith.constant 0 : index
    %c0_5 = arith.constant 0 : index
    %4 = vector.load %arg3[%c0_4, %c0_5] : memref<1x256xf32, #tpu.memory_space<vmem>>, vector<1x256xf32>
    %cst_6 = arith.constant 0.000000e+00 : f32
    %5 = vector.broadcast %cst_6 : f32 to vector<1x256xf32>
    %c8 = arith.constant 8 : index
    %c0_7 = arith.constant 0 : index
    %6 = vector.load %arg9[%c8, %c0_7] : memref<9x256xf32, #tpu.memory_space<vmem>>, vector<1x256xf32>
    tpu.vector_store %arg9[%c8, %c0_7], %5 {strides = array<i32>} : memref<9x256xf32, #tpu.memory_space<vmem>>, vector<1x256xf32>,
    %7 = vector.extract_strided_slice %3 {offsets = [0, 0], sizes = [1, 256], strides = [1, 1]} : vector<1x2048xf32> to vector<1x256xf32>
    %8 = arith.addf %7, %4 : vector<1x256xf32>
    %cst_8 = arith.constant 0.000000e+00 : f32
    %9 = vector.broadcast %cst_8 : f32 to vector<1x256xf32>
    %10 = arith.maximumf %8, %9 : vector<1x256xf32>
    %c0_9 = arith.constant 0 : index
    %c0_10 = arith.constant 0 : index
    %11 = vector.load %arg9[%c0_9, %c0_10] : memref<9x256xf32, #tpu.memory_space<vmem>>, vector<1x256xf32>
    tpu.vector_store %arg9[%c0_9, %c0_10], %10 {strides = array<i32>} : memref<9x256xf32, #tpu.memory_space<vmem>>, vector<1x256xf32>,
    %12 = vector.extract_strided_slice %3 {offsets = [0, 256], sizes = [1, 256], strides = [1, 1]} : vector<1x2048xf32> to vector<1x256xf32>
    %13 = arith.addf %12, %4 : vector<1x256xf32>
    %cst_11 = arith.constant 0.000000e+00 : f32
    %14 = vector.broadcast %cst_11 : f32 to vector<1x256xf32>
    %15 = arith.maximumf %13, %14 : vector<1x256xf32>
    %c1 = arith.constant 1 : index
    %c0_12 = arith.constant 0 : index
    %16 = vector.load %arg9[%c1, %c0_12] : memref<9x256xf32, #tpu.memory_space<vmem>>, vector<1x256xf32>
    tpu.vector_store %arg9[%c1, %c0_12], %15 {strides = array<i32>} : memref<9x256xf32, #tpu.memory_space<vmem>>, vector<1x256xf32>,
    %17 = vector.extract_strided_slice %3 {offsets = [0, 512], sizes = [1, 256], strides = [1, 1]} : vector<1x2048xf32> to vector<1x256xf32>
    %18 = arith.addf %17, %4 : vector<1x256xf32>
    %cst_13 = arith.constant 0.000000e+00 : f32
    %19 = vector.broadcast %cst_13 : f32 to vector<1x256xf32>
    %20 = arith.maximumf %18, %19 : vector<1x256xf32>
    %c2 = arith.constant 2 : index
    %c0_14 = arith.constant 0 : index
    %21 = vector.load %arg9[%c2, %c0_14] : memref<9x256xf32, #tpu.memory_space<vmem>>, vector<1x256xf32>
    tpu.vector_store %arg9[%c2, %c0_14], %20 {strides = array<i32>} : memref<9x256xf32, #tpu.memory_space<vmem>>, vector<1x256xf32>,
    %22 = vector.extract_strided_slice %3 {offsets = [0, 768], sizes = [1, 256], strides = [1, 1]} : vector<1x2048xf32> to vector<1x256xf32>
    %23 = arith.addf %22, %4 : vector<1x256xf32>
    %cst_15 = arith.constant 0.000000e+00 : f32
    %24 = vector.broadcast %cst_15 : f32 to vector<1x256xf32>
    %25 = arith.maximumf %23, %24 : vector<1x256xf32>
    %c3 = arith.constant 3 : index
    %c0_16 = arith.constant 0 : index
    %26 = vector.load %arg9[%c3, %c0_16] : memref<9x256xf32, #tpu.memory_space<vmem>>, vector<1x256xf32>
    tpu.vector_store %arg9[%c3, %c0_16], %25 {strides = array<i32>} : memref<9x256xf32, #tpu.memory_space<vmem>>, vector<1x256xf32>,
    %27 = vector.extract_strided_slice %3 {offsets = [0, 1024], sizes = [1, 256], strides = [1, 1]} : vector<1x2048xf32> to vector<1x256xf32>
    %28 = arith.addf %27, %4 : vector<1x256xf32>
    %cst_17 = arith.constant 0.000000e+00 : f32
    %29 = vector.broadcast %cst_17 : f32 to vector<1x256xf32>
    %30 = arith.maximumf %28, %29 : vector<1x256xf32>
    %c4 = arith.constant 4 : index
    %c0_18 = arith.constant 0 : index
    %31 = vector.load %arg9[%c4, %c0_18] : memref<9x256xf32, #tpu.memory_space<vmem>>, vector<1x256xf32>
    tpu.vector_store %arg9[%c4, %c0_18], %30 {strides = array<i32>} : memref<9x256xf32, #tpu.memory_space<vmem>>, vector<1x256xf32>,
    %32 = vector.extract_strided_slice %3 {offsets = [0, 1280], sizes = [1, 256], strides = [1, 1]} : vector<1x2048xf32> to vector<1x256xf32>
    %33 = arith.addf %32, %4 : vector<1x256xf32>
    %cst_19 = arith.constant 0.000000e+00 : f32
    %34 = vector.broadcast %cst_19 : f32 to vector<1x256xf32>
    %35 = arith.maximumf %33, %34 : vector<1x256xf32>
    %c5 = arith.constant 5 : index
    %c0_20 = arith.constant 0 : index
    %36 = vector.load %arg9[%c5, %c0_20] : memref<9x256xf32, #tpu.memory_space<vmem>>, vector<1x256xf32>
    tpu.vector_store %arg9[%c5, %c0_20], %35 {strides = array<i32>} : memref<9x256xf32, #tpu.memory_space<vmem>>, vector<1x256xf32>,
    %37 = vector.extract_strided_slice %3 {offsets = [0, 1536], sizes = [1, 256], strides = [1, 1]} : vector<1x2048xf32> to vector<1x256xf32>
    %38 = arith.addf %37, %4 : vector<1x256xf32>
    %cst_21 = arith.constant 0.000000e+00 : f32
    %39 = vector.broadcast %cst_21 : f32 to vector<1x256xf32>
    %40 = arith.maximumf %38, %39 : vector<1x256xf32>
    %c6 = arith.constant 6 : index
    %c0_22 = arith.constant 0 : index
    %41 = vector.load %arg9[%c6, %c0_22] : memref<9x256xf32, #tpu.memory_space<vmem>>, vector<1x256xf32>
    tpu.vector_store %arg9[%c6, %c0_22], %40 {strides = array<i32>} : memref<9x256xf32, #tpu.memory_space<vmem>>, vector<1x256xf32>,
    %42 = vector.extract_strided_slice %3 {offsets = [0, 1792], sizes = [1, 256], strides = [1, 1]} : vector<1x2048xf32> to vector<1x256xf32>
    %43 = arith.addf %42, %4 : vector<1x256xf32>
    %cst_23 = arith.constant 0.000000e+00 : f32
    %44 = vector.broadcast %cst_23 : f32 to vector<1x256xf32>
    %45 = arith.maximumf %43, %44 : vector<1x256xf32>
    %c7 = arith.constant 7 : index
    %c0_24 = arith.constant 0 : index
    %46 = vector.load %arg9[%c7, %c0_24] : memref<9x256xf32, #tpu.memory_space<vmem>>, vector<1x256xf32>
    tpu.vector_store %arg9[%c7, %c0_24], %45 {strides = array<i32>} : memref<9x256xf32, #tpu.memory_space<vmem>>, vector<1x256xf32>,
    %c0_25 = arith.constant 0 : index
    %c0_26 = arith.constant 0 : index
    %47 = vector.load %arg9[%c0_25, %c0_26] : memref<9x256xf32, #tpu.memory_space<vmem>>, vector<8x256xf32>
    %c1_27 = arith.constant 1 : index
    %c0_28 = arith.constant 0 : index
    %48 = vector.load %arg9[%c1_27, %c0_28] : memref<9x256xf32, #tpu.memory_space<vmem>>, vector<8x256xf32>
    %c0_29 = arith.constant 0 : index
    %c0_30 = arith.constant 0 : index
    %49 = vector.load %arg4[%c0_29, %c0_30] : memref<512x512xf32, #tpu.memory_space<vmem>>, vector<256x512xf32>
    %cst_31 = arith.constant dense<0.000000e+00> : vector<8x512xf32>
    %50 = tpu.matmul %47, %49, %cst_31 {dimension_numbers = #tpu.dot_dimension_numbers<[1], [0], [0], [1], [0, 0, 1, 1], [], []>} : vector<8x256xf32>, vector<256x512xf32>, vector<8x512xf32> -> vector<8x512xf32>
    %c256 = arith.constant 256 : index
    %c0_32 = arith.constant 0 : index
    %51 = vector.load %arg4[%c256, %c0_32] : memref<512x512xf32, #tpu.memory_space<vmem>>, vector<256x512xf32>
    %cst_33 = arith.constant dense<0.000000e+00> : vector<8x512xf32>
    %52 = tpu.matmul %48, %51, %cst_33 {dimension_numbers = #tpu.dot_dimension_numbers<[1], [0], [0], [1], [0, 0, 1, 1], [], []>} : vector<8x256xf32>, vector<256x512xf32>, vector<8x512xf32> -> vector<8x512xf32>
    %53 = arith.addf %50, %52 : vector<8x512xf32>
    %c0_34 = arith.constant 0 : index
    %c0_35 = arith.constant 0 : index
    %54 = vector.load %arg5[%c0_34, %c0_35] : memref<1x512xf32, #tpu.memory_space<vmem>>, vector<1x512xf32>
    %55 = vector.broadcast %54 : vector<1x512xf32> to vector<8x512xf32>
    %56 = arith.addf %53, %55 : vector<8x512xf32>
    %cst_36 = arith.constant 0.000000e+00 : f32
    %57 = vector.broadcast %cst_36 : f32 to vector<8x512xf32>
    %58 = arith.maximumf %56, %57 : vector<8x512xf32>
    %cst_37 = arith.constant 0.000000e+00 : f32
    %59 = vector.broadcast %cst_37 : f32 to vector<1x256xf32>
    %c8_38 = arith.constant 8 : index
    %c0_39 = arith.constant 0 : index
    %60 = vector.load %arg10[%c8_38, %c0_39] : memref<9x256xf32, #tpu.memory_space<vmem>>, vector<1x256xf32>
    tpu.vector_store %arg10[%c8_38, %c0_39], %59 {strides = array<i32>} : memref<9x256xf32, #tpu.memory_space<vmem>>, vector<1x256xf32>,
    %61 = vector.extract_strided_slice %58 {offsets = [0, 0], sizes = [8, 256], strides = [1, 1]} : vector<8x512xf32> to vector<8x256xf32>
    %c0_40 = arith.constant 0 : index
    %c0_41 = arith.constant 0 : index
    %62 = vector.load %arg10[%c0_40, %c0_41] : memref<9x256xf32, #tpu.memory_space<vmem>>, vector<8x256xf32>
    tpu.vector_store %arg10[%c0_40, %c0_41], %61 {strides = array<i32>} : memref<9x256xf32, #tpu.memory_space<vmem>>, vector<8x256xf32>,
    %c1_42 = arith.constant 1 : index
    %c0_43 = arith.constant 0 : index
    %63 = vector.load %arg10[%c1_42, %c0_43] : memref<9x256xf32, #tpu.memory_space<vmem>>, vector<8x256xf32>
    %c0_44 = arith.constant 0 : index
    %c0_45 = arith.constant 0 : index
    %64 = vector.load %arg6[%c0_44, %c0_45] : memref<768x128xf32, #tpu.memory_space<vmem>>, vector<512x128xf32>
    %cst_46 = arith.constant dense<0.000000e+00> : vector<8x128xf32>
    %65 = tpu.matmul %58, %64, %cst_46 {dimension_numbers = #tpu.dot_dimension_numbers<[1], [0], [0], [1], [0, 0, 1, 1], [], []>} : vector<8x512xf32>, vector<512x128xf32>, vector<8x128xf32> -> vector<8x128xf32>
    %c512 = arith.constant 512 : index
    %c0_47 = arith.constant 0 : index
    %66 = vector.load %arg6[%c512, %c0_47] : memref<768x128xf32, #tpu.memory_space<vmem>>, vector<256x128xf32>
    %cst_48 = arith.constant dense<0.000000e+00> : vector<8x128xf32>
    %67 = tpu.matmul %63, %66, %cst_48 {dimension_numbers = #tpu.dot_dimension_numbers<[1], [0], [0], [1], [0, 0, 1, 1], [], []>} : vector<8x256xf32>, vector<256x128xf32>, vector<8x128xf32> -> vector<8x128xf32>
    %68 = arith.addf %65, %67 : vector<8x128xf32>
    %c0_49 = arith.constant 0 : index
    %c0_50 = arith.constant 0 : index
    %69 = vector.load %arg7[%c0_49, %c0_50] : memref<1x128xf32, #tpu.memory_space<vmem>>, vector<1x128xf32>
    %70 = vector.broadcast %69 : vector<1x128xf32> to vector<8x128xf32>
    %71 = arith.addf %68, %70 : vector<8x128xf32>
    %72 = arith.negf %71 : vector<8x128xf32>
    %73 = math.exp %72 : vector<8x128xf32>
    %cst_51 = arith.constant 1.000000e+00 : f32
    %74 = vector.broadcast %cst_51 : f32 to vector<8x128xf32>
    %75 = arith.addf %74, %73 : vector<8x128xf32>
    %76 = arith.divf %74, %75 : vector<8x128xf32>
    %c0_52 = arith.constant 0 : index
    %c0_53 = arith.constant 0 : index
    %c0_54 = arith.constant 0 : index
    %77 = vector.load %arg8[%c0_52, %c0_53, %c0_54] : memref<1x8x128xf32, #tpu.memory_space<vmem>>, vector<1x8x128xf32>
    %78 = vector.shape_cast %77 : vector<1x8x128xf32> to vector<8x128xf32>
    %79 = vector.shape_cast %76 : vector<8x128xf32> to vector<1x8x128xf32>
    tpu.vector_store %arg8[%c0_52, %c0_53, %c0_54], %79 {strides = array<i32>} : memref<1x8x128xf32, #tpu.memory_space<vmem>>, vector<1x8x128xf32>,
    return
  }
  func.func @transform_0(%arg0: i32) -> (i32, i32, i32) {
    %c0_i32 = arith.constant 0 : i32
    %c0_i32_0 = arith.constant 0 : i32
    %c0_i32_1 = arith.constant 0 : i32
    return %arg0, %c0_i32, %c0_i32_0 : i32, i32, i32
  }
  func.func @transform_1(%arg0: i32) -> (i32, i32) {
    %c0_i32 = arith.constant 0 : i32
    %c0_i32_0 = arith.constant 0 : i32
    %c0_i32_1 = arith.constant 0 : i32
    return %c0_i32, %c0_i32_0 : i32, i32
  }
  func.func @transform_2(%arg0: i32) -> (i32, i32) {
    %c0_i32 = arith.constant 0 : i32
    %c0_i32_0 = arith.constant 0 : i32
    %c0_i32_1 = arith.constant 0 : i32
    return %c0_i32, %c0_i32_0 : i32, i32
  }
  func.func @transform_3(%arg0: i32) -> (i32, i32) {
    %c0_i32 = arith.constant 0 : i32
    %c0_i32_0 = arith.constant 0 : i32
    %c0_i32_1 = arith.constant 0 : i32
    return %c0_i32, %c0_i32_0 : i32, i32
  }
  func.func @transform_4(%arg0: i32) -> (i32, i32) {
    %c0_i32 = arith.constant 0 : i32
    %c0_i32_0 = arith.constant 0 : i32
    %c0_i32_1 = arith.constant 0 : i32
    return %c0_i32, %c0_i32_0 : i32, i32
  }
  func.func @transform_5(%arg0: i32) -> (i32, i32) {
    %c0_i32 = arith.constant 0 : i32
    %c0_i32_0 = arith.constant 0 : i32
    %c0_i32_1 = arith.constant 0 : i32
    return %c0_i32, %c0_i32_0 : i32, i32
  }
  func.func @transform_6(%arg0: i32) -> (i32, i32) {
    %c0_i32 = arith.constant 0 : i32
    %c0_i32_0 = arith.constant 0 : i32
    %c0_i32_1 = arith.constant 0 : i32
    return %c0_i32, %c0_i32_0 : i32, i32
  }
  func.func @transform_7(%arg0: i32) -> (i32, i32, i32) {
    %c0_i32 = arith.constant 0 : i32
    %c0_i32_0 = arith.constant 0 : i32
    %c0_i32_1 = arith.constant 0 : i32
    return %arg0, %c0_i32, %c0_i32_0 : i32, i32, i32
  }
}

</mosaic_0001>

<llo_original>
// kernel: decoder_forward.1
$region0: #{decoder_forward.1}
  #allocation0 [shape = 'u32[]', space=smem, size = 0x4, offset = 0x4, fixed_abs, tag = 'smem constant byte address 0x4 - core index']
  #allocation1 [shape = 'u32[144,128]{1,0:T(1,128)}', space=vmem, size = 0x12000, scoped, tag = 'internal scratch']
  #allocation2 [shape = 'f32[9,256]{1,0:T(8,128)}', space=vmem, size = 0x4000, scoped, tag = 'scratch operand']
  #allocation3 [shape = 'f32[9,256]{1,0:T(8,128)}', space=vmem, size = 0x4000, scoped, tag = 'scratch operand']
  %s0 = inlined_call_operand.vmem [shape: f32[2,1,256], index: 0, kind: input, shape index: {}]
  %s1 = inlined_call_operand.hbm [shape: f32[256,2048], index: 1, kind: input, shape index: {}]
  %s2 = inlined_call_operand.hbm [shape: f32[1,256], index: 2, kind: input, shape index: {}]
  %s3 = inlined_call_operand.hbm [shape: f32[512,512], index: 3, kind: input, shape index: {}]
  %s4 = inlined_call_operand.hbm [shape: f32[1,512], index: 4, kind: input, shape index: {}]
  %s5 = inlined_call_operand.hbm [shape: f32[768,128], index: 5, kind: input, shape index: {}]
  %s6 = inlined_call_operand.hbm [shape: f32[1,128], index: 6, kind: input, shape index: {}]
  %s7 = inlined_call_operand.vmem [shape: f32[2,8,128], index: 7, kind: output, shape index: {}]
  %s8 = sld [smem:[#allocation0]]
  $region85: #{decoder_forward.1} parent=0
    _
  %s10 = ssub.s32 1, %s8
  %s11 = scalar_select 0, %s10, %s8
  $region1: #{decoder_forward.1} parent=0
    #allocation4 [shape = 'u8[2097152]{0}', space=vmem, size = 0x200000, scoped, tag = 'input window, operand 1, single buffered']
    #allocation5 [shape = 's32[2]{0}', space=sflag, size = 0x8, scoped, tag = 'scoped memory for decoder_forward.1']
    #allocation6 [shape = 'u8[1024]{0}', space=vmem, size = 0x400, scoped, tag = 'input window, operand 2, single buffered']
    #allocation7 [shape = 's32[1]{0}', space=sflag, size = 0x4, scoped, tag = 'scoped memory for decoder_forward.1']
    #allocation8 [shape = 'u8[1048576]{0}', space=vmem, size = 0x100000, scoped, tag = 'input window, operand 3, single buffered']
    #allocation9 [shape = 'u8[2048]{0}', space=vmem, size = 0x800, scoped, tag = 'input window, operand 4, single buffered']
    #allocation10 [shape = 's32[1]{0}', space=sflag, size = 0x4, scoped, tag = 'scoped memory for decoder_forward.1']
    #allocation11 [shape = 'u8[393216]{0}', space=vmem, size = 0x60000, scoped, tag = 'input window, operand 5, single buffered']
    #allocation12 [shape = 'u8[512]{0}', space=vmem, size = 0x400, scoped, tag = 'input window, operand 6, single buffered']
    #allocation13 [shape = 's32[1]{0}', space=sflag, size = 0x4, scoped, tag = 'scoped memory for decoder_forward.1']
    %12 = vsyncpa [#allocation5], 0
    %13 = vsyncpa [#allocation7], 0
    %14 = vsyncpa [#allocation10], 0
    %15 = vsyncpa [#allocation13], 0
    loop: start=0, step=1, limit=4
    $region2: #{decoder_forward.1} parent=1 // loop_pre_header
      _
    $region3: #{decoder_forward.1} parent=1 // loop_header
      %s17 = sphi 0, %s21
      %p18 = scmp.ge.s32.totalorder %s17, 4
      %s27 = sphi 0, %s29
      %s30 = sphi 0, %s27
      %s31 = sphi 0, %s30
      %s47 = sphi 0, %s31
      %s51 = sphi 0, %s51
      %s53 = sphi 0, %s51
      %s54 = sphi 0, %s53
      %s68 = sphi 0, %s54
      %s72 = sphi 0, %s72
      %s74 = sphi 0, %s72
      %s75 = sphi 0, %s74
      %s89 = sphi 0, %s75
      %s93 = sphi 0, %s93
      %s95 = sphi 0, %s93
      %s96 = sphi 0, %s95
      %s110 = sphi 0, %s96
      %s114 = sphi 0, %s114
      %s116 = sphi 0, %s114
      %s117 = sphi 0, %s116
      %s131 = sphi 0, %s117
      %s135 = sphi 0, %s135
      %s137 = sphi 0, %s135
      %s138 = sphi 0, %s137
      %s152 = sphi 0, %s138
      %s156 = sphi 0, %s156
      %s158 = sphi 0, %s156
      %s159 = sphi 0, %s158
      %s173 = sphi 0, %s159
      %s179 = sphi 0, %s181
      %s182 = sphi 0, %s179
      %s183 = sphi 0, %s182
      %s199 = sphi 0, %s183
    $region4: #{decoder_forward.1} parent=1 // loop_header_branch
      %20 = sbr.rel (%p18) target = $region8
    $region5: #{decoder_forward.1} parent=1 // loop_body
      %s22 = ssub.s32 %s17, 1
      %s23 = ssub.s32 %s17, 2
      %s24 = sadd.s32 %s17, 1
      %s25 = ssub.s32 %s17, %s24
      %p26 = scmp.eq.s32.totalorder %s25, 0
      %s28 = sadd.s32 %s27, 1
      %s29 = scalar_select %p26, %s27, %s28
      %p32 = pneg %p26
      %p33 = scmp.eq.s32.totalorder %s17, 1
      %p34 = por %p32, %p33
      %p35 = scmp.ne.s32.totalorder %s27, %s30
      %p36 = scmp.eq.s32.totalorder %s17, 0
      %p37 = por %p35, %p36
      %p38 = scmp.ne.s32.totalorder %s27, %s30
      %p39 = scmp.eq.s32.totalorder %s22, 1
      %p40 = por %p38, %p39
      %p41 = scmp.ne.s32.totalorder %s30, %s31
      %p42 = scmp.eq.s32.totalorder %s22, 0
      %p43 = por %p41, %p42
      %p44 = scmp.ne.s32.totalorder %s30, %s31
      %p45 = scmp.eq.s32.totalorder %s23, 1
      %p46 = por %p44, %p45
      %p48 = scmp.ne.s32.totalorder %s31, %s47
      %p49 = scmp.eq.s32.totalorder %s23, 0
      %p50 = por %p48, %p49
      %s52 = sadd.s32 %s51, 1
      %p55 = scmp.eq.s32.totalorder %s17, 1
      %p56 = scmp.ne.s32.totalorder %s51, %s53
      %p57 = scmp.eq.s32.totalorder %s17, 0
      %p58 = por %p56, %p57
      %p59 = scmp.ne.s32.totalorder %s51, %s53
      %p60 = scmp.eq.s32.totalorder %s22, 1
      %p61 = por %p59, %p60
      %p62 = scmp.ne.s32.totalorder %s53, %s54
      %p63 = scmp.eq.s32.totalorder %s22, 0
      %p64 = por %p62, %p63
      %p65 = scmp.ne.s32.totalorder %s53, %s54
      %p66 = scmp.eq.s32.totalorder %s23, 1
      %p67 = por %p65, %p66
      %p69 = scmp.ne.s32.totalorder %s54, %s68
      %p70 = scmp.eq.s32.totalorder %s23, 0
      %p71 = por %p69, %p70
      %s73 = sadd.s32 %s72, 1
      %p76 = scmp.eq.s32.totalorder %s17, 1
      %p77 = scmp.ne.s32.totalorder %s72, %s74
      %p78 = scmp.eq.s32.totalorder %s17, 0
      %p79 = por %p77, %p78
      %p80 = scmp.ne.s32.totalorder %s72, %s74
      %p81 = scmp.eq.s32.totalorder %s22, 1
      %p82 = por %p80, %p81
      %p83 = scmp.ne.s32.totalorder %s74, %s75
      %p84 = scmp.eq.s32.totalorder %s22, 0
      %p85 = por %p83, %p84
      %p86 = scmp.ne.s32.totalorder %s74, %s75
      %p87 = scmp.eq.s32.totalorder %s23, 1
      %p88 = por %p86, %p87
      %p90 = scmp.ne.s32.totalorder %s75, %s89
      %p91 = scmp.eq.s32.totalorder %s23, 0
      %p92 = por %p90, %p91
      %s94 = sadd.s32 %s93, 1
      %p97 = scmp.eq.s32.totalorder %s17, 1
      %p98 = scmp.ne.s32.totalorder %s93, %s95
      %p99 = scmp.eq.s32.totalorder %s17, 0
      %p100 = por %p98, %p99
      %p101 = scmp.ne.s32.totalorder %s93, %s95
      %p102 = scmp.eq.s32.totalorder %s22, 1
      %p103 = por %p101, %p102
      %p104 = scmp.ne.s32.totalorder %s95, %s96
      %p105 = scmp.eq.s32.totalorder %s22, 0
      %p106 = por %p104, %p105
      %p107 = scmp.ne.s32.totalorder %s95, %s96
      %p108 = scmp.eq.s32.totalorder %s23, 1
      %p109 = por %p107, %p108
      %p111 = scmp.ne.s32.totalorder %s96, %s110
      %p112 = scmp.eq.s32.totalorder %s23, 0
      %p113 = por %p111, %p112
      %s115 = sadd.s32 %s114, 1
      %p118 = scmp.eq.s32.totalorder %s17, 1
      %p119 = scmp.ne.s32.totalorder %s114, %s116
      %p120 = scmp.eq.s32.totalorder %s17, 0
      %p121 = por %p119, %p120
      %p122 = scmp.ne.s32.totalorder %s114, %s116
      %p123 = scmp.eq.s32.totalorder %s22, 1
      %p124 = por %p122, %p123
      %p125 = scmp.ne.s32.totalorder %s116, %s117
      %p126 = scmp.eq.s32.totalorder %s22, 0
      %p127 = por %p125, %p126
      %p128 = scmp.ne.s32.totalorder %s116, %s117
      %p129 = scmp.eq.s32.totalorder %s23, 1
      %p130 = por %p128, %p129
      %p132 = scmp.ne.s32.totalorder %s117, %s131
      %p133 = scmp.eq.s32.totalorder %s23, 0
      %p134 = por %p132, %p133
      %s136 = sadd.s32 %s135, 1
      %p139 = scmp.eq.s32.totalorder %s17, 1
      %p140 = scmp.ne.s32.totalorder %s135, %s137
      %p141 = scmp.eq.s32.totalorder %s17, 0
      %p142 = por %p140, %p141
      %p143 = scmp.ne.s32.totalorder %s135, %s137
      %p144 = scmp.eq.s32.totalorder %s22, 1
      %p145 = por %p143, %p144
      %p146 = scmp.ne.s32.totalorder %s137, %s138
      %p147 = scmp.eq.s32.totalorder %s22, 0
      %p148 = por %p146, %p147
      %p149 = scmp.ne.s32.totalorder %s137, %s138
      %p150 = scmp.eq.s32.totalorder %s23, 1
      %p151 = por %p149, %p150
      %p153 = scmp.ne.s32.totalorder %s138, %s152
      %p154 = scmp.eq.s32.totalorder %s23, 0
      %p155 = por %p153, %p154
      %s157 = sadd.s32 %s156, 1
      %p160 = scmp.eq.s32.totalorder %s17, 1
      %p161 = scmp.ne.s32.totalorder %s156, %s158
      %p162 = scmp.eq.s32.totalorder %s17, 0
      %p163 = por %p161, %p162
      %p164 = scmp.ne.s32.totalorder %s156, %s158
      %p165 = scmp.eq.s32.totalorder %s22, 1
      %p166 = por %p164, %p165
      %p167 = scmp.ne.s32.totalorder %s158, %s159
      %p168 = scmp.eq.s32.totalorder %s22, 0
      %p169 = por %p167, %p168
      %p170 = scmp.ne.s32.totalorder %s158, %s159
      %p171 = scmp.eq.s32.totalorder %s23, 1
      %p172 = por %p170, %p171
      %p174 = scmp.ne.s32.totalorder %s159, %s173
      %p175 = scmp.eq.s32.totalorder %s23, 0
      %p176 = por %p174, %p175
      %s177 = ssub.s32 %s17, %s24
      %p178 = scmp.eq.s32.totalorder %s177, 0
      %s180 = sadd.s32 %s179, 1
      %s181 = scalar_select %p178, %s179, %s180
      %p184 = pneg %p178
      %p185 = scmp.eq.s32.totalorder %s17, 1
      %p186 = por %p184, %p185
      %p187 = scmp.ne.s32.totalorder %s179, %s182
      %p188 = scmp.eq.s32.totalorder %s17, 0
      %p189 = por %p187, %p188
      %p190 = scmp.ne.s32.totalorder %s179, %s182
      %p191 = scmp.eq.s32.totalorder %s22, 1
      %p192 = por %p190, %p191
      %p193 = scmp.ne.s32.totalorder %s182, %s183
      %p194 = scmp.eq.s32.totalorder %s22, 0
      %p195 = por %p193, %p194
      %p196 = scmp.ne.s32.totalorder %s182, %s183
      %p197 = scmp.eq.s32.totalorder %s23, 1
      %p198 = por %p196, %p197
      %p200 = scmp.ne.s32.totalorder %s183, %s199
      %p201 = scmp.eq.s32.totalorder %s23, 0
      %p202 = por %p200, %p201
      %p203 = scmp.le.s32.totalorder 1, %s17
      %p204 = scmp.lt.s32.totalorder %s17, 3
      %p205 = pnand %p203, %p204
      %p206 = pneg %p205
      // Predicated region
      $region9: #{decoder_forward.1} parent=5 // pred_check
        _
      $region10: #{decoder_forward.1} parent=5 // pred_check_branch
        %208 = sbr.rel (%p205) target = $region12
      $region11: #{decoder_forward.1} parent=5 // pred_region
        %s209 = ssub.s32 %s17, 1
        // Predicated region
        $region13: #{decoder_forward.1} parent=11 // pred_check
          %p210 = pneg %p64
        $region14: #{decoder_forward.1} parent=11 // pred_check_branch
          %212 = sbr.rel (%p210) target = $region16
        $region15: #{decoder_forward.1} parent=11 // pred_region
          %s214 = ssub.s32 65536, 65536
          %215 = vsyncadd [#allocation5], %s214
          %s216 = sshll.u32 [#allocation4], 4
          %s217 = int_to_ptr.vmem [resolvable:$true] %s216
          %222 = dma.hbm_to_vmem [thread:$0]  %s1, 65536, %s217, [#allocation5], 2048, 2048, 128
        $region16: #{decoder_forward.1} parent=11 // pred_fallthru
          _
        // Predicated region
        $region17: #{decoder_forward.1} parent=11 // pred_check
          %p223 = pneg %p85
        $region18: #{decoder_forward.1} parent=11 // pred_check_branch
          %225 = sbr.rel (%p223) target = $region20
        $region19: #{decoder_forward.1} parent=11 // pred_region
          %s227 = ssub.s32 32, 32
          %228 = vsyncadd [#allocation7], %s227
          %s230 = sshll.u32 [#allocation6], 4
          %s231 = int_to_ptr.vmem [resolvable:$true] %s230
          %233 = dma.hbm_to_vmem [thread:$0]  %s2, 32, %s231, [#allocation7]
        $region20: #{decoder_forward.1} parent=11 // pred_fallthru
          _
        // Predicated region
        $region21: #{decoder_forward.1} parent=11 // pred_check
          %p234 = pneg %p106
        $region22: #{decoder_forward.1} parent=11 // pred_check_branch
          %236 = sbr.rel (%p234) target = $region24
        $region23: #{decoder_forward.1} parent=11 // pred_region
          %s238 = ssub.s32 32768, 32768
          %239 = vsyncadd [#allocation7], %s238
          %s240 = sshll.u32 [#allocation8], 4
          %s241 = int_to_ptr.vmem [resolvable:$true] %s240
          %246 = dma.hbm_to_vmem [thread:$0]  %s3, 32768, %s241, [#allocation7], 512, 512, 32
        $region24: #{decoder_forward.1} parent=11 // pred_fallthru
          _
        // Predicated region
        $region25: #{decoder_forward.1} parent=11 // pred_check
          %p247 = pneg %p127
        $region26: #{decoder_forward.1} parent=11 // pred_check_branch
          %249 = sbr.rel (%p247) target = $region28
        $region27: #{decoder_forward.1} parent=11 // pred_region
          %s251 = ssub.s32 64, 64
          %252 = vsyncadd [#allocation10], %s251
          %s254 = sshll.u32 [#allocation9], 4
          %s255 = int_to_ptr.vmem [resolvable:$true] %s254
          %257 = dma.hbm_to_vmem [thread:$0]  %s4, 64, %s255, [#allocation10]
        $region28: #{decoder_forward.1} parent=11 // pred_fallthru
          _
        // Predicated region
        $region29: #{decoder_forward.1} parent=11 // pred_check
          %p258 = pneg %p148
        $region30: #{decoder_forward.1} parent=11 // pred_check_branch
          %260 = sbr.rel (%p258) target = $region32
        $region31: #{decoder_forward.1} parent=11 // pred_region
          %s262 = ssub.s32 12288, 12288
          %263 = vsyncadd [#allocation10], %s262
          %s264 = sshll.u32 [#allocation11], 4
          %s265 = int_to_ptr.vmem [resolvable:$true] %s264
          %270 = dma.hbm_to_vmem [thread:$0]  %s5, 12288, %s265, [#allocation10], 128, 128, 8
        $region32: #{decoder_forward.1} parent=11 // pred_fallthru
          _
        // Predicated region
        $region33: #{decoder_forward.1} parent=11 // pred_check
          %p271 = pneg %p169
        $region34: #{decoder_forward.1} parent=11 // pred_check_branch
          %273 = sbr.rel (%p271) target = $region36
        $region35: #{decoder_forward.1} parent=11 // pred_region
          %s275 = ssub.s32 16, 16
          %276 = vsyncadd [#allocation13], %s275
          %s278 = sshll.u32 [#allocation12], 4
          %s279 = int_to_ptr.vmem [resolvable:$true] %s278
          %281 = dma.hbm_to_vmem [thread:$0]  %s6, 16, %s279, [#allocation13]
        $region36: #{decoder_forward.1} parent=11 // pred_fallthru
          _
      $region12: #{decoder_forward.1} parent=5 // pred_fallthru
        _
      %p282 = scmp.lt.s32.totalorder %s17, 2
      // Predicated region
      $region37: #{decoder_forward.1} parent=5 // pred_check
        %p283 = pneg %p282
      $region38: #{decoder_forward.1} parent=5 // pred_check_branch
        %285 = sbr.rel (%p283) target = $region40
      $region39: #{decoder_forward.1} parent=5 // pred_region
        // Predicated region
        $region41: #{decoder_forward.1} parent=39 // pred_check
          %p286 = pneg %p37
        $region42: #{decoder_forward.1} parent=39 // pred_check_branch
          %288 = sbr.rel (%p286) target = $region44
        $region43: #{decoder_forward.1} parent=39 // pred_region
          %p289 = scmp.lt.s32.totalorder %s17, 1
          %s290 = scalar_select %p289, %s17, 1
          %s291 = smul.addr %s290, 2
          %s292 = scalar_lea.vmem %s0, %s291
        $region44: #{decoder_forward.1} parent=39 // pred_fallthru
          _
      $region40: #{decoder_forward.1} parent=5 // pred_fallthru
        _
      %p293 = scmp.le.s32.totalorder 1, %s17
      %p294 = scmp.lt.s32.totalorder %s17, 3
      %p295 = pnand %p293, %p294
      %p296 = pneg %p295
      // Predicated region
      $region45: #{decoder_forward.1} parent=5 // pred_check
        _
      $region46: #{decoder_forward.1} parent=5 // pred_check_branch
        %298 = sbr.rel (%p295) target = $region48
      $region47: #{decoder_forward.1} parent=5 // pred_region
        %s299 = ssub.s32 %s17, 1
        // Predicated region
        $region49: #{decoder_forward.1} parent=47 // pred_check
          %p300 = pneg %p64
        $region50: #{decoder_forward.1} parent=47 // pred_check_branch
          %302 = sbr.rel (%p300) target = $region52
        $region51: #{decoder_forward.1} parent=47 // pred_region
          %303 = dma.done [#allocation5], 65536
        $region52: #{decoder_forward.1} parent=47 // pred_fallthru
          _
        // Predicated region
        $region53: #{decoder_forward.1} parent=47 // pred_check
          %p304 = pneg %p85
        $region54: #{decoder_forward.1} parent=47 // pred_check_branch
          %306 = sbr.rel (%p304) target = $region56
        $region55: #{decoder_forward.1} parent=47 // pred_region
          %307 = dma.done [#allocation7], 32
        $region56: #{decoder_forward.1} parent=47 // pred_fallthru
          _
        // Predicated region
        $region57: #{decoder_forward.1} parent=47 // pred_check
          %p308 = pneg %p106
        $region58: #{decoder_forward.1} parent=47 // pred_check_branch
          %310 = sbr.rel (%p308) target = $region60
        $region59: #{decoder_forward.1} parent=47 // pred_region
          %311 = dma.done [#allocation7], 32768
        $region60: #{decoder_forward.1} parent=47 // pred_fallthru
          _
        // Predicated region
        $region61: #{decoder_forward.1} parent=47 // pred_check
          %p312 = pneg %p127
        $region62: #{decoder_forward.1} parent=47 // pred_check_branch
          %314 = sbr.rel (%p312) target = $region64
        $region63: #{decoder_forward.1} parent=47 // pred_region
          %315 = dma.done [#allocation10], 64
        $region64: #{decoder_forward.1} parent=47 // pred_fallthru
          _
        // Predicated region
        $region65: #{decoder_forward.1} parent=47 // pred_check
          %p316 = pneg %p148
        $region66: #{decoder_forward.1} parent=47 // pred_check_branch
          %318 = sbr.rel (%p316) target = $region68
        $region67: #{decoder_forward.1} parent=47 // pred_region
          %319 = dma.done [#allocation10], 12288
        $region68: #{decoder_forward.1} parent=47 // pred_fallthru
          _
        // Predicated region
        $region69: #{decoder_forward.1} parent=47 // pred_check
          %p320 = pneg %p169
        $region70: #{decoder_forward.1} parent=47 // pred_check_branch
          %322 = sbr.rel (%p320) target = $region72
        $region71: #{decoder_forward.1} parent=47 // pred_region
          %323 = dma.done [#allocation13], 16
        $region72: #{decoder_forward.1} parent=47 // pred_fallthru
          _
        %p324 = scmp.lt.s32.totalorder %s22, 1
        %s325 = scalar_select %p324, %s22, 1
        %s326 = smul.addr %s325, 2
        %s327 = scalar_lea.vmem %s0, %s326
        %p328 = pneg %p43
        %p329 = pneg %p40
        %p330 = pneg %p64
        %p331 = pneg %p61
        %p332 = pneg %p85
        %p333 = pneg %p82
        %p334 = pneg %p106
        %p335 = pneg %p103
        %p336 = pneg %p127
        %p337 = pneg %p124
        %p338 = pneg %p148
        %p339 = pneg %p145
        %p340 = pneg %p169
        %p341 = pneg %p166
        %p342 = pneg %p195
        %p343 = pneg %p192
        %p344 = scmp.lt.s32.totalorder %s22, 1
        %s345 = scalar_select %p344, %s22, 1
        %s346 = smul.addr %s345, 8
        %s347 = scalar_lea.vmem %s7, %s346
        %p348 = scmp.lt.s32.totalorder %s22, 1
        %s349 = scalar_select %p348, %s22, 1
        %s350 = smul.addr %s349, 2
        %s351 = scalar_lea.vmem %s0, %s350
        %p352 = scmp.lt.s32.totalorder %s22, 1
        %s353 = scalar_select %p352, %s22, 1
        %s354 = smul.addr %s353, 8
        %s355 = scalar_lea.vmem %s7, %s354
        %v356 = vld [vmem:[%s351] sm:$0x3]
        %v357 = vld [vmem:[#allocation4] sm:$0xff]
        %v358 = vld [vmem:[#allocation4 + $0x8] sm:$0xff]
        %v359 = vld [vmem:[#allocation4 + $0x10] sm:$0xff]
        %v360 = vld [vmem:[#allocation4 + $0x18] sm:$0xff]
        %v361 = vld [vmem:[#allocation4 + $0x20] sm:$0xff]
        %v362 = vld [vmem:[#allocation4 + $0x28] sm:$0xff]
        %v363 = vld [vmem:[#allocation4 + $0x30] sm:$0xff]
        %v364 = vld [vmem:[#allocation4 + $0x38] sm:$0xff]
        %v365 = vld [vmem:[#allocation4 + $0x40] sm:$0xff]
        %v366 = vld [vmem:[#allocation4 + $0x48] sm:$0xff]
        %v367 = vld [vmem:[#allocation4 + $0x50] sm:$0xff]
        %v368 = vld [vmem:[#allocation4 + $0x58] sm:$0xff]
        %v369 = vld [vmem:[#allocation4 + $0x60] sm:$0xff]
        %v370 = vld [vmem:[#allocation4 + $0x68] sm:$0xff]
        %v371 = vld [vmem:[#allocation4 + $0x70] sm:$0xff]
        %v372 = vld [vmem:[#allocation4 + $0x78] sm:$0xff]
        %v373 = vld [vmem:[#allocation4 + $0x80] sm:$0xff]
        %v374 = vld [vmem:[#allocation4 + $0x88] sm:$0xff]
        %v375 = vld [vmem:[#allocation4 + $0x90] sm:$0xff]
        %v376 = vld [vmem:[#allocation4 + $0x98] sm:$0xff]
        %v377 = vld [vmem:[#allocation4 + $0xa0] sm:$0xff]
        %v378 = vld [vmem:[#allocation4 + $0xa8] sm:$0xff]
        %v379 = vld [vmem:[#allocation4 + $0xb0] sm:$0xff]
        %v380 = vld [vmem:[#allocation4 + $0xb8] sm:$0xff]
        %v381 = vld [vmem:[#allocation4 + $0xc0] sm:$0xff]
        %v382 = vld [vmem:[#allocation4 + $0xc8] sm:$0xff]
        %v383 = vld [vmem:[#allocation4 + $0xd0] sm:$0xff]
        %v384 = vld [vmem:[#allocation4 + $0xd8] sm:$0xff]
        %v385 = vld [vmem:[#allocation4 + $0xe0] sm:$0xff]
        %v386 = vld [vmem:[#allocation4 + $0xe8] sm:$0xff]
        %v387 = vld [vmem:[#allocation4 + $0xf0] sm:$0xff]
        %v388 = vld [vmem:[#allocation4 + $0xf8] sm:$0xff]
        %v389 = vld [vmem:[#allocation4 + $0x100] sm:$0xff]
        %v390 = vld [vmem:[#allocation4 + $0x108] sm:$0xff]
        %v391 = vld [vmem:[#allocation4 + $0x110] sm:$0xff]
        %v392 = vld [vmem:[#allocation4 + $0x118] sm:$0xff]
        %v393 = vld [vmem:[#allocation4 + $0x120] sm:$0xff]
        %v394 = vld [vmem:[#allocation4 + $0x128] sm:$0xff]
        %v395 = vld [vmem:[#allocation4 + $0x130] sm:$0xff]
        %v396 = vld [vmem:[#allocation4 + $0x138] sm:$0xff]
        %v397 = vld [vmem:[#allocation4 + $0x140] sm:$0xff]
        %v398 = vld [vmem:[#allocation4 + $0x148] sm:$0xff]
        %v399 = vld [vmem:[#allocation4 + $0x150] sm:$0xff]
        %v400 = vld [vmem:[#allocation4 + $0x158] sm:$0xff]
        %v401 = vld [vmem:[#allocation4 + $0x160] sm:$0xff]
        %v402 = vld [vmem:[#allocation4 + $0x168] sm:$0xff]
        %v403 = vld [vmem:[#allocation4 + $0x170] sm:$0xff]
        %v404 = vld [vmem:[#allocation4 + $0x178] sm:$0xff]
        %v405 = vld [vmem:[#allocation4 + $0x180] sm:$0xff]
        %v406 = vld [vmem:[#allocation4 + $0x188] sm:$0xff]
        %v407 = vld [vmem:[#allocation4 + $0x190] sm:$0xff]
        %v408 = vld [vmem:[#allocation4 + $0x198] sm:$0xff]
        %v409 = vld [vmem:[#allocation4 + $0x1a0] sm:$0xff]
        %v410 = vld [vmem:[#allocation4 + $0x1a8] sm:$0xff]
        %v411 = vld [vmem:[#allocation4 + $0x1b0] sm:$0xff]
        %v412 = vld [vmem:[#allocation4 + $0x1b8] sm:$0xff]
        %v413 = vld [vmem:[#allocation4 + $0x1c0] sm:$0xff]
        %v414 = vld [vmem:[#allocation4 + $0x1c8] sm:$0xff]
        %v415 = vld [vmem:[#allocation4 + $0x1d0] sm:$0xff]
        %v416 = vld [vmem:[#allocation4 + $0x1d8] sm:$0xff]
        %v417 = vld [vmem:[#allocation4 + $0x1e0] sm:$0xff]
        %v418 = vld [vmem:[#allocation4 + $0x1e8] sm:$0xff]
        %v419 = vld [vmem:[#allocation4 + $0x1f0] sm:$0xff]
        %v420 = vld [vmem:[#allocation4 + $0x1f8] sm:$0xff]
        %v421 = vld [vmem:[#allocation4 + $0x200] sm:$0xff]
        %v422 = vld [vmem:[#allocation4 + $0x208] sm:$0xff]
        %v423 = vld [vmem:[#allocation4 + $0x210] sm:$0xff]
        %v424 = vld [vmem:[#allocation4 + $0x218] sm:$0xff]
        %v425 = vld [vmem:[#allocation4 + $0x220] sm:$0xff]
        %v426 = vld [vmem:[#allocation4 + $0x228] sm:$0xff]
        %v427 = vld [vmem:[#allocation4 + $0x230] sm:$0xff]
        %v428 = vld [vmem:[#allocation4 + $0x238] sm:$0xff]
        %v429 = vld [vmem:[#allocation4 + $0x240] sm:$0xff]
        %v430 = vld [vmem:[#allocation4 + $0x248] sm:$0xff]
        %v431 = vld [vmem:[#allocation4 + $0x250] sm:$0xff]
        %v432 = vld [vmem:[#allocation4 + $0x258] sm:$0xff]
        %v433 = vld [vmem:[#allocation4 + $0x260] sm:$0xff]
        %v434 = vld [vmem:[#allocation4 + $0x268] sm:$0xff]
        %v435 = vld [vmem:[#allocation4 + $0x270] sm:$0xff]
        %v436 = vld [vmem:[#allocation4 + $0x278] sm:$0xff]
        %v437 = vld [vmem:[#allocation4 + $0x280] sm:$0xff]
        %v438 = vld [vmem:[#allocation4 + $0x288] sm:$0xff]
        %v439 = vld [vmem:[#allocation4 + $0x290] sm:$0xff]
        %v440 = vld [vmem:[#allocation4 + $0x298] sm:$0xff]
        %v441 = vld [vmem:[#allocation4 + $0x2a0] sm:$0xff]
        %v442 = vld [vmem:[#allocation4 + $0x2a8] sm:$0xff]
        %v443 = vld [vmem:[#allocation4 + $0x2b0] sm:$0xff]
        %v444 = vld [vmem:[#allocation4 + $0x2b8] sm:$0xff]
        %v445 = vld [vmem:[#allocation4 + $0x2c0] sm:$0xff]
        %v446 = vld [vmem:[#allocation4 + $0x2c8] sm:$0xff]
        %v447 = vld [vmem:[#allocation4 + $0x2d0] sm:$0xff]
        %v448 = vld [vmem:[#allocation4 + $0x2d8] sm:$0xff]
        %v449 = vld [vmem:[#allocation4 + $0x2e0] sm:$0xff]
        %v450 = vld [vmem:[#allocation4 + $0x2e8] sm:$0xff]
        %v451 = vld [vmem:[#allocation4 + $0x2f0] sm:$0xff]
        %v452 = vld [vmem:[#allocation4 + $0x2f8] sm:$0xff]
        %v453 = vld [vmem:[#allocation4 + $0x300] sm:$0xff]
        %v454 = vld [vmem:[#allocation4 + $0x308] sm:$0xff]
        %v455 = vld [vmem:[#allocation4 + $0x310] sm:$0xff]
        %v456 = vld [vmem:[#allocation4 + $0x318] sm:$0xff]
        %v457 = vld [vmem:[#allocation4 + $0x320] sm:$0xff]
        %v458 = vld [vmem:[#allocation4 + $0x328] sm:$0xff]
        %v459 = vld [vmem:[#allocation4 + $0x330] sm:$0xff]
        %v460 = vld [vmem:[#allocation4 + $0x338] sm:$0xff]
        %v461 = vld [vmem:[#allocation4 + $0x340] sm:$0xff]
        %v462 = vld [vmem:[#allocation4 + $0x348] sm:$0xff]
        %v463 = vld [vmem:[#allocation4 + $0x350] sm:$0xff]
        %v464 = vld [vmem:[#allocation4 + $0x358] sm:$0xff]
        %v465 = vld [vmem:[#allocation4 + $0x360] sm:$0xff]
        %v466 = vld [vmem:[#allocation4 + $0x368] sm:$0xff]
        %v467 = vld [vmem:[#allocation4 + $0x370] sm:$0xff]
        %v468 = vld [vmem:[#allocation4 + $0x378] sm:$0xff]
        %v469 = vld [vmem:[#allocation4 + $0x380] sm:$0xff]
        %v470 = vld [vmem:[#allocation4 + $0x388] sm:$0xff]
        %v471 = vld [vmem:[#allocation4 + $0x390] sm:$0xff]
        %v472 = vld [vmem:[#allocation4 + $0x398] sm:$0xff]
        %v473 = vld [vmem:[#allocation4 + $0x3a0] sm:$0xff]
        %v474 = vld [vmem:[#allocation4 + $0x3a8] sm:$0xff]
        %v475 = vld [vmem:[#allocation4 + $0x3b0] sm:$0xff]
        %v476 = vld [vmem:[#allocation4 + $0x3b8] sm:$0xff]
        %v477 = vld [vmem:[#allocation4 + $0x3c0] sm:$0xff]
        %v478 = vld [vmem:[#allocation4 + $0x3c8] sm:$0xff]
        %v479 = vld [vmem:[#allocation4 + $0x3d0] sm:$0xff]
        %v480 = vld [vmem:[#allocation4 + $0x3d8] sm:$0xff]
        %v481 = vld [vmem:[#allocation4 + $0x3e0] sm:$0xff]
        %v482 = vld [vmem:[#allocation4 + $0x3e8] sm:$0xff]
        %v483 = vld [vmem:[#allocation4 + $0x3f0] sm:$0xff]
        %v484 = vld [vmem:[#allocation4 + $0x3f8] sm:$0xff]
        %v485 = vld [vmem:[#allocation4 + $0x400] sm:$0xff]
        %v486 = vld [vmem:[#allocation4 + $0x408] sm:$0xff]
        %v487 = vld [vmem:[#allocation4 + $0x410] sm:$0xff]
        %v488 = vld [vmem:[#allocation4 + $0x418] sm:$0xff]
        %v489 = vld [vmem:[#allocation4 + $0x420] sm:$0xff]
        %v490 = vld [vmem:[#allocation4 + $0x428] sm:$0xff]
        %v491 = vld [vmem:[#allocation4 + $0x430] sm:$0xff]
        %v492 = vld [vmem:[#allocation4 + $0x438] sm:$0xff]
        %v493 = vld [vmem:[#allocation4 + $0x440] sm:$0xff]
        %v494 = vld [vmem:[#allocation4 + $0x448] sm:$0xff]
        %v495 = vld [vmem:[#allocation4 + $0x450] sm:$0xff]
        %v496 = vld [vmem:[#allocation4 + $0x458] sm:$0xff]
        %v497 = vld [vmem:[#allocation4 + $0x460] sm:$0xff]
        %v498 = vld [vmem:[#allocation4 + $0x468] sm:$0xff]
        %v499 = vld [vmem:[#allocation4 + $0x470] sm:$0xff]
        %v500 = vld [vmem:[#allocation4 + $0x478] sm:$0xff]
        %v501 = vld [vmem:[#allocation4 + $0x480] sm:$0xff]
        %v502 = vld [vmem:[#allocation4 + $0x488] sm:$0xff]
        %v503 = vld [vmem:[#allocation4 + $0x490] sm:$0xff]
        %v504 = vld [vmem:[#allocation4 + $0x498] sm:$0xff]
        %v505 = vld [vmem:[#allocation4 + $0x4a0] sm:$0xff]
        %v506 = vld [vmem:[#allocation4 + $0x4a8] sm:$0xff]
        %v507 = vld [vmem:[#allocation4 + $0x4b0] sm:$0xff]
        %v508 = vld [vmem:[#allocation4 + $0x4b8] sm:$0xff]
        %v509 = vld [vmem:[#allocation4 + $0x4c0] sm:$0xff]
        %v510 = vld [vmem:[#allocation4 + $0x4c8] sm:$0xff]
        %v511 = vld [vmem:[#allocation4 + $0x4d0] sm:$0xff]
        %v512 = vld [vmem:[#allocation4 + $0x4d8] sm:$0xff]
        %v513 = vld [vmem:[#allocation4 + $0x4e0] sm:$0xff]
        %v514 = vld [vmem:[#allocation4 + $0x4e8] sm:$0xff]
        %v515 = vld [vmem:[#allocation4 + $0x4f0] sm:$0xff]
        %v516 = vld [vmem:[#allocation4 + $0x4f8] sm:$0xff]
        %v517 = vld [vmem:[#allocation4 + $0x500] sm:$0xff]
        %v518 = vld [vmem:[#allocation4 + $0x508] sm:$0xff]
        %v519 = vld [vmem:[#allocation4 + $0x510] sm:$0xff]
        %v520 = vld [vmem:[#allocation4 + $0x518] sm:$0xff]
        %v521 = vld [vmem:[#allocation4 + $0x520] sm:$0xff]
        %v522 = vld [vmem:[#allocation4 + $0x528] sm:$0xff]
        %v523 = vld [vmem:[#allocation4 + $0x530] sm:$0xff]
        %v524 = vld [vmem:[#allocation4 + $0x538] sm:$0xff]
        %v525 = vld [vmem:[#allocation4 + $0x540] sm:$0xff]
        %v526 = vld [vmem:[#allocation4 + $0x548] sm:$0xff]
        %v527 = vld [vmem:[#allocation4 + $0x550] sm:$0xff]
        %v528 = vld [vmem:[#allocation4 + $0x558] sm:$0xff]
        %v529 = vld [vmem:[#allocation4 + $0x560] sm:$0xff]
        %v530 = vld [vmem:[#allocation4 + $0x568] sm:$0xff]
        %v531 = vld [vmem:[#allocation4 + $0x570] sm:$0xff]
        %v532 = vld [vmem:[#allocation4 + $0x578] sm:$0xff]
        %v533 = vld [vmem:[#allocation4 + $0x580] sm:$0xff]
        %v534 = vld [vmem:[#allocation4 + $0x588] sm:$0xff]
        %v535 = vld [vmem:[#allocation4 + $0x590] sm:$0xff]
        %v536 = vld [vmem:[#allocation4 + $0x598] sm:$0xff]
        %v537 = vld [vmem:[#allocation4 + $0x5a0] sm:$0xff]
        %v538 = vld [vmem:[#allocation4 + $0x5a8] sm:$0xff]
        %v539 = vld [vmem:[#allocation4 + $0x5b0] sm:$0xff]
        %v540 = vld [vmem:[#allocation4 + $0x5b8] sm:$0xff]
        %v541 = vld [vmem:[#allocation4 + $0x5c0] sm:$0xff]
        %v542 = vld [vmem:[#allocation4 + $0x5c8] sm:$0xff]
        %v543 = vld [vmem:[#allocation4 + $0x5d0] sm:$0xff]
        %v544 = vld [vmem:[#allocation4 + $0x5d8] sm:$0xff]
        %v545 = vld [vmem:[#allocation4 + $0x5e0] sm:$0xff]
        %v546 = vld [vmem:[#allocation4 + $0x5e8] sm:$0xff]
        %v547 = vld [vmem:[#allocation4 + $0x5f0] sm:$0xff]
        %v548 = vld [vmem:[#allocation4 + $0x5f8] sm:$0xff]
        %v549 = vld [vmem:[#allocation4 + $0x600] sm:$0xff]
        %v550 = vld [vmem:[#allocation4 + $0x608] sm:$0xff]
        %v551 = vld [vmem:[#allocation4 + $0x610] sm:$0xff]
        %v552 = vld [vmem:[#allocation4 + $0x618] sm:$0xff]
        %v553 = vld [vmem:[#allocation4 + $0x620] sm:$0xff]
        %v554 = vld [vmem:[#allocation4 + $0x628] sm:$0xff]
        %v555 = vld [vmem:[#allocation4 + $0x630] sm:$0xff]
        %v556 = vld [vmem:[#allocation4 + $0x638] sm:$0xff]
        %v557 = vld [vmem:[#allocation4 + $0x640] sm:$0xff]
        %v558 = vld [vmem:[#allocation4 + $0x648] sm:$0xff]
        %v559 = vld [vmem:[#allocation4 + $0x650] sm:$0xff]
        %v560 = vld [vmem:[#allocation4 + $0x658] sm:$0xff]
        %v561 = vld [vmem:[#allocation4 + $0x660] sm:$0xff]
        %v562 = vld [vmem:[#allocation4 + $0x668] sm:$0xff]
        %v563 = vld [vmem:[#allocation4 + $0x670] sm:$0xff]
        %v564 = vld [vmem:[#allocation4 + $0x678] sm:$0xff]
        %v565 = vld [vmem:[#allocation4 + $0x680] sm:$0xff]
        %v566 = vld [vmem:[#allocation4 + $0x688] sm:$0xff]
        %v567 = vld [vmem:[#allocation4 + $0x690] sm:$0xff]
        %v568 = vld [vmem:[#allocation4 + $0x698] sm:$0xff]
        %v569 = vld [vmem:[#allocation4 + $0x6a0] sm:$0xff]
        %v570 = vld [vmem:[#allocation4 + $0x6a8] sm:$0xff]
        %v571 = vld [vmem:[#allocation4 + $0x6b0] sm:$0xff]
        %v572 = vld [vmem:[#allocation4 + $0x6b8] sm:$0xff]
        %v573 = vld [vmem:[#allocation4 + $0x6c0] sm:$0xff]
        %v574 = vld [vmem:[#allocation4 + $0x6c8] sm:$0xff]
        %v575 = vld [vmem:[#allocation4 + $0x6d0] sm:$0xff]
        %v576 = vld [vmem:[#allocation4 + $0x6d8] sm:$0xff]
        %v577 = vld [vmem:[#allocation4 + $0x6e0] sm:$0xff]
        %v578 = vld [vmem:[#allocation4 + $0x6e8] sm:$0xff]
        %v579 = vld [vmem:[#allocation4 + $0x6f0] sm:$0xff]
        %v580 = vld [vmem:[#allocation4 + $0x6f8] sm:$0xff]
        %v581 = vld [vmem:[#allocation4 + $0x700] sm:$0xff]
        %v582 = vld [vmem:[#allocation4 + $0x708] sm:$0xff]
        %v583 = vld [vmem:[#allocation4 + $0x710] sm:$0xff]
        %v584 = vld [vmem:[#allocation4 + $0x718] sm:$0xff]
        %v585 = vld [vmem:[#allocation4 + $0x720] sm:$0xff]
        %v586 = vld [vmem:[#allocation4 + $0x728] sm:$0xff]
        %v587 = vld [vmem:[#allocation4 + $0x730] sm:$0xff]
        %v588 = vld [vmem:[#allocation4 + $0x738] sm:$0xff]
        %v589 = vld [vmem:[#allocation4 + $0x740] sm:$0xff]
        %v590 = vld [vmem:[#allocation4 + $0x748] sm:$0xff]
        %v591 = vld [vmem:[#allocation4 + $0x750] sm:$0xff]
        %v592 = vld [vmem:[#allocation4 + $0x758] sm:$0xff]
        %v593 = vld [vmem:[#allocation4 + $0x760] sm:$0xff]
        %v594 = vld [vmem:[#allocation4 + $0x768] sm:$0xff]
        %v595 = vld [vmem:[#allocation4 + $0x770] sm:$0xff]
        %v596 = vld [vmem:[#allocation4 + $0x778] sm:$0xff]
        %v597 = vld [vmem:[#allocation4 + $0x780] sm:$0xff]
        %v598 = vld [vmem:[#allocation4 + $0x788] sm:$0xff]
        %v599 = vld [vmem:[#allocation4 + $0x790] sm:$0xff]
        %v600 = vld [vmem:[#allocation4 + $0x798] sm:$0xff]
        %v601 = vld [vmem:[#allocation4 + $0x7a0] sm:$0xff]
        %v602 = vld [vmem:[#allocation4 + $0x7a8] sm:$0xff]
        %v603 = vld [vmem:[#allocation4 + $0x7b0] sm:$0xff]
        %v604 = vld [vmem:[#allocation4 + $0x7b8] sm:$0xff]
        %v605 = vld [vmem:[#allocation4 + $0x7c0] sm:$0xff]
        %v606 = vld [vmem:[#allocation4 + $0x7c8] sm:$0xff]
        %v607 = vld [vmem:[#allocation4 + $0x7d0] sm:$0xff]
        %v608 = vld [vmem:[#allocation4 + $0x7d8] sm:$0xff]
        %v609 = vld [vmem:[#allocation4 + $0x7e0] sm:$0xff]
        %v610 = vld [vmem:[#allocation4 + $0x7e8] sm:$0xff]
        %v611 = vld [vmem:[#allocation4 + $0x7f0] sm:$0xff]
        %v612 = vld [vmem:[#allocation4 + $0x7f8] sm:$0xff]
        %v613 = vld [vmem:[#allocation4 + $0x800] sm:$0xff]
        %v614 = vld [vmem:[#allocation4 + $0x808] sm:$0xff]
        %v615 = vld [vmem:[#allocation4 + $0x810] sm:$0xff]
        %v616 = vld [vmem:[#allocation4 + $0x818] sm:$0xff]
        %v617 = vld [vmem:[#allocation4 + $0x820] sm:$0xff]
        %v618 = vld [vmem:[#allocation4 + $0x828] sm:$0xff]
        %v619 = vld [vmem:[#allocation4 + $0x830] sm:$0xff]
        %v620 = vld [vmem:[#allocation4 + $0x838] sm:$0xff]
        %v621 = vld [vmem:[#allocation4 + $0x840] sm:$0xff]
        %v622 = vld [vmem:[#allocation4 + $0x848] sm:$0xff]
        %v623 = vld [vmem:[#allocation4 + $0x850] sm:$0xff]
        %v624 = vld [vmem:[#allocation4 + $0x858] sm:$0xff]
        %v625 = vld [vmem:[#allocation4 + $0x860] sm:$0xff]
        %v626 = vld [vmem:[#allocation4 + $0x868] sm:$0xff]
        %v627 = vld [vmem:[#allocation4 + $0x870] sm:$0xff]
        %v628 = vld [vmem:[#allocation4 + $0x878] sm:$0xff]
        %v629 = vld [vmem:[#allocation4 + $0x880] sm:$0xff]
        %v630 = vld [vmem:[#allocation4 + $0x888] sm:$0xff]
        %v631 = vld [vmem:[#allocation4 + $0x890] sm:$0xff]
        %v632 = vld [vmem:[#allocation4 + $0x898] sm:$0xff]
        %v633 = vld [vmem:[#allocation4 + $0x8a0] sm:$0xff]
        %v634 = vld [vmem:[#allocation4 + $0x8a8] sm:$0xff]
        %v635 = vld [vmem:[#allocation4 + $0x8b0] sm:$0xff]
        %v636 = vld [vmem:[#allocation4 + $0x8b8] sm:$0xff]
        %v637 = vld [vmem:[#allocation4 + $0x8c0] sm:$0xff]
        %v638 = vld [vmem:[#allocation4 + $0x8c8] sm:$0xff]
        %v639 = vld [vmem:[#allocation4 + $0x8d0] sm:$0xff]
        %v640 = vld [vmem:[#allocation4 + $0x8d8] sm:$0xff]
        %v641 = vld [vmem:[#allocation4 + $0x8e0] sm:$0xff]
        %v642 = vld [vmem:[#allocation4 + $0x8e8] sm:$0xff]
        %v643 = vld [vmem:[#allocation4 + $0x8f0] sm:$0xff]
        %v644 = vld [vmem:[#allocation4 + $0x8f8] sm:$0xff]
        %v645 = vld [vmem:[#allocation4 + $0x900] sm:$0xff]
        %v646 = vld [vmem:[#allocation4 + $0x908] sm:$0xff]
        %v647 = vld [vmem:[#allocation4 + $0x910] sm:$0xff]
        %v648 = vld [vmem:[#allocation4 + $0x918] sm:$0xff]
        %v649 = vld [vmem:[#allocation4 + $0x920] sm:$0xff]
        %v650 = vld [vmem:[#allocation4 + $0x928] sm:$0xff]
        %v651 = vld [vmem:[#allocation4 + $0x930] sm:$0xff]
        %v652 = vld [vmem:[#allocation4 + $0x938] sm:$0xff]
        %v653 = vld [vmem:[#allocation4 + $0x940] sm:$0xff]
        %v654 = vld [vmem:[#allocation4 + $0x948] sm:$0xff]
        %v655 = vld [vmem:[#allocation4 + $0x950] sm:$0xff]
        %v656 = vld [vmem:[#allocation4 + $0x958] sm:$0xff]
        %v657 = vld [vmem:[#allocation4 + $0x960] sm:$0xff]
        %v658 = vld [vmem:[#allocation4 + $0x968] sm:$0xff]
        %v659 = vld [vmem:[#allocation4 + $0x970] sm:$0xff]
        %v660 = vld [vmem:[#allocation4 + $0x978] sm:$0xff]
        %v661 = vld [vmem:[#allocation4 + $0x980] sm:$0xff]
        %v662 = vld [vmem:[#allocation4 + $0x988] sm:$0xff]
        %v663 = vld [vmem:[#allocation4 + $0x990] sm:$0xff]
        %v664 = vld [vmem:[#allocation4 + $0x998] sm:$0xff]
        %v665 = vld [vmem:[#allocation4 + $0x9a0] sm:$0xff]
        %v666 = vld [vmem:[#allocation4 + $0x9a8] sm:$0xff]
        %v667 = vld [vmem:[#allocation4 + $0x9b0] sm:$0xff]
        %v668 = vld [vmem:[#allocation4 + $0x9b8] sm:$0xff]
        %v669 = vld [vmem:[#allocation4 + $0x9c0] sm:$0xff]
        %v670 = vld [vmem:[#allocation4 + $0x9c8] sm:$0xff]
        %v671 = vld [vmem:[#allocation4 + $0x9d0] sm:$0xff]
        %v672 = vld [vmem:[#allocation4 + $0x9d8] sm:$0xff]
        %v673 = vld [vmem:[#allocation4 + $0x9e0] sm:$0xff]
        %v674 = vld [vmem:[#allocation4 + $0x9e8] sm:$0xff]
        %v675 = vld [vmem:[#allocation4 + $0x9f0] sm:$0xff]
        %v676 = vld [vmem:[#allocation4 + $0x9f8] sm:$0xff]
        %v677 = vld [vmem:[#allocation4 + $0xa00] sm:$0xff]
        %v678 = vld [vmem:[#allocation4 + $0xa08] sm:$0xff]
        %v679 = vld [vmem:[#allocation4 + $0xa10] sm:$0xff]
        %v680 = vld [vmem:[#allocation4 + $0xa18] sm:$0xff]
        %v681 = vld [vmem:[#allocation4 + $0xa20] sm:$0xff]
        %v682 = vld [vmem:[#allocation4 + $0xa28] sm:$0xff]
        %v683 = vld [vmem:[#allocation4 + $0xa30] sm:$0xff]
        %v684 = vld [vmem:[#allocation4 + $0xa38] sm:$0xff]
        %v685 = vld [vmem:[#allocation4 + $0xa40] sm:$0xff]
        %v686 = vld [vmem:[#allocation4 + $0xa48] sm:$0xff]
        %v687 = vld [vmem:[#allocation4 + $0xa50] sm:$0xff]
        %v688 = vld [vmem:[#allocation4 + $0xa58] sm:$0xff]
        %v689 = vld [vmem:[#allocation4 + $0xa60] sm:$0xff]
        %v690 = vld [vmem:[#allocation4 + $0xa68] sm:$0xff]
        %v691 = vld [vmem:[#allocation4 + $0xa70] sm:$0xff]
        %v692 = vld [vmem:[#allocation4 + $0xa78] sm:$0xff]
        %v693 = vld [vmem:[#allocation4 + $0xa80] sm:$0xff]
        %v694 = vld [vmem:[#allocation4 + $0xa88] sm:$0xff]
        %v695 = vld [vmem:[#allocation4 + $0xa90] sm:$0xff]
        %v696 = vld [vmem:[#allocation4 + $0xa98] sm:$0xff]
        %v697 = vld [vmem:[#allocation4 + $0xaa0] sm:$0xff]
        %v698 = vld [vmem:[#allocation4 + $0xaa8] sm:$0xff]
        %v699 = vld [vmem:[#allocation4 + $0xab0] sm:$0xff]
        %v700 = vld [vmem:[#allocation4 + $0xab8] sm:$0xff]
        %v701 = vld [vmem:[#allocation4 + $0xac0] sm:$0xff]
        %v702 = vld [vmem:[#allocation4 + $0xac8] sm:$0xff]
        %v703 = vld [vmem:[#allocation4 + $0xad0] sm:$0xff]
        %v704 = vld [vmem:[#allocation4 + $0xad8] sm:$0xff]
        %v705 = vld [vmem:[#allocation4 + $0xae0] sm:$0xff]
        %v706 = vld [vmem:[#allocation4 + $0xae8] sm:$0xff]
        %v707 = vld [vmem:[#allocation4 + $0xaf0] sm:$0xff]
        %v708 = vld [vmem:[#allocation4 + $0xaf8] sm:$0xff]
        %v709 = vld [vmem:[#allocation4 + $0xb00] sm:$0xff]
        %v710 = vld [vmem:[#allocation4 + $0xb08] sm:$0xff]
        %v711 = vld [vmem:[#allocation4 + $0xb10] sm:$0xff]
        %v712 = vld [vmem:[#allocation4 + $0xb18] sm:$0xff]
        %v713 = vld [vmem:[#allocation4 + $0xb20] sm:$0xff]
        %v714 = vld [vmem:[#allocation4 + $0xb28] sm:$0xff]
        %v715 = vld [vmem:[#allocation4 + $0xb30] sm:$0xff]
        %v716 = vld [vmem:[#allocation4 + $0xb38] sm:$0xff]
        %v717 = vld [vmem:[#allocation4 + $0xb40] sm:$0xff]
        %v718 = vld [vmem:[#allocation4 + $0xb48] sm:$0xff]
        %v719 = vld [vmem:[#allocation4 + $0xb50] sm:$0xff]
        %v720 = vld [vmem:[#allocation4 + $0xb58] sm:$0xff]
        %v721 = vld [vmem:[#allocation4 + $0xb60] sm:$0xff]
        %v722 = vld [vmem:[#allocation4 + $0xb68] sm:$0xff]
        %v723 = vld [vmem:[#allocation4 + $0xb70] sm:$0xff]
        %v724 = vld [vmem:[#allocation4 + $0xb78] sm:$0xff]
        %v725 = vld [vmem:[#allocation4 + $0xb80] sm:$0xff]
        %v726 = vld [vmem:[#allocation4 + $0xb88] sm:$0xff]
        %v727 = vld [vmem:[#allocation4 + $0xb90] sm:$0xff]
        %v728 = vld [vmem:[#allocation4 + $0xb98] sm:$0xff]
        %v729 = vld [vmem:[#allocation4 + $0xba0] sm:$0xff]
        %v730 = vld [vmem:[#allocation4 + $0xba8] sm:$0xff]
        %v731 = vld [vmem:[#allocation4 + $0xbb0] sm:$0xff]
        %v732 = vld [vmem:[#allocation4 + $0xbb8] sm:$0xff]
        %v733 = vld [vmem:[#allocation4 + $0xbc0] sm:$0xff]
        %v734 = vld [vmem:[#allocation4 + $0xbc8] sm:$0xff]
        %v735 = vld [vmem:[#allocation4 + $0xbd0] sm:$0xff]
        %v736 = vld [vmem:[#allocation4 + $0xbd8] sm:$0xff]
        %v737 = vld [vmem:[#allocation4 + $0xbe0] sm:$0xff]
        %v738 = vld [vmem:[#allocation4 + $0xbe8] sm:$0xff]
        %v739 = vld [vmem:[#allocation4 + $0xbf0] sm:$0xff]
        %v740 = vld [vmem:[#allocation4 + $0xbf8] sm:$0xff]
        %v741 = vld [vmem:[#allocation4 + $0xc00] sm:$0xff]
        %v742 = vld [vmem:[#allocation4 + $0xc08] sm:$0xff]
        %v743 = vld [vmem:[#allocation4 + $0xc10] sm:$0xff]
        %v744 = vld [vmem:[#allocation4 + $0xc18] sm:$0xff]
        %v745 = vld [vmem:[#allocation4 + $0xc20] sm:$0xff]
        %v746 = vld [vmem:[#allocation4 + $0xc28] sm:$0xff]
        %v747 = vld [vmem:[#allocation4 + $0xc30] sm:$0xff]
        %v748 = vld [vmem:[#allocation4 + $0xc38] sm:$0xff]
        %v749 = vld [vmem:[#allocation4 + $0xc40] sm:$0xff]
        %v750 = vld [vmem:[#allocation4 + $0xc48] sm:$0xff]
        %v751 = vld [vmem:[#allocation4 + $0xc50] sm:$0xff]
        %v752 = vld [vmem:[#allocation4 + $0xc58] sm:$0xff]
        %v753 = vld [vmem:[#allocation4 + $0xc60] sm:$0xff]
        %v754 = vld [vmem:[#allocation4 + $0xc68] sm:$0xff]
        %v755 = vld [vmem:[#allocation4 + $0xc70] sm:$0xff]
        %v756 = vld [vmem:[#allocation4 + $0xc78] sm:$0xff]
        %v757 = vld [vmem:[#allocation4 + $0xc80] sm:$0xff]
        %v758 = vld [vmem:[#allocation4 + $0xc88] sm:$0xff]
        %v759 = vld [vmem:[#allocation4 + $0xc90] sm:$0xff]
        %v760 = vld [vmem:[#allocation4 + $0xc98] sm:$0xff]
        %v761 = vld [vmem:[#allocation4 + $0xca0] sm:$0xff]
        %v762 = vld [vmem:[#allocation4 + $0xca8] sm:$0xff]
        %v763 = vld [vmem:[#allocation4 + $0xcb0] sm:$0xff]
        %v764 = vld [vmem:[#allocation4 + $0xcb8] sm:$0xff]
        %v765 = vld [vmem:[#allocation4 + $0xcc0] sm:$0xff]
        %v766 = vld [vmem:[#allocation4 + $0xcc8] sm:$0xff]
        %v767 = vld [vmem:[#allocation4 + $0xcd0] sm:$0xff]
        %v768 = vld [vmem:[#allocation4 + $0xcd8] sm:$0xff]
        %v769 = vld [vmem:[#allocation4 + $0xce0] sm:$0xff]
        %v770 = vld [vmem:[#allocation4 + $0xce8] sm:$0xff]
        %v771 = vld [vmem:[#allocation4 + $0xcf0] sm:$0xff]
        %v772 = vld [vmem:[#allocation4 + $0xcf8] sm:$0xff]
        %v773 = vld [vmem:[#allocation4 + $0xd00] sm:$0xff]
        %v774 = vld [vmem:[#allocation4 + $0xd08] sm:$0xff]
        %v775 = vld [vmem:[#allocation4 + $0xd10] sm:$0xff]
        %v776 = vld [vmem:[#allocation4 + $0xd18] sm:$0xff]
        %v777 = vld [vmem:[#allocation4 + $0xd20] sm:$0xff]
        %v778 = vld [vmem:[#allocation4 + $0xd28] sm:$0xff]
        %v779 = vld [vmem:[#allocation4 + $0xd30] sm:$0xff]
        %v780 = vld [vmem:[#allocation4 + $0xd38] sm:$0xff]
        %v781 = vld [vmem:[#allocation4 + $0xd40] sm:$0xff]
        %v782 = vld [vmem:[#allocation4 + $0xd48] sm:$0xff]
        %v783 = vld [vmem:[#allocation4 + $0xd50] sm:$0xff]
        %v784 = vld [vmem:[#allocation4 + $0xd58] sm:$0xff]
        %v785 = vld [vmem:[#allocation4 + $0xd60] sm:$0xff]
        %v786 = vld [vmem:[#allocation4 + $0xd68] sm:$0xff]
        %v787 = vld [vmem:[#allocation4 + $0xd70] sm:$0xff]
        %v788 = vld [vmem:[#allocation4 + $0xd78] sm:$0xff]
        %v789 = vld [vmem:[#allocation4 + $0xd80] sm:$0xff]
        %v790 = vld [vmem:[#allocation4 + $0xd88] sm:$0xff]
        %v791 = vld [vmem:[#allocation4 + $0xd90] sm:$0xff]
        %v792 = vld [vmem:[#allocation4 + $0xd98] sm:$0xff]
        %v793 = vld [vmem:[#allocation4 + $0xda0] sm:$0xff]
        %v794 = vld [vmem:[#allocation4 + $0xda8] sm:$0xff]
        %v795 = vld [vmem:[#allocation4 + $0xdb0] sm:$0xff]
        %v796 = vld [vmem:[#allocation4 + $0xdb8] sm:$0xff]
        %v797 = vld [vmem:[#allocation4 + $0xdc0] sm:$0xff]
        %v798 = vld [vmem:[#allocation4 + $0xdc8] sm:$0xff]
        %v799 = vld [vmem:[#allocation4 + $0xdd0] sm:$0xff]
        %v800 = vld [vmem:[#allocation4 + $0xdd8] sm:$0xff]
        %v801 = vld [vmem:[#allocation4 + $0xde0] sm:$0xff]
        %v802 = vld [vmem:[#allocation4 + $0xde8] sm:$0xff]
        %v803 = vld [vmem:[#allocation4 + $0xdf0] sm:$0xff]
        %v804 = vld [vmem:[#allocation4 + $0xdf8] sm:$0xff]
        %v805 = vld [vmem:[#allocation4 + $0xe00] sm:$0xff]
        %v806 = vld [vmem:[#allocation4 + $0xe08] sm:$0xff]
        %v807 = vld [vmem:[#allocation4 + $0xe10] sm:$0xff]
        %v808 = vld [vmem:[#allocation4 + $0xe18] sm:$0xff]
        %v809 = vld [vmem:[#allocation4 + $0xe20] sm:$0xff]
        %v810 = vld [vmem:[#allocation4 + $0xe28] sm:$0xff]
        %v811 = vld [vmem:[#allocation4 + $0xe30] sm:$0xff]
        %v812 = vld [vmem:[#allocation4 + $0xe38] sm:$0xff]
        %v813 = vld [vmem:[#allocation4 + $0xe40] sm:$0xff]
        %v814 = vld [vmem:[#allocation4 + $0xe48] sm:$0xff]
        %v815 = vld [vmem:[#allocation4 + $0xe50] sm:$0xff]
        %v816 = vld [vmem:[#allocation4 + $0xe58] sm:$0xff]
        %v817 = vld [vmem:[#allocation4 + $0xe60] sm:$0xff]
        %v818 = vld [vmem:[#allocation4 + $0xe68] sm:$0xff]
        %v819 = vld [vmem:[#allocation4 + $0xe70] sm:$0xff]
        %v820 = vld [vmem:[#allocation4 + $0xe78] sm:$0xff]
        %v821 = vld [vmem:[#allocation4 + $0xe80] sm:$0xff]
        %v822 = vld [vmem:[#allocation4 + $0xe88] sm:$0xff]
        %v823 = vld [vmem:[#allocation4 + $0xe90] sm:$0xff]
        %v824 = vld [vmem:[#allocation4 + $0xe98] sm:$0xff]
        %v825 = vld [vmem:[#allocation4 + $0xea0] sm:$0xff]
        %v826 = vld [vmem:[#allocation4 + $0xea8] sm:$0xff]
        %v827 = vld [vmem:[#allocation4 + $0xeb0] sm:$0xff]
        %v828 = vld [vmem:[#allocation4 + $0xeb8] sm:$0xff]
        %v829 = vld [vmem:[#allocation4 + $0xec0] sm:$0xff]
        %v830 = vld [vmem:[#allocation4 + $0xec8] sm:$0xff]
        %v831 = vld [vmem:[#allocation4 + $0xed0] sm:$0xff]
        %v832 = vld [vmem:[#allocation4 + $0xed8] sm:$0xff]
        %v833 = vld [vmem:[#allocation4 + $0xee0] sm:$0xff]
        %v834 = vld [vmem:[#allocation4 + $0xee8] sm:$0xff]
        %v835 = vld [vmem:[#allocation4 + $0xef0] sm:$0xff]
        %v836 = vld [vmem:[#allocation4 + $0xef8] sm:$0xff]
        %v837 = vld [vmem:[#allocation4 + $0xf00] sm:$0xff]
        %v838 = vld [vmem:[#allocation4 + $0xf08] sm:$0xff]
        %v839 = vld [vmem:[#allocation4 + $0xf10] sm:$0xff]
        %v840 = vld [vmem:[#allocation4 + $0xf18] sm:$0xff]
        %v841 = vld [vmem:[#allocation4 + $0xf20] sm:$0xff]
        %v842 = vld [vmem:[#allocation4 + $0xf28] sm:$0xff]
        %v843 = vld [vmem:[#allocation4 + $0xf30] sm:$0xff]
        %v844 = vld [vmem:[#allocation4 + $0xf38] sm:$0xff]
        %v845 = vld [vmem:[#allocation4 + $0xf40] sm:$0xff]
        %v846 = vld [vmem:[#allocation4 + $0xf48] sm:$0xff]
        %v847 = vld [vmem:[#allocation4 + $0xf50] sm:$0xff]
        %v848 = vld [vmem:[#allocation4 + $0xf58] sm:$0xff]
        %v849 = vld [vmem:[#allocation4 + $0xf60] sm:$0xff]
        %v850 = vld [vmem:[#allocation4 + $0xf68] sm:$0xff]
        %v851 = vld [vmem:[#allocation4 + $0xf70] sm:$0xff]
        %v852 = vld [vmem:[#allocation4 + $0xf78] sm:$0xff]
        %v853 = vld [vmem:[#allocation4 + $0xf80] sm:$0xff]
        %v854 = vld [vmem:[#allocation4 + $0xf88] sm:$0xff]
        %v855 = vld [vmem:[#allocation4 + $0xf90] sm:$0xff]
        %v856 = vld [vmem:[#allocation4 + $0xf98] sm:$0xff]
        %v857 = vld [vmem:[#allocation4 + $0xfa0] sm:$0xff]
        %v858 = vld [vmem:[#allocation4 + $0xfa8] sm:$0xff]
        %v859 = vld [vmem:[#allocation4 + $0xfb0] sm:$0xff]
        %v860 = vld [vmem:[#allocation4 + $0xfb8] sm:$0xff]
        %v861 = vld [vmem:[#allocation4 + $0xfc0] sm:$0xff]
        %v862 = vld [vmem:[#allocation4 + $0xfc8] sm:$0xff]
        %v863 = vld [vmem:[#allocation4 + $0xfd0] sm:$0xff]
        %v864 = vld [vmem:[#allocation4 + $0xfd8] sm:$0xff]
        %v865 = vld [vmem:[#allocation4 + $0xfe0] sm:$0xff]
        %v866 = vld [vmem:[#allocation4 + $0xfe8] sm:$0xff]
        %v867 = vld [vmem:[#allocation4 + $0xff0] sm:$0xff]
        %v868 = vld [vmem:[#allocation4 + $0xff8] sm:$0xff]
        %v870 = vlaneseq
        %v871 = vshrl.u32 %v870, 7
        %v872 = vsub.s32 0, %v871
        %v873 = vrot.slane %v356, %v872
        %v874 = vlaneseq
        %v875 = vshrl.u32 %v874, 7
        %v876 = vsub.s32 1, %v875
        %v877 = vrot.slane %v356, %v876
        %880 = vmatprep.subr.mxu0 %v358
        %881 = vmatpush1.msra.mxu0 %v357
        %882 = vmatprep.subr.mxu0 %v374
        %883 = vmatpush1.msra.mxu0 %v373
        %884 = vmatprep.subr.mxu0 %v390
        %885 = vmatpush1.msra.mxu0 %v389
        %886 = vmatprep.subr.mxu0 %v406
        %887 = vmatpush1.msra.mxu0 %v405
        %888 = vmatprep.subr.mxu0 %v422
        %889 = vmatpush1.msra.mxu0 %v421
        %890 = vmatprep.subr.mxu0 %v438
        %891 = vmatpush1.msra.mxu0 %v437
        %892 = vmatprep.subr.mxu0 %v454
        %893 = vmatpush1.msra.mxu0 %v453
        %894 = vmatprep.subr.mxu0 %v470
        %895 = vmatpush1.msra.mxu0 %v469
        %896 = vmatprep.subr.mxu0 %v486
        %897 = vmatpush1.msra.mxu0 %v485
        %898 = vmatprep.subr.mxu0 %v502
        %899 = vmatpush1.msra.mxu0 %v501
        %900 = vmatprep.subr.mxu0 %v518
        %901 = vmatpush1.msra.mxu0 %v517
        %902 = vmatprep.subr.mxu0 %v534
        %903 = vmatpush1.msra.mxu0 %v533
        %904 = vmatprep.subr.mxu0 %v550
        %905 = vmatpush1.msra.mxu0 %v549
        %906 = vmatprep.subr.mxu0 %v566
        %907 = vmatpush1.msra.mxu0 %v565
        %908 = vmatprep.subr.mxu0 %v582
        %909 = vmatpush1.msra.mxu0 %v581
        %910 = vmatprep.subr.mxu0 %v598
        %911 = vmatpush1.msra.mxu0 %v597
        %912 = vmatprep.subr.mxu0 %v614
        %913 = vmatpush1.msra.mxu0 %v613
        %914 = vmatprep.subr.mxu0 %v630
        %915 = vmatpush1.msra.mxu0 %v629
        %916 = vmatprep.subr.mxu0 %v646
        %917 = vmatpush1.msra.mxu0 %v645
        %918 = vmatprep.subr.mxu0 %v662
        %919 = vmatpush1.msra.mxu0 %v661
        %920 = vmatprep.subr.mxu0 %v678
        %921 = vmatpush1.msra.mxu0 %v677
        %922 = vmatprep.subr.mxu0 %v694
        %923 = vmatpush1.msra.mxu0 %v693
        %924 = vmatprep.subr.mxu0 %v710
        %925 = vmatpush1.msra.mxu0 %v709
        %926 = vmatprep.subr.mxu0 %v726
        %927 = vmatpush1.msra.mxu0 %v725
        %928 = vmatprep.subr.mxu0 %v742
        %929 = vmatpush1.msra.mxu0 %v741
        %930 = vmatprep.subr.mxu0 %v758
        %931 = vmatpush1.msra.mxu0 %v757
        %932 = vmatprep.subr.mxu0 %v774
        %933 = vmatpush1.msra.mxu0 %v773
        %934 = vmatprep.subr.mxu0 %v790
        %935 = vmatpush1.msra.mxu0 %v789
        %936 = vmatprep.subr.mxu0 %v806
        %937 = vmatpush1.msra.mxu0 %v805
        %938 = vmatprep.subr.mxu0 %v822
        %939 = vmatpush1.msra.mxu0 %v821
        %940 = vmatprep.subr.mxu0 %v838
        %941 = vmatpush1.msra.mxu0 %v837
        %942 = vmatprep.subr.mxu0 %v854
        %943 = vmatpush1.msra.mxu0 %v853
        %944 = vmatprep.mubr.f32.mxu0 %v877
        %945 = vmatmul.mubr.f32.gmra.mrb[0].mxu0 %v873
        %v946 = vpop.f32.mrb[0].mxu0
        %v947 = vadd.f32 0.0, %v946
        %v948 = vpop.f32.mrb[0].mxu0
        %v949 = vadd.f32 0.0, %v948
        %950 = vdwg.mxu0
        %951 = vmatprep.subr.mxu0 %v360
        %952 = vmatpush1.msra.mxu0 %v359
        %953 = vmatprep.subr.mxu0 %v376
        %954 = vmatpush1.msra.mxu0 %v375
        %955 = vmatprep.subr.mxu0 %v392
        %956 = vmatpush1.msra.mxu0 %v391
        %957 = vmatprep.subr.mxu0 %v408
        %958 = vmatpush1.msra.mxu0 %v407
        %959 = vmatprep.subr.mxu0 %v424
        %960 = vmatpush1.msra.mxu0 %v423
        %961 = vmatprep.subr.mxu0 %v440
        %962 = vmatpush1.msra.mxu0 %v439
        %963 = vmatprep.subr.mxu0 %v456
        %964 = vmatpush1.msra.mxu0 %v455
        %965 = vmatprep.subr.mxu0 %v472
        %966 = vmatpush1.msra.mxu0 %v471
        %967 = vmatprep.subr.mxu0 %v488
        %968 = vmatpush1.msra.mxu0 %v487
        %969 = vmatprep.subr.mxu0 %v504
        %970 = vmatpush1.msra.mxu0 %v503
        %971 = vmatprep.subr.mxu0 %v520
        %972 = vmatpush1.msra.mxu0 %v519
        %973 = vmatprep.subr.mxu0 %v536
        %974 = vmatpush1.msra.mxu0 %v535
        %975 = vmatprep.subr.mxu0 %v552
        %976 = vmatpush1.msra.mxu0 %v551
        %977 = vmatprep.subr.mxu0 %v568
        %978 = vmatpush1.msra.mxu0 %v567
        %979 = vmatprep.subr.mxu0 %v584
        %980 = vmatpush1.msra.mxu0 %v583
        %981 = vmatprep.subr.mxu0 %v600
        %982 = vmatpush1.msra.mxu0 %v599
        %983 = vmatprep.subr.mxu0 %v616
        %984 = vmatpush1.msra.mxu0 %v615
        %985 = vmatprep.subr.mxu0 %v632
        %986 = vmatpush1.msra.mxu0 %v631
        %987 = vmatprep.subr.mxu0 %v648
        %988 = vmatpush1.msra.mxu0 %v647
        %989 = vmatprep.subr.mxu0 %v664
        %990 = vmatpush1.msra.mxu0 %v663
        %991 = vmatprep.subr.mxu0 %v680
        %992 = vmatpush1.msra.mxu0 %v679
        %993 = vmatprep.subr.mxu0 %v696
        %994 = vmatpush1.msra.mxu0 %v695
        %995 = vmatprep.subr.mxu0 %v712
        %996 = vmatpush1.msra.mxu0 %v711
        %997 = vmatprep.subr.mxu0 %v728
        %998 = vmatpush1.msra.mxu0 %v727
        %999 = vmatprep.subr.mxu0 %v744
        %1000 = vmatpush1.msra.mxu0 %v743
        %1001 = vmatprep.subr.mxu0 %v760
        %1002 = vmatpush1.msra.mxu0 %v759
        %1003 = vmatprep.subr.mxu0 %v776
        %1004 = vmatpush1.msra.mxu0 %v775
        %1005 = vmatprep.subr.mxu0 %v792
        %1006 = vmatpush1.msra.mxu0 %v791
        %1007 = vmatprep.subr.mxu0 %v808
        %1008 = vmatpush1.msra.mxu0 %v807
        %1009 = vmatprep.subr.mxu0 %v824
        %1010 = vmatpush1.msra.mxu0 %v823
        %1011 = vmatprep.subr.mxu0 %v840
        %1012 = vmatpush1.msra.mxu0 %v839
        %1013 = vmatprep.subr.mxu0 %v856
        %1014 = vmatpush1.msra.mxu0 %v855
        %1015 = vmatprep.mubr.f32.mxu0 %v877
        %1016 = vmatmul.mubr.f32.gmra.mrb[0].mxu0 %v873
        %v1017 = vpop.f32.mrb[0].mxu0
        %v1018 = vadd.f32 0.0, %v1017
        %v1019 = vpop.f32.mrb[0].mxu0
        %v1020 = vadd.f32 0.0, %v1019
        %1021 = vdwg.mxu0
        %1022 = vmatprep.subr.mxu0 %v362
        %1023 = vmatpush1.msra.mxu0 %v361
        %1024 = vmatprep.subr.mxu0 %v378
        %1025 = vmatpush1.msra.mxu0 %v377
        %1026 = vmatprep.subr.mxu0 %v394
        %1027 = vmatpush1.msra.mxu0 %v393
        %1028 = vmatprep.subr.mxu0 %v410
        %1029 = vmatpush1.msra.mxu0 %v409
        %1030 = vmatprep.subr.mxu0 %v426
        %1031 = vmatpush1.msra.mxu0 %v425
        %1032 = vmatprep.subr.mxu0 %v442
        %1033 = vmatpush1.msra.mxu0 %v441
        %1034 = vmatprep.subr.mxu0 %v458
        %1035 = vmatpush1.msra.mxu0 %v457
        %1036 = vmatprep.subr.mxu0 %v474
        %1037 = vmatpush1.msra.mxu0 %v473
        %1038 = vmatprep.subr.mxu0 %v490
        %1039 = vmatpush1.msra.mxu0 %v489
        %1040 = vmatprep.subr.mxu0 %v506
        %1041 = vmatpush1.msra.mxu0 %v505
        %1042 = vmatprep.subr.mxu0 %v522
        %1043 = vmatpush1.msra.mxu0 %v521
        %1044 = vmatprep.subr.mxu0 %v538
        %1045 = vmatpush1.msra.mxu0 %v537
        %1046 = vmatprep.subr.mxu0 %v554
        %1047 = vmatpush1.msra.mxu0 %v553
        %1048 = vmatprep.subr.mxu0 %v570
        %1049 = vmatpush1.msra.mxu0 %v569
        %1050 = vmatprep.subr.mxu0 %v586
        %1051 = vmatpush1.msra.mxu0 %v585
        %1052 = vmatprep.subr.mxu0 %v602
        %1053 = vmatpush1.msra.mxu0 %v601
        %1054 = vmatprep.subr.mxu0 %v618
        %1055 = vmatpush1.msra.mxu0 %v617
        %1056 = vmatprep.subr.mxu0 %v634
        %1057 = vmatpush1.msra.mxu0 %v633
        %1058 = vmatprep.subr.mxu0 %v650
        %1059 = vmatpush1.msra.mxu0 %v649
        %1060 = vmatprep.subr.mxu0 %v666
        %1061 = vmatpush1.msra.mxu0 %v665
        %1062 = vmatprep.subr.mxu0 %v682
        %1063 = vmatpush1.msra.mxu0 %v681
        %1064 = vmatprep.subr.mxu0 %v698
        %1065 = vmatpush1.msra.mxu0 %v697
        %1066 = vmatprep.subr.mxu0 %v714
        %1067 = vmatpush1.msra.mxu0 %v713
        %1068 = vmatprep.subr.mxu0 %v730
        %1069 = vmatpush1.msra.mxu0 %v729
        %1070 = vmatprep.subr.mxu0 %v746
        %1071 = vmatpush1.msra.mxu0 %v745
        %1072 = vmatprep.subr.mxu0 %v762
        %1073 = vmatpush1.msra.mxu0 %v761
        %1074 = vmatprep.subr.mxu0 %v778
        %1075 = vmatpush1.msra.mxu0 %v777
        %1076 = vmatprep.subr.mxu0 %v794
        %1077 = vmatpush1.msra.mxu0 %v793
        %1078 = vmatprep.subr.mxu0 %v810
        %1079 = vmatpush1.msra.mxu0 %v809
        %1080 = vmatprep.subr.mxu0 %v826
        %1081 = vmatpush1.msra.mxu0 %v825
        %1082 = vmatprep.subr.mxu0 %v842
        %1083 = vmatpush1.msra.mxu0 %v841
        %1084 = vmatprep.subr.mxu0 %v858
        %1085 = vmatpush1.msra.mxu0 %v857
        %1086 = vmatprep.mubr.f32.mxu0 %v877
        %1087 = vmatmul.mubr.f32.gmra.mrb[0].mxu0 %v873
        %v1088 = vpop.f32.mrb[0].mxu0
        %v1089 = vadd.f32 0.0, %v1088
        %v1090 = vpop.f32.mrb[0].mxu0
        %v1091 = vadd.f32 0.0, %v1090
        %1092 = vdwg.mxu0
        %1093 = vmatprep.subr.mxu0 %v364
        %1094 = vmatpush1.msra.mxu0 %v363
        %1095 = vmatprep.subr.mxu0 %v380
        %1096 = vmatpush1.msra.mxu0 %v379
        %1097 = vmatprep.subr.mxu0 %v396
        %1098 = vmatpush1.msra.mxu0 %v395
        %1099 = vmatprep.subr.mxu0 %v412
        %1100 = vmatpush1.msra.mxu0 %v411
        %1101 = vmatprep.subr.mxu0 %v428
        %1102 = vmatpush1.msra.mxu0 %v427
        %1103 = vmatprep.subr.mxu0 %v444
        %1104 = vmatpush1.msra.mxu0 %v443
        %1105 = vmatprep.subr.mxu0 %v460
        %1106 = vmatpush1.msra.mxu0 %v459
        %1107 = vmatprep.subr.mxu0 %v476
        %1108 = vmatpush1.msra.mxu0 %v475
        %1109 = vmatprep.subr.mxu0 %v492
        %1110 = vmatpush1.msra.mxu0 %v491
        %1111 = vmatprep.subr.mxu0 %v508
        %1112 = vmatpush1.msra.mxu0 %v507
        %1113 = vmatprep.subr.mxu0 %v524
        %1114 = vmatpush1.msra.mxu0 %v523
        %1115 = vmatprep.subr.mxu0 %v540
        %1116 = vmatpush1.msra.mxu0 %v539
        %1117 = vmatprep.subr.mxu0 %v556
        %1118 = vmatpush1.msra.mxu0 %v555
        %1119 = vmatprep.subr.mxu0 %v572
        %1120 = vmatpush1.msra.mxu0 %v571
        %1121 = vmatprep.subr.mxu0 %v588
        %1122 = vmatpush1.msra.mxu0 %v587
        %1123 = vmatprep.subr.mxu0 %v604
        %1124 = vmatpush1.msra.mxu0 %v603
        %1125 = vmatprep.subr.mxu0 %v620
        %1126 = vmatpush1.msra.mxu0 %v619
        %1127 = vmatprep.subr.mxu0 %v636
        %1128 = vmatpush1.msra.mxu0 %v635
        %1129 = vmatprep.subr.mxu0 %v652
        %1130 = vmatpush1.msra.mxu0 %v651
        %1131 = vmatprep.subr.mxu0 %v668
        %1132 = vmatpush1.msra.mxu0 %v667
        %1133 = vmatprep.subr.mxu0 %v684
        %1134 = vmatpush1.msra.mxu0 %v683
        %1135 = vmatprep.subr.mxu0 %v700
        %1136 = vmatpush1.msra.mxu0 %v699
        %1137 = vmatprep.subr.mxu0 %v716
        %1138 = vmatpush1.msra.mxu0 %v715
        %1139 = vmatprep.subr.mxu0 %v732
        %1140 = vmatpush1.msra.mxu0 %v731
        %1141 = vmatprep.subr.mxu0 %v748
        %1142 = vmatpush1.msra.mxu0 %v747
        %1143 = vmatprep.subr.mxu0 %v764
        %1144 = vmatpush1.msra.mxu0 %v763
        %1145 = vmatprep.subr.mxu0 %v780
        %1146 = vmatpush1.msra.mxu0 %v779
        %1147 = vmatprep.subr.mxu0 %v796
        %1148 = vmatpush1.msra.mxu0 %v795
        %1149 = vmatprep.subr.mxu0 %v812
        %1150 = vmatpush1.msra.mxu0 %v811
        %1151 = vmatprep.subr.mxu0 %v828
        %1152 = vmatpush1.msra.mxu0 %v827
        %1153 = vmatprep.subr.mxu0 %v844
        %1154 = vmatpush1.msra.mxu0 %v843
        %1155 = vmatprep.subr.mxu0 %v860
        %1156 = vmatpush1.msra.mxu0 %v859
        %1157 = vmatprep.mubr.f32.mxu0 %v877
        %1158 = vmatmul.mubr.f32.gmra.mrb[0].mxu0 %v873
        %v1159 = vpop.f32.mrb[0].mxu0
        %v1160 = vadd.f32 0.0, %v1159
        %v1161 = vpop.f32.mrb[0].mxu0
        %v1162 = vadd.f32 0.0, %v1161
        %1163 = vdwg.mxu0
        %1164 = vmatprep.subr.mxu0 %v366
        %1165 = vmatpush1.msra.mxu0 %v365
        %1166 = vmatprep.subr.mxu0 %v382
        %1167 = vmatpush1.msra.mxu0 %v381
        %1168 = vmatprep.subr.mxu0 %v398
        %1169 = vmatpush1.msra.mxu0 %v397
        %1170 = vmatprep.subr.mxu0 %v414
        %1171 = vmatpush1.msra.mxu0 %v413
        %1172 = vmatprep.subr.mxu0 %v430
        %1173 = vmatpush1.msra.mxu0 %v429
        %1174 = vmatprep.subr.mxu0 %v446
        %1175 = vmatpush1.msra.mxu0 %v445
        %1176 = vmatprep.subr.mxu0 %v462
        %1177 = vmatpush1.msra.mxu0 %v461
        %1178 = vmatprep.subr.mxu0 %v478
        %1179 = vmatpush1.msra.mxu0 %v477
        %1180 = vmatprep.subr.mxu0 %v494
        %1181 = vmatpush1.msra.mxu0 %v493
        %1182 = vmatprep.subr.mxu0 %v510
        %1183 = vmatpush1.msra.mxu0 %v509
        %1184 = vmatprep.subr.mxu0 %v526
        %1185 = vmatpush1.msra.mxu0 %v525
        %1186 = vmatprep.subr.mxu0 %v542
        %1187 = vmatpush1.msra.mxu0 %v541
        %1188 = vmatprep.subr.mxu0 %v558
        %1189 = vmatpush1.msra.mxu0 %v557
        %1190 = vmatprep.subr.mxu0 %v574
        %1191 = vmatpush1.msra.mxu0 %v573
        %1192 = vmatprep.subr.mxu0 %v590
        %1193 = vmatpush1.msra.mxu0 %v589
        %1194 = vmatprep.subr.mxu0 %v606
        %1195 = vmatpush1.msra.mxu0 %v605
        %1196 = vmatprep.subr.mxu0 %v622
        %1197 = vmatpush1.msra.mxu0 %v621
        %1198 = vmatprep.subr.mxu0 %v638
        %1199 = vmatpush1.msra.mxu0 %v637
        %1200 = vmatprep.subr.mxu0 %v654
        %1201 = vmatpush1.msra.mxu0 %v653
        %1202 = vmatprep.subr.mxu0 %v670
        %1203 = vmatpush1.msra.mxu0 %v669
        %1204 = vmatprep.subr.mxu0 %v686
        %1205 = vmatpush1.msra.mxu0 %v685
        %1206 = vmatprep.subr.mxu0 %v702
        %1207 = vmatpush1.msra.mxu0 %v701
        %1208 = vmatprep.subr.mxu0 %v718
        %1209 = vmatpush1.msra.mxu0 %v717
        %1210 = vmatprep.subr.mxu0 %v734
        %1211 = vmatpush1.msra.mxu0 %v733
        %1212 = vmatprep.subr.mxu0 %v750
        %1213 = vmatpush1.msra.mxu0 %v749
        %1214 = vmatprep.subr.mxu0 %v766
        %1215 = vmatpush1.msra.mxu0 %v765
        %1216 = vmatprep.subr.mxu0 %v782
        %1217 = vmatpush1.msra.mxu0 %v781
        %1218 = vmatprep.subr.mxu0 %v798
        %1219 = vmatpush1.msra.mxu0 %v797
        %1220 = vmatprep.subr.mxu0 %v814
        %1221 = vmatpush1.msra.mxu0 %v813
        %1222 = vmatprep.subr.mxu0 %v830
        %1223 = vmatpush1.msra.mxu0 %v829
        %1224 = vmatprep.subr.mxu0 %v846
        %1225 = vmatpush1.msra.mxu0 %v845
        %1226 = vmatprep.subr.mxu0 %v862
        %1227 = vmatpush1.msra.mxu0 %v861
        %1228 = vmatprep.mubr.f32.mxu0 %v877
        %1229 = vmatmul.mubr.f32.gmra.mrb[0].mxu0 %v873
        %v1230 = vpop.f32.mrb[0].mxu0
        %v1231 = vadd.f32 0.0, %v1230
        %v1232 = vpop.f32.mrb[0].mxu0
        %v1233 = vadd.f32 0.0, %v1232
        %1234 = vdwg.mxu0
        %1235 = vmatprep.subr.mxu0 %v368
        %1236 = vmatpush1.msra.mxu0 %v367
        %1237 = vmatprep.subr.mxu0 %v384
        %1238 = vmatpush1.msra.mxu0 %v383
        %1239 = vmatprep.subr.mxu0 %v400
        %1240 = vmatpush1.msra.mxu0 %v399
        %1241 = vmatprep.subr.mxu0 %v416
        %1242 = vmatpush1.msra.mxu0 %v415
        %1243 = vmatprep.subr.mxu0 %v432
        %1244 = vmatpush1.msra.mxu0 %v431
        %1245 = vmatprep.subr.mxu0 %v448
        %1246 = vmatpush1.msra.mxu0 %v447
        %1247 = vmatprep.subr.mxu0 %v464
        %1248 = vmatpush1.msra.mxu0 %v463
        %1249 = vmatprep.subr.mxu0 %v480
        %1250 = vmatpush1.msra.mxu0 %v479
        %1251 = vmatprep.subr.mxu0 %v496
        %1252 = vmatpush1.msra.mxu0 %v495
        %1253 = vmatprep.subr.mxu0 %v512
        %1254 = vmatpush1.msra.mxu0 %v511
        %1255 = vmatprep.subr.mxu0 %v528
        %1256 = vmatpush1.msra.mxu0 %v527
        %1257 = vmatprep.subr.mxu0 %v544
        %1258 = vmatpush1.msra.mxu0 %v543
        %1259 = vmatprep.subr.mxu0 %v560
        %1260 = vmatpush1.msra.mxu0 %v559
        %1261 = vmatprep.subr.mxu0 %v576
        %1262 = vmatpush1.msra.mxu0 %v575
        %1263 = vmatprep.subr.mxu0 %v592
        %1264 = vmatpush1.msra.mxu0 %v591
        %1265 = vmatprep.subr.mxu0 %v608
        %1266 = vmatpush1.msra.mxu0 %v607
        %1267 = vmatprep.subr.mxu0 %v624
        %1268 = vmatpush1.msra.mxu0 %v623
        %1269 = vmatprep.subr.mxu0 %v640
        %1270 = vmatpush1.msra.mxu0 %v639
        %1271 = vmatprep.subr.mxu0 %v656
        %1272 = vmatpush1.msra.mxu0 %v655
        %1273 = vmatprep.subr.mxu0 %v672
        %1274 = vmatpush1.msra.mxu0 %v671
        %1275 = vmatprep.subr.mxu0 %v688
        %1276 = vmatpush1.msra.mxu0 %v687
        %1277 = vmatprep.subr.mxu0 %v704
        %1278 = vmatpush1.msra.mxu0 %v703
        %1279 = vmatprep.subr.mxu0 %v720
        %1280 = vmatpush1.msra.mxu0 %v719
        %1281 = vmatprep.subr.mxu0 %v736
        %1282 = vmatpush1.msra.mxu0 %v735
        %1283 = vmatprep.subr.mxu0 %v752
        %1284 = vmatpush1.msra.mxu0 %v751
        %1285 = vmatprep.subr.mxu0 %v768
        %1286 = vmatpush1.msra.mxu0 %v767
        %1287 = vmatprep.subr.mxu0 %v784
        %1288 = vmatpush1.msra.mxu0 %v783
        %1289 = vmatprep.subr.mxu0 %v800
        %1290 = vmatpush1.msra.mxu0 %v799
        %1291 = vmatprep.subr.mxu0 %v816
        %1292 = vmatpush1.msra.mxu0 %v815
        %1293 = vmatprep.subr.mxu0 %v832
        %1294 = vmatpush1.msra.mxu0 %v831
        %1295 = vmatprep.subr.mxu0 %v848
        %1296 = vmatpush1.msra.mxu0 %v847
        %1297 = vmatprep.subr.mxu0 %v864
        %1298 = vmatpush1.msra.mxu0 %v863
        %1299 = vmatprep.mubr.f32.mxu0 %v877
        %1300 = vmatmul.mubr.f32.gmra.mrb[0].mxu0 %v873
        %v1301 = vpop.f32.mrb[0].mxu0
        %v1302 = vadd.f32 0.0, %v1301
        %v1303 = vpop.f32.mrb[0].mxu0
        %v1304 = vadd.f32 0.0, %v1303
        %1305 = vdwg.mxu0
        %1306 = vmatprep.subr.mxu0 %v370
        %1307 = vmatpush1.msra.mxu0 %v369
        %1308 = vmatprep.subr.mxu0 %v386
        %1309 = vmatpush1.msra.mxu0 %v385
        %1310 = vmatprep.subr.mxu0 %v402
        %1311 = vmatpush1.msra.mxu0 %v401
        %1312 = vmatprep.subr.mxu0 %v418
        %1313 = vmatpush1.msra.mxu0 %v417
        %1314 = vmatprep.subr.mxu0 %v434
        %1315 = vmatpush1.msra.mxu0 %v433
        %1316 = vmatprep.subr.mxu0 %v450
        %1317 = vmatpush1.msra.mxu0 %v449
        %1318 = vmatprep.subr.mxu0 %v466
        %1319 = vmatpush1.msra.mxu0 %v465
        %1320 = vmatprep.subr.mxu0 %v482
        %1321 = vmatpush1.msra.mxu0 %v481
        %1322 = vmatprep.subr.mxu0 %v498
        %1323 = vmatpush1.msra.mxu0 %v497
        %1324 = vmatprep.subr.mxu0 %v514
        %1325 = vmatpush1.msra.mxu0 %v513
        %1326 = vmatprep.subr.mxu0 %v530
        %1327 = vmatpush1.msra.mxu0 %v529
        %1328 = vmatprep.subr.mxu0 %v546
        %1329 = vmatpush1.msra.mxu0 %v545
        %1330 = vmatprep.subr.mxu0 %v562
        %1331 = vmatpush1.msra.mxu0 %v561
        %1332 = vmatprep.subr.mxu0 %v578
        %1333 = vmatpush1.msra.mxu0 %v577
        %1334 = vmatprep.subr.mxu0 %v594
        %1335 = vmatpush1.msra.mxu0 %v593
        %1336 = vmatprep.subr.mxu0 %v610
        %1337 = vmatpush1.msra.mxu0 %v609
        %1338 = vmatprep.subr.mxu0 %v626
        %1339 = vmatpush1.msra.mxu0 %v625
        %1340 = vmatprep.subr.mxu0 %v642
        %1341 = vmatpush1.msra.mxu0 %v641
        %1342 = vmatprep.subr.mxu0 %v658
        %1343 = vmatpush1.msra.mxu0 %v657
        %1344 = vmatprep.subr.mxu0 %v674
        %1345 = vmatpush1.msra.mxu0 %v673
        %1346 = vmatprep.subr.mxu0 %v690
        %1347 = vmatpush1.msra.mxu0 %v689
        %1348 = vmatprep.subr.mxu0 %v706
        %1349 = vmatpush1.msra.mxu0 %v705
        %1350 = vmatprep.subr.mxu0 %v722
        %1351 = vmatpush1.msra.mxu0 %v721
        %1352 = vmatprep.subr.mxu0 %v738
        %1353 = vmatpush1.msra.mxu0 %v737
        %1354 = vmatprep.subr.mxu0 %v754
        %1355 = vmatpush1.msra.mxu0 %v753
        %1356 = vmatprep.subr.mxu0 %v770
        %1357 = vmatpush1.msra.mxu0 %v769
        %1358 = vmatprep.subr.mxu0 %v786
        %1359 = vmatpush1.msra.mxu0 %v785
        %1360 = vmatprep.subr.mxu0 %v802
        %1361 = vmatpush1.msra.mxu0 %v801
        %1362 = vmatprep.subr.mxu0 %v818
        %1363 = vmatpush1.msra.mxu0 %v817
        %1364 = vmatprep.subr.mxu0 %v834
        %1365 = vmatpush1.msra.mxu0 %v833
        %1366 = vmatprep.subr.mxu0 %v850
        %1367 = vmatpush1.msra.mxu0 %v849
        %1368 = vmatprep.subr.mxu0 %v866
        %1369 = vmatpush1.msra.mxu0 %v865
        %1370 = vmatprep.mubr.f32.mxu0 %v877
        %1371 = vmatmul.mubr.f32.gmra.mrb[0].mxu0 %v873
        %v1372 = vpop.f32.mrb[0].mxu0
        %v1373 = vadd.f32 0.0, %v1372
        %v1374 = vpop.f32.mrb[0].mxu0
        %v1375 = vadd.f32 0.0, %v1374
        %1376 = vdwg.mxu0
        %1377 = vmatprep.subr.mxu0 %v372
        %1378 = vmatpush1.msra.mxu0 %v371
        %1379 = vmatprep.subr.mxu0 %v388
        %1380 = vmatpush1.msra.mxu0 %v387
        %1381 = vmatprep.subr.mxu0 %v404
        %1382 = vmatpush1.msra.mxu0 %v403
        %1383 = vmatprep.subr.mxu0 %v420
        %1384 = vmatpush1.msra.mxu0 %v419
        %1385 = vmatprep.subr.mxu0 %v436
        %1386 = vmatpush1.msra.mxu0 %v435
        %1387 = vmatprep.subr.mxu0 %v452
        %1388 = vmatpush1.msra.mxu0 %v451
        %1389 = vmatprep.subr.mxu0 %v468
        %1390 = vmatpush1.msra.mxu0 %v467
        %1391 = vmatprep.subr.mxu0 %v484
        %1392 = vmatpush1.msra.mxu0 %v483
        %1393 = vmatprep.subr.mxu0 %v500
        %1394 = vmatpush1.msra.mxu0 %v499
        %1395 = vmatprep.subr.mxu0 %v516
        %1396 = vmatpush1.msra.mxu0 %v515
        %1397 = vmatprep.subr.mxu0 %v532
        %1398 = vmatpush1.msra.mxu0 %v531
        %1399 = vmatprep.subr.mxu0 %v548
        %1400 = vmatpush1.msra.mxu0 %v547
        %1401 = vmatprep.subr.mxu0 %v564
        %1402 = vmatpush1.msra.mxu0 %v563
        %1403 = vmatprep.subr.mxu0 %v580
        %1404 = vmatpush1.msra.mxu0 %v579
        %1405 = vmatprep.subr.mxu0 %v596
        %1406 = vmatpush1.msra.mxu0 %v595
        %1407 = vmatprep.subr.mxu0 %v612
        %1408 = vmatpush1.msra.mxu0 %v611
        %1409 = vmatprep.subr.mxu0 %v628
        %1410 = vmatpush1.msra.mxu0 %v627
        %1411 = vmatprep.subr.mxu0 %v644
        %1412 = vmatpush1.msra.mxu0 %v643
        %1413 = vmatprep.subr.mxu0 %v660
        %1414 = vmatpush1.msra.mxu0 %v659
        %1415 = vmatprep.subr.mxu0 %v676
        %1416 = vmatpush1.msra.mxu0 %v675
        %1417 = vmatprep.subr.mxu0 %v692
        %1418 = vmatpush1.msra.mxu0 %v691
        %1419 = vmatprep.subr.mxu0 %v708
        %1420 = vmatpush1.msra.mxu0 %v707
        %1421 = vmatprep.subr.mxu0 %v724
        %1422 = vmatpush1.msra.mxu0 %v723
        %1423 = vmatprep.subr.mxu0 %v740
        %1424 = vmatpush1.msra.mxu0 %v739
        %1425 = vmatprep.subr.mxu0 %v756
        %1426 = vmatpush1.msra.mxu0 %v755
        %1427 = vmatprep.subr.mxu0 %v772
        %1428 = vmatpush1.msra.mxu0 %v771
        %1429 = vmatprep.subr.mxu0 %v788
        %1430 = vmatpush1.msra.mxu0 %v787
        %1431 = vmatprep.subr.mxu0 %v804
        %1432 = vmatpush1.msra.mxu0 %v803
        %1433 = vmatprep.subr.mxu0 %v820
        %1434 = vmatpush1.msra.mxu0 %v819
        %1435 = vmatprep.subr.mxu0 %v836
        %1436 = vmatpush1.msra.mxu0 %v835
        %1437 = vmatprep.subr.mxu0 %v852
        %1438 = vmatpush1.msra.mxu0 %v851
        %1439 = vmatprep.subr.mxu0 %v868
        %1440 = vmatpush1.msra.mxu0 %v867
        %1441 = vmatprep.mubr.f32.mxu0 %v877
        %1442 = vmatmul.mubr.f32.gmra.mrb[0].mxu0 %v873
        %v1443 = vpop.f32.mrb[0].mxu0
        %v1444 = vadd.f32 0.0, %v1443
        %v1445 = vpop.f32.mrb[0].mxu0
        %v1446 = vadd.f32 0.0, %v1445
        %1447 = vdwg.mxu0
        %v1448 = vld [vmem:[#allocation6] sm:$0x3]
        %v1449 = vlaneseq
        %vm1450 = vcmp.ge.s32.totalorder %v1449, 0
        %vm1451 = vcmp.lt.s32.totalorder %v1449, 256
        %vm1452 = vmand %vm1450, %vm1451
        %s1453 = scalar_lea.vmem [#allocation2], 16
        %1454 = vst.msk [vmem:[%s1453] ss:$8 sm:$0x3] %vm1452, 0.0
        %1455 = vst.msk [vmem:[%s1453] ss:$8 sm:$0x0] %vm1452, 0.0
        %v1457 = vlaneseq
        %v1458 = vshrl.u32 %v1457, 7
        %v1459 = vsub.s32 0, %v1458
        %v1460 = vrot.slane %v1448, %v1459
        %v1461 = vlaneseq
        %v1462 = vshrl.u32 %v1461, 7
        %v1463 = vsub.s32 1, %v1462
        %v1464 = vrot.slane %v1448, %v1463
        %v1467 = vadd.f32 %v947, %v1460
        %v1468 = vadd.f32 %v949, %v1464
        %v1469 = vmax.f32 %v1467, 0.0
        %v1470 = vmax.f32 %v1468, 0.0
        %v1473 = vcombine.low %v1469, %v1470
        %v1475 = vunpack.c.l.s4 1966171168
        %v1476 = vunpack.c.0.s8 %v1475
        %v1477 = vlaneseq
        %v1478 = vshrl.u32 %v1477, 7
        %v1479 = vsub.s32 %v1476, %v1478
        %v1480 = vrot.slane %v1473, %v1479
        %v1482 = vunpack.c.l.s4 1966171168
        %v1483 = vunpack.c.0.s8 %v1482
        %v1484 = vlaneseq
        %v1485 = vshrl.u32 %v1484, 7
        %v1486 = vsub.s32 %v1483, %v1485
        %v1487 = vrot.slane %v1480, %v1486
        %1489 = vst.msk [vmem:[#allocation2] ss:$8 sm:$0x3] %vm1452, %v1487
        %1490 = vst.msk [vmem:[#allocation2] ss:$8 sm:$0x0] %vm1452, %v1487
        %v1491 = vadd.f32 %v1018, %v1460
        %v1492 = vadd.f32 %v1020, %v1464
        %v1493 = vmax.f32 %v1491, 0.0
        %v1494 = vmax.f32 %v1492, 0.0
        %v1497 = vcombine.low %v1493, %v1494
        %v1499 = vunpack.c.l.s4 1966171168
        %v1500 = vunpack.c.0.s8 %v1499
        %v1501 = vlaneseq
        %v1502 = vshrl.u32 %v1501, 7
        %v1503 = vsub.s32 %v1500, %v1502
        %v1504 = vrot.slane %v1497, %v1503
        %v1506 = vunpack.c.l.s4 1966171168
        %v1507 = vunpack.c.0.s8 %v1506
        %v1508 = vlaneseq
        %v1509 = vshrl.u32 %v1508, 7
        %v1510 = vsub.s32 %v1507, %v1509
        %v1511 = vrot.slane %v1504, %v1510
        %s1513 = scalar_lea.vmem [#allocation2], 1
        %1514 = vst.msk [vmem:[%s1513] ss:$8 sm:$0x3] %vm1452, %v1511
        %1515 = vst.msk [vmem:[%s1513] ss:$8 sm:$0x0] %vm1452, %v1511
        %v1516 = vadd.f32 %v1089, %v1460
        %v1517 = vadd.f32 %v1091, %v1464
        %v1518 = vmax.f32 %v1516, 0.0
        %v1519 = vmax.f32 %v1517, 0.0
        %v1522 = vcombine.low %v1518, %v1519
        %v1524 = vunpack.c.l.s4 1966171168
        %v1525 = vunpack.c.0.s8 %v1524
        %v1526 = vlaneseq
        %v1527 = vshrl.u32 %v1526, 7
        %v1528 = vsub.s32 %v1525, %v1527
        %v1529 = vrot.slane %v1522, %v1528
        %v1531 = vunpack.c.l.s4 1966171168
        %v1532 = vunpack.c.0.s8 %v1531
        %v1533 = vlaneseq
        %v1534 = vshrl.u32 %v1533, 7
        %v1535 = vsub.s32 %v1532, %v1534
        %v1536 = vrot.slane %v1529, %v1535
        %s1538 = scalar_lea.vmem [#allocation2], 2
        %1539 = vst.msk [vmem:[%s1538] ss:$8 sm:$0x3] %vm1452, %v1536
        %1540 = vst.msk [vmem:[%s1538] ss:$8 sm:$0x0] %vm1452, %v1536
        %v1541 = vadd.f32 %v1160, %v1460
        %v1542 = vadd.f32 %v1162, %v1464
        %v1543 = vmax.f32 %v1541, 0.0
        %v1544 = vmax.f32 %v1542, 0.0
        %v1547 = vcombine.low %v1543, %v1544
        %v1549 = vunpack.c.l.s4 1966171168
        %v1550 = vunpack.c.0.s8 %v1549
        %v1551 = vlaneseq
        %v1552 = vshrl.u32 %v1551, 7
        %v1553 = vsub.s32 %v1550, %v1552
        %v1554 = vrot.slane %v1547, %v1553
        %v1556 = vunpack.c.l.s4 1966171168
        %v1557 = vunpack.c.0.s8 %v1556
        %v1558 = vlaneseq
        %v1559 = vshrl.u32 %v1558, 7
        %v1560 = vsub.s32 %v1557, %v1559
        %v1561 = vrot.slane %v1554, %v1560
        %s1563 = scalar_lea.vmem [#allocation2], 3
        %1564 = vst.msk [vmem:[%s1563] ss:$8 sm:$0x3] %vm1452, %v1561
        %1565 = vst.msk [vmem:[%s1563] ss:$8 sm:$0x0] %vm1452, %v1561
        %v1566 = vadd.f32 %v1231, %v1460
        %v1567 = vadd.f32 %v1233, %v1464
        %v1568 = vmax.f32 %v1566, 0.0
        %v1569 = vmax.f32 %v1567, 0.0
        %v1572 = vcombine.low %v1568, %v1569
        %v1574 = vunpack.c.l.s4 1966171168
        %v1575 = vunpack.c.0.s8 %v1574
        %v1576 = vlaneseq
        %v1577 = vshrl.u32 %v1576, 7
        %v1578 = vsub.s32 %v1575, %v1577
        %v1579 = vrot.slane %v1572, %v1578
        %v1581 = vunpack.c.l.s4 1966171168
        %v1582 = vunpack.c.0.s8 %v1581
        %v1583 = vlaneseq
        %v1584 = vshrl.u32 %v1583, 7
        %v1585 = vsub.s32 %v1582, %v1584
        %v1586 = vrot.slane %v1579, %v1585
        %s1588 = scalar_lea.vmem [#allocation2], 4
        %1589 = vst.msk [vmem:[%s1588] ss:$8 sm:$0x3] %vm1452, %v1586
        %1590 = vst.msk [vmem:[%s1588] ss:$8 sm:$0x0] %vm1452, %v1586
        %v1591 = vadd.f32 %v1302, %v1460
        %v1592 = vadd.f32 %v1304, %v1464
        %v1593 = vmax.f32 %v1591, 0.0
        %v1594 = vmax.f32 %v1592, 0.0
        %v1597 = vcombine.low %v1593, %v1594
        %v1599 = vunpack.c.l.s4 1966171168
        %v1600 = vunpack.c.0.s8 %v1599
        %v1601 = vlaneseq
        %v1602 = vshrl.u32 %v1601, 7
        %v1603 = vsub.s32 %v1600, %v1602
        %v1604 = vrot.slane %v1597, %v1603
        %v1606 = vunpack.c.l.s4 1966171168
        %v1607 = vunpack.c.0.s8 %v1606
        %v1608 = vlaneseq
        %v1609 = vshrl.u32 %v1608, 7
        %v1610 = vsub.s32 %v1607, %v1609
        %v1611 = vrot.slane %v1604, %v1610
        %s1613 = scalar_lea.vmem [#allocation2], 5
        %1614 = vst.msk [vmem:[%s1613] ss:$8 sm:$0x3] %vm1452, %v1611
        %1615 = vst.msk [vmem:[%s1613] ss:$8 sm:$0x0] %vm1452, %v1611
        %v1616 = vadd.f32 %v1373, %v1460
        %v1617 = vadd.f32 %v1375, %v1464
        %v1618 = vmax.f32 %v1616, 0.0
        %v1619 = vmax.f32 %v1617, 0.0
        %v1622 = vcombine.low %v1618, %v1619
        %v1624 = vunpack.c.l.s4 1966171168
        %v1625 = vunpack.c.0.s8 %v1624
        %v1626 = vlaneseq
        %v1627 = vshrl.u32 %v1626, 7
        %v1628 = vsub.s32 %v1625, %v1627
        %v1629 = vrot.slane %v1622, %v1628
        %v1631 = vunpack.c.l.s4 1966171168
        %v1632 = vunpack.c.0.s8 %v1631
        %v1633 = vlaneseq
        %v1634 = vshrl.u32 %v1633, 7
        %v1635 = vsub.s32 %v1632, %v1634
        %v1636 = vrot.slane %v1629, %v1635
        %s1638 = scalar_lea.vmem [#allocation2], 6
        %1639 = vst.msk [vmem:[%s1638] ss:$8 sm:$0x3] %vm1452, %v1636
        %1640 = vst.msk [vmem:[%s1638] ss:$8 sm:$0x0] %vm1452, %v1636
        %v1641 = vadd.f32 %v1444, %v1460
        %v1642 = vadd.f32 %v1446, %v1464
        %v1643 = vmax.f32 %v1641, 0.0
        %v1644 = vmax.f32 %v1642, 0.0
        %v1647 = vcombine.low %v1643, %v1644
        %v1649 = vunpack.c.l.s4 1966171168
        %v1650 = vunpack.c.0.s8 %v1649
        %v1651 = vlaneseq
        %v1652 = vshrl.u32 %v1651, 7
        %v1653 = vsub.s32 %v1650, %v1652
        %v1654 = vrot.slane %v1647, %v1653
        %v1656 = vunpack.c.l.s4 1966171168
        %v1657 = vunpack.c.0.s8 %v1656
        %v1658 = vlaneseq
        %v1659 = vshrl.u32 %v1658, 7
        %v1660 = vsub.s32 %v1657, %v1659
        %v1661 = vrot.slane %v1654, %v1660
        %s1663 = scalar_lea.vmem [#allocation2], 7
        %1664 = vst.msk [vmem:[%s1663] ss:$8 sm:$0x3] %vm1452, %v1661
        %1665 = vst.msk [vmem:[%s1663] ss:$8 sm:$0x0] %vm1452, %v1661
        %v1666 = vld [vmem:[#allocation2] sm:$0xff]
        %v1667 = vld [vmem:[#allocation2 + $0x8] sm:$0xff]
        %v1668 = vld [vmem:[#allocation2] sm:$0xfe]
        %v1669 = vld [vmem:[#allocation2 + $0x8] sm:$0xfe]
        %v1670 = vld [vmem:[#allocation2 + $0x10] sm:$0x1]
        %v1671 = vld [vmem:[#allocation2 + $0x18] sm:$0x1]
        %v1672 = vld [vmem:[#allocation8] sm:$0xff]
        %v1673 = vld [vmem:[#allocation8 + $0x8] sm:$0xff]
        %v1674 = vld [vmem:[#allocation8 + $0x10] sm:$0xff]
        %v1675 = vld [vmem:[#allocation8 + $0x18] sm:$0xff]
        %v1676 = vld [vmem:[#allocation8 + $0x20] sm:$0xff]
        %v1677 = vld [vmem:[#allocation8 + $0x28] sm:$0xff]
        %v1678 = vld [vmem:[#allocation8 + $0x30] sm:$0xff]
        %v1679 = vld [vmem:[#allocation8 + $0x38] sm:$0xff]
        %v1680 = vld [vmem:[#allocation8 + $0x40] sm:$0xff]
        %v1681 = vld [vmem:[#allocation8 + $0x48] sm:$0xff]
        %v1682 = vld [vmem:[#allocation8 + $0x50] sm:$0xff]
        %v1683 = vld [vmem:[#allocation8 + $0x58] sm:$0xff]
        %v1684 = vld [vmem:[#allocation8 + $0x60] sm:$0xff]
        %v1685 = vld [vmem:[#allocation8 + $0x68] sm:$0xff]
        %v1686 = vld [vmem:[#allocation8 + $0x70] sm:$0xff]
        %v1687 = vld [vmem:[#allocation8 + $0x78] sm:$0xff]
        %v1688 = vld [vmem:[#allocation8 + $0x80] sm:$0xff]
        %v1689 = vld [vmem:[#allocation8 + $0x88] sm:$0xff]
        %v1690 = vld [vmem:[#allocation8 + $0x90] sm:$0xff]
        %v1691 = vld [vmem:[#allocation8 + $0x98] sm:$0xff]
        %v1692 = vld [vmem:[#allocation8 + $0xa0] sm:$0xff]
        %v1693 = vld [vmem:[#allocation8 + $0xa8] sm:$0xff]
        %v1694 = vld [vmem:[#allocation8 + $0xb0] sm:$0xff]
        %v1695 = vld [vmem:[#allocation8 + $0xb8] sm:$0xff]
        %v1696 = vld [vmem:[#allocation8 + $0xc0] sm:$0xff]
        %v1697 = vld [vmem:[#allocation8 + $0xc8] sm:$0xff]
        %v1698 = vld [vmem:[#allocation8 + $0xd0] sm:$0xff]
        %v1699 = vld [vmem:[#allocation8 + $0xd8] sm:$0xff]
        %v1700 = vld [vmem:[#allocation8 + $0xe0] sm:$0xff]
        %v1701 = vld [vmem:[#allocation8 + $0xe8] sm:$0xff]
        %v1702 = vld [vmem:[#allocation8 + $0xf0] sm:$0xff]
        %v1703 = vld [vmem:[#allocation8 + $0xf8] sm:$0xff]
        %v1704 = vld [vmem:[#allocation8 + $0x100] sm:$0xff]
        %v1705 = vld [vmem:[#allocation8 + $0x108] sm:$0xff]
        %v1706 = vld [vmem:[#allocation8 + $0x110] sm:$0xff]
        %v1707 = vld [vmem:[#allocation8 + $0x118] sm:$0xff]
        %v1708 = vld [vmem:[#allocation8 + $0x120] sm:$0xff]
        %v1709 = vld [vmem:[#allocation8 + $0x128] sm:$0xff]
        %v1710 = vld [vmem:[#allocation8 + $0x130] sm:$0xff]
        %v1711 = vld [vmem:[#allocation8 + $0x138] sm:$0xff]
        %v1712 = vld [vmem:[#allocation8 + $0x140] sm:$0xff]
        %v1713 = vld [vmem:[#allocation8 + $0x148] sm:$0xff]
        %v1714 = vld [vmem:[#allocation8 + $0x150] sm:$0xff]
        %v1715 = vld [vmem:[#allocation8 + $0x158] sm:$0xff]
        %v1716 = vld [vmem:[#allocation8 + $0x160] sm:$0xff]
        %v1717 = vld [vmem:[#allocation8 + $0x168] sm:$0xff]
        %v1718 = vld [vmem:[#allocation8 + $0x170] sm:$0xff]
        %v1719 = vld [vmem:[#allocation8 + $0x178] sm:$0xff]
        %v1720 = vld [vmem:[#allocation8 + $0x180] sm:$0xff]
        %v1721 = vld [vmem:[#allocation8 + $0x188] sm:$0xff]
        %v1722 = vld [vmem:[#allocation8 + $0x190] sm:$0xff]
        %v1723 = vld [vmem:[#allocation8 + $0x198] sm:$0xff]
        %v1724 = vld [vmem:[#allocation8 + $0x1a0] sm:$0xff]
        %v1725 = vld [vmem:[#allocation8 + $0x1a8] sm:$0xff]
        %v1726 = vld [vmem:[#allocation8 + $0x1b0] sm:$0xff]
        %v1727 = vld [vmem:[#allocation8 + $0x1b8] sm:$0xff]
        %v1728 = vld [vmem:[#allocation8 + $0x1c0] sm:$0xff]
        %v1729 = vld [vmem:[#allocation8 + $0x1c8] sm:$0xff]
        %v1730 = vld [vmem:[#allocation8 + $0x1d0] sm:$0xff]
        %v1731 = vld [vmem:[#allocation8 + $0x1d8] sm:$0xff]
        %v1732 = vld [vmem:[#allocation8 + $0x1e0] sm:$0xff]
        %v1733 = vld [vmem:[#allocation8 + $0x1e8] sm:$0xff]
        %v1734 = vld [vmem:[#allocation8 + $0x1f0] sm:$0xff]
        %v1735 = vld [vmem:[#allocation8 + $0x1f8] sm:$0xff]
        %v1736 = vld [vmem:[#allocation8 + $0x200] sm:$0xff]
        %v1737 = vld [vmem:[#allocation8 + $0x208] sm:$0xff]
        %v1738 = vld [vmem:[#allocation8 + $0x210] sm:$0xff]
        %v1739 = vld [vmem:[#allocation8 + $0x218] sm:$0xff]
        %v1740 = vld [vmem:[#allocation8 + $0x220] sm:$0xff]
        %v1741 = vld [vmem:[#allocation8 + $0x228] sm:$0xff]
        %v1742 = vld [vmem:[#allocation8 + $0x230] sm:$0xff]
        %v1743 = vld [vmem:[#allocation8 + $0x238] sm:$0xff]
        %v1744 = vld [vmem:[#allocation8 + $0x240] sm:$0xff]
        %v1745 = vld [vmem:[#allocation8 + $0x248] sm:$0xff]
        %v1746 = vld [vmem:[#allocation8 + $0x250] sm:$0xff]
        %v1747 = vld [vmem:[#allocation8 + $0x258] sm:$0xff]
        %v1748 = vld [vmem:[#allocation8 + $0x260] sm:$0xff]
        %v1749 = vld [vmem:[#allocation8 + $0x268] sm:$0xff]
        %v1750 = vld [vmem:[#allocation8 + $0x270] sm:$0xff]
        %v1751 = vld [vmem:[#allocation8 + $0x278] sm:$0xff]
        %v1752 = vld [vmem:[#allocation8 + $0x280] sm:$0xff]
        %v1753 = vld [vmem:[#allocation8 + $0x288] sm:$0xff]
        %v1754 = vld [vmem:[#allocation8 + $0x290] sm:$0xff]
        %v1755 = vld [vmem:[#allocation8 + $0x298] sm:$0xff]
        %v1756 = vld [vmem:[#allocation8 + $0x2a0] sm:$0xff]
        %v1757 = vld [vmem:[#allocation8 + $0x2a8] sm:$0xff]
        %v1758 = vld [vmem:[#allocation8 + $0x2b0] sm:$0xff]
        %v1759 = vld [vmem:[#allocation8 + $0x2b8] sm:$0xff]
        %v1760 = vld [vmem:[#allocation8 + $0x2c0] sm:$0xff]
        %v1761 = vld [vmem:[#allocation8 + $0x2c8] sm:$0xff]
        %v1762 = vld [vmem:[#allocation8 + $0x2d0] sm:$0xff]
        %v1763 = vld [vmem:[#allocation8 + $0x2d8] sm:$0xff]
        %v1764 = vld [vmem:[#allocation8 + $0x2e0] sm:$0xff]
        %v1765 = vld [vmem:[#allocation8 + $0x2e8] sm:$0xff]
        %v1766 = vld [vmem:[#allocation8 + $0x2f0] sm:$0xff]
        %v1767 = vld [vmem:[#allocation8 + $0x2f8] sm:$0xff]
        %v1768 = vld [vmem:[#allocation8 + $0x300] sm:$0xff]
        %v1769 = vld [vmem:[#allocation8 + $0x308] sm:$0xff]
        %v1770 = vld [vmem:[#allocation8 + $0x310] sm:$0xff]
        %v1771 = vld [vmem:[#allocation8 + $0x318] sm:$0xff]
        %v1772 = vld [vmem:[#allocation8 + $0x320] sm:$0xff]
        %v1773 = vld [vmem:[#allocation8 + $0x328] sm:$0xff]
        %v1774 = vld [vmem:[#allocation8 + $0x330] sm:$0xff]
        %v1775 = vld [vmem:[#allocation8 + $0x338] sm:$0xff]
        %v1776 = vld [vmem:[#allocation8 + $0x340] sm:$0xff]
        %v1777 = vld [vmem:[#allocation8 + $0x348] sm:$0xff]
        %v1778 = vld [vmem:[#allocation8 + $0x350] sm:$0xff]
        %v1779 = vld [vmem:[#allocation8 + $0x358] sm:$0xff]
        %v1780 = vld [vmem:[#allocation8 + $0x360] sm:$0xff]
        %v1781 = vld [vmem:[#allocation8 + $0x368] sm:$0xff]
        %v1782 = vld [vmem:[#allocation8 + $0x370] sm:$0xff]
        %v1783 = vld [vmem:[#allocation8 + $0x378] sm:$0xff]
        %v1784 = vld [vmem:[#allocation8 + $0x380] sm:$0xff]
        %v1785 = vld [vmem:[#allocation8 + $0x388] sm:$0xff]
        %v1786 = vld [vmem:[#allocation8 + $0x390] sm:$0xff]
        %v1787 = vld [vmem:[#allocation8 + $0x398] sm:$0xff]
        %v1788 = vld [vmem:[#allocation8 + $0x3a0] sm:$0xff]
        %v1789 = vld [vmem:[#allocation8 + $0x3a8] sm:$0xff]
        %v1790 = vld [vmem:[#allocation8 + $0x3b0] sm:$0xff]
        %v1791 = vld [vmem:[#allocation8 + $0x3b8] sm:$0xff]
        %v1792 = vld [vmem:[#allocation8 + $0x3c0] sm:$0xff]
        %v1793 = vld [vmem:[#allocation8 + $0x3c8] sm:$0xff]
        %v1794 = vld [vmem:[#allocation8 + $0x3d0] sm:$0xff]
        %v1795 = vld [vmem:[#allocation8 + $0x3d8] sm:$0xff]
        %v1796 = vld [vmem:[#allocation8 + $0x3e0] sm:$0xff]
        %v1797 = vld [vmem:[#allocation8 + $0x3e8] sm:$0xff]
        %v1798 = vld [vmem:[#allocation8 + $0x3f0] sm:$0xff]
        %v1799 = vld [vmem:[#allocation8 + $0x3f8] sm:$0xff]
        %v1800 = vld [vmem:[#allocation8 + $0x400] sm:$0xff]
        %v1801 = vld [vmem:[#allocation8 + $0x408] sm:$0xff]
        %v1802 = vld [vmem:[#allocation8 + $0x410] sm:$0xff]
        %v1803 = vld [vmem:[#allocation8 + $0x418] sm:$0xff]
        %v1804 = vld [vmem:[#allocation8 + $0x420] sm:$0xff]
        %v1805 = vld [vmem:[#allocation8 + $0x428] sm:$0xff]
        %v1806 = vld [vmem:[#allocation8 + $0x430] sm:$0xff]
        %v1807 = vld [vmem:[#allocation8 + $0x438] sm:$0xff]
        %v1808 = vld [vmem:[#allocation8 + $0x440] sm:$0xff]
        %v1809 = vld [vmem:[#allocation8 + $0x448] sm:$0xff]
        %v1810 = vld [vmem:[#allocation8 + $0x450] sm:$0xff]
        %v1811 = vld [vmem:[#allocation8 + $0x458] sm:$0xff]
        %v1812 = vld [vmem:[#allocation8 + $0x460] sm:$0xff]
        %v1813 = vld [vmem:[#allocation8 + $0x468] sm:$0xff]
        %v1814 = vld [vmem:[#allocation8 + $0x470] sm:$0xff]
        %v1815 = vld [vmem:[#allocation8 + $0x478] sm:$0xff]
        %v1816 = vld [vmem:[#allocation8 + $0x480] sm:$0xff]
        %v1817 = vld [vmem:[#allocation8 + $0x488] sm:$0xff]
        %v1818 = vld [vmem:[#allocation8 + $0x490] sm:$0xff]
        %v1819 = vld [vmem:[#allocation8 + $0x498] sm:$0xff]
        %v1820 = vld [vmem:[#allocation8 + $0x4a0] sm:$0xff]
        %v1821 = vld [vmem:[#allocation8 + $0x4a8] sm:$0xff]
        %v1822 = vld [vmem:[#allocation8 + $0x4b0] sm:$0xff]
        %v1823 = vld [vmem:[#allocation8 + $0x4b8] sm:$0xff]
        %v1824 = vld [vmem:[#allocation8 + $0x4c0] sm:$0xff]
        %v1825 = vld [vmem:[#allocation8 + $0x4c8] sm:$0xff]
        %v1826 = vld [vmem:[#allocation8 + $0x4d0] sm:$0xff]
        %v1827 = vld [vmem:[#allocation8 + $0x4d8] sm:$0xff]
        %v1828 = vld [vmem:[#allocation8 + $0x4e0] sm:$0xff]
        %v1829 = vld [vmem:[#allocation8 + $0x4e8] sm:$0xff]
        %v1830 = vld [vmem:[#allocation8 + $0x4f0] sm:$0xff]
        %v1831 = vld [vmem:[#allocation8 + $0x4f8] sm:$0xff]
        %v1832 = vld [vmem:[#allocation8 + $0x500] sm:$0xff]
        %v1833 = vld [vmem:[#allocation8 + $0x508] sm:$0xff]
        %v1834 = vld [vmem:[#allocation8 + $0x510] sm:$0xff]
        %v1835 = vld [vmem:[#allocation8 + $0x518] sm:$0xff]
        %v1836 = vld [vmem:[#allocation8 + $0x520] sm:$0xff]
        %v1837 = vld [vmem:[#allocation8 + $0x528] sm:$0xff]
        %v1838 = vld [vmem:[#allocation8 + $0x530] sm:$0xff]
        %v1839 = vld [vmem:[#allocation8 + $0x538] sm:$0xff]
        %v1840 = vld [vmem:[#allocation8 + $0x540] sm:$0xff]
        %v1841 = vld [vmem:[#allocation8 + $0x548] sm:$0xff]
        %v1842 = vld [vmem:[#allocation8 + $0x550] sm:$0xff]
        %v1843 = vld [vmem:[#allocation8 + $0x558] sm:$0xff]
        %v1844 = vld [vmem:[#allocation8 + $0x560] sm:$0xff]
        %v1845 = vld [vmem:[#allocation8 + $0x568] sm:$0xff]
        %v1846 = vld [vmem:[#allocation8 + $0x570] sm:$0xff]
        %v1847 = vld [vmem:[#allocation8 + $0x578] sm:$0xff]
        %v1848 = vld [vmem:[#allocation8 + $0x580] sm:$0xff]
        %v1849 = vld [vmem:[#allocation8 + $0x588] sm:$0xff]
        %v1850 = vld [vmem:[#allocation8 + $0x590] sm:$0xff]
        %v1851 = vld [vmem:[#allocation8 + $0x598] sm:$0xff]
        %v1852 = vld [vmem:[#allocation8 + $0x5a0] sm:$0xff]
        %v1853 = vld [vmem:[#allocation8 + $0x5a8] sm:$0xff]
        %v1854 = vld [vmem:[#allocation8 + $0x5b0] sm:$0xff]
        %v1855 = vld [vmem:[#allocation8 + $0x5b8] sm:$0xff]
        %v1856 = vld [vmem:[#allocation8 + $0x5c0] sm:$0xff]
        %v1857 = vld [vmem:[#allocation8 + $0x5c8] sm:$0xff]
        %v1858 = vld [vmem:[#allocation8 + $0x5d0] sm:$0xff]
        %v1859 = vld [vmem:[#allocation8 + $0x5d8] sm:$0xff]
        %v1860 = vld [vmem:[#allocation8 + $0x5e0] sm:$0xff]
        %v1861 = vld [vmem:[#allocation8 + $0x5e8] sm:$0xff]
        %v1862 = vld [vmem:[#allocation8 + $0x5f0] sm:$0xff]
        %v1863 = vld [vmem:[#allocation8 + $0x5f8] sm:$0xff]
        %v1864 = vld [vmem:[#allocation8 + $0x600] sm:$0xff]
        %v1865 = vld [vmem:[#allocation8 + $0x608] sm:$0xff]
        %v1866 = vld [vmem:[#allocation8 + $0x610] sm:$0xff]
        %v1867 = vld [vmem:[#allocation8 + $0x618] sm:$0xff]
        %v1868 = vld [vmem:[#allocation8 + $0x620] sm:$0xff]
        %v1869 = vld [vmem:[#allocation8 + $0x628] sm:$0xff]
        %v1870 = vld [vmem:[#allocation8 + $0x630] sm:$0xff]
        %v1871 = vld [vmem:[#allocation8 + $0x638] sm:$0xff]
        %v1872 = vld [vmem:[#allocation8 + $0x640] sm:$0xff]
        %v1873 = vld [vmem:[#allocation8 + $0x648] sm:$0xff]
        %v1874 = vld [vmem:[#allocation8 + $0x650] sm:$0xff]
        %v1875 = vld [vmem:[#allocation8 + $0x658] sm:$0xff]
        %v1876 = vld [vmem:[#allocation8 + $0x660] sm:$0xff]
        %v1877 = vld [vmem:[#allocation8 + $0x668] sm:$0xff]
        %v1878 = vld [vmem:[#allocation8 + $0x670] sm:$0xff]
        %v1879 = vld [vmem:[#allocation8 + $0x678] sm:$0xff]
        %v1880 = vld [vmem:[#allocation8 + $0x680] sm:$0xff]
        %v1881 = vld [vmem:[#allocation8 + $0x688] sm:$0xff]
        %v1882 = vld [vmem:[#allocation8 + $0x690] sm:$0xff]
        %v1883 = vld [vmem:[#allocation8 + $0x698] sm:$0xff]
        %v1884 = vld [vmem:[#allocation8 + $0x6a0] sm:$0xff]
        %v1885 = vld [vmem:[#allocation8 + $0x6a8] sm:$0xff]
        %v1886 = vld [vmem:[#allocation8 + $0x6b0] sm:$0xff]
        %v1887 = vld [vmem:[#allocation8 + $0x6b8] sm:$0xff]
        %v1888 = vld [vmem:[#allocation8 + $0x6c0] sm:$0xff]
        %v1889 = vld [vmem:[#allocation8 + $0x6c8] sm:$0xff]
        %v1890 = vld [vmem:[#allocation8 + $0x6d0] sm:$0xff]
        %v1891 = vld [vmem:[#allocation8 + $0x6d8] sm:$0xff]
        %v1892 = vld [vmem:[#allocation8 + $0x6e0] sm:$0xff]
        %v1893 = vld [vmem:[#allocation8 + $0x6e8] sm:$0xff]
        %v1894 = vld [vmem:[#allocation8 + $0x6f0] sm:$0xff]
        %v1895 = vld [vmem:[#allocation8 + $0x6f8] sm:$0xff]
        %v1896 = vld [vmem:[#allocation8 + $0x700] sm:$0xff]
        %v1897 = vld [vmem:[#allocation8 + $0x708] sm:$0xff]
        %v1898 = vld [vmem:[#allocation8 + $0x710] sm:$0xff]
        %v1899 = vld [vmem:[#allocation8 + $0x718] sm:$0xff]
        %v1900 = vld [vmem:[#allocation8 + $0x720] sm:$0xff]
        %v1901 = vld [vmem:[#allocation8 + $0x728] sm:$0xff]
        %v1902 = vld [vmem:[#allocation8 + $0x730] sm:$0xff]
        %v1903 = vld [vmem:[#allocation8 + $0x738] sm:$0xff]
        %v1904 = vld [vmem:[#allocation8 + $0x740] sm:$0xff]
        %v1905 = vld [vmem:[#allocation8 + $0x748] sm:$0xff]
        %v1906 = vld [vmem:[#allocation8 + $0x750] sm:$0xff]
        %v1907 = vld [vmem:[#allocation8 + $0x758] sm:$0xff]
        %v1908 = vld [vmem:[#allocation8 + $0x760] sm:$0xff]
        %v1909 = vld [vmem:[#allocation8 + $0x768] sm:$0xff]
        %v1910 = vld [vmem:[#allocation8 + $0x770] sm:$0xff]
        %v1911 = vld [vmem:[#allocation8 + $0x778] sm:$0xff]
        %v1912 = vld [vmem:[#allocation8 + $0x780] sm:$0xff]
        %v1913 = vld [vmem:[#allocation8 + $0x788] sm:$0xff]
        %v1914 = vld [vmem:[#allocation8 + $0x790] sm:$0xff]
        %v1915 = vld [vmem:[#allocation8 + $0x798] sm:$0xff]
        %v1916 = vld [vmem:[#allocation8 + $0x7a0] sm:$0xff]
        %v1917 = vld [vmem:[#allocation8 + $0x7a8] sm:$0xff]
        %v1918 = vld [vmem:[#allocation8 + $0x7b0] sm:$0xff]
        %v1919 = vld [vmem:[#allocation8 + $0x7b8] sm:$0xff]
        %v1920 = vld [vmem:[#allocation8 + $0x7c0] sm:$0xff]
        %v1921 = vld [vmem:[#allocation8 + $0x7c8] sm:$0xff]
        %v1922 = vld [vmem:[#allocation8 + $0x7d0] sm:$0xff]
        %v1923 = vld [vmem:[#allocation8 + $0x7d8] sm:$0xff]
        %v1924 = vld [vmem:[#allocation8 + $0x7e0] sm:$0xff]
        %v1925 = vld [vmem:[#allocation8 + $0x7e8] sm:$0xff]
        %v1926 = vld [vmem:[#allocation8 + $0x7f0] sm:$0xff]
        %v1927 = vld [vmem:[#allocation8 + $0x7f8] sm:$0xff]
        %vm1932 = vcmask 1046528
        %v1933 = vrot.slane %v1668, 1
        %v1934 = vrot.slane %v1670, 1
        %v1935 = vsel %vm1932, %v1933, %v1934
        %v1936 = vrot.slane %v1669, 1
        %v1937 = vrot.slane %v1671, 1
        %v1938 = vsel %vm1932, %v1936, %v1937
        %1941 = vmatprep.subr.mxu0 %v1801
        %1942 = vmatpush1.msra.mxu0 %v1800
        %1943 = vmatprep.subr.mxu0 %v1805
        %1944 = vmatpush1.msra.mxu0 %v1804
        %1945 = vmatprep.subr.mxu0 %v1809
        %1946 = vmatpush1.msra.mxu0 %v1808
        %1947 = vmatprep.subr.mxu0 %v1813
        %1948 = vmatpush1.msra.mxu0 %v1812
        %1949 = vmatprep.subr.mxu0 %v1817
        %1950 = vmatpush1.msra.mxu0 %v1816
        %1951 = vmatprep.subr.mxu0 %v1821
        %1952 = vmatpush1.msra.mxu0 %v1820
        %1953 = vmatprep.subr.mxu0 %v1825
        %1954 = vmatpush1.msra.mxu0 %v1824
        %1955 = vmatprep.subr.mxu0 %v1829
        %1956 = vmatpush1.msra.mxu0 %v1828
        %1957 = vmatprep.subr.mxu0 %v1833
        %1958 = vmatpush1.msra.mxu0 %v1832
        %1959 = vmatprep.subr.mxu0 %v1837
        %1960 = vmatpush1.msra.mxu0 %v1836
        %1961 = vmatprep.subr.mxu0 %v1841
        %1962 = vmatpush1.msra.mxu0 %v1840
        %1963 = vmatprep.subr.mxu0 %v1845
        %1964 = vmatpush1.msra.mxu0 %v1844
        %1965 = vmatprep.subr.mxu0 %v1849
        %1966 = vmatpush1.msra.mxu0 %v1848
        %1967 = vmatprep.subr.mxu0 %v1853
        %1968 = vmatpush1.msra.mxu0 %v1852
        %1969 = vmatprep.subr.mxu0 %v1857
        %1970 = vmatpush1.msra.mxu0 %v1856
        %1971 = vmatprep.subr.mxu0 %v1861
        %1972 = vmatpush1.msra.mxu0 %v1860
        %1973 = vmatprep.subr.mxu0 %v1865
        %1974 = vmatpush1.msra.mxu0 %v1864
        %1975 = vmatprep.subr.mxu0 %v1869
        %1976 = vmatpush1.msra.mxu0 %v1868
        %1977 = vmatprep.subr.mxu0 %v1873
        %1978 = vmatpush1.msra.mxu0 %v1872
        %1979 = vmatprep.subr.mxu0 %v1877
        %1980 = vmatpush1.msra.mxu0 %v1876
        %1981 = vmatprep.subr.mxu0 %v1881
        %1982 = vmatpush1.msra.mxu0 %v1880
        %1983 = vmatprep.subr.mxu0 %v1885
        %1984 = vmatpush1.msra.mxu0 %v1884
        %1985 = vmatprep.subr.mxu0 %v1889
        %1986 = vmatpush1.msra.mxu0 %v1888
        %1987 = vmatprep.subr.mxu0 %v1893
        %1988 = vmatpush1.msra.mxu0 %v1892
        %1989 = vmatprep.subr.mxu0 %v1897
        %1990 = vmatpush1.msra.mxu0 %v1896
        %1991 = vmatprep.subr.mxu0 %v1901
        %1992 = vmatpush1.msra.mxu0 %v1900
        %1993 = vmatprep.subr.mxu0 %v1905
        %1994 = vmatpush1.msra.mxu0 %v1904
        %1995 = vmatprep.subr.mxu0 %v1909
        %1996 = vmatpush1.msra.mxu0 %v1908
        %1997 = vmatprep.subr.mxu0 %v1913
        %1998 = vmatpush1.msra.mxu0 %v1912
        %1999 = vmatprep.subr.mxu0 %v1917
        %2000 = vmatpush1.msra.mxu0 %v1916
        %2001 = vmatprep.subr.mxu0 %v1921
        %2002 = vmatpush1.msra.mxu0 %v1920
        %2003 = vmatprep.subr.mxu0 %v1925
        %2004 = vmatpush1.msra.mxu0 %v1924
        %2005 = vmatprep.mubr.f32.mxu0 %v1938
        %2006 = vmatmul.mubr.f32.gmra.mrb[0].mxu0 %v1935
        %v2007 = vpop.f32.mrb[0].mxu0
        %v2008 = vadd.f32 0.0, %v2007
        %v2009 = vpop.f32.mrb[0].mxu0
        %v2010 = vadd.f32 0.0, %v2009
        %2011 = vdwg.mxu0
        %2012 = vmatprep.subr.mxu0 %v1803
        %2013 = vmatpush1.msra.mxu0 %v1802
        %2014 = vmatprep.subr.mxu0 %v1807
        %2015 = vmatpush1.msra.mxu0 %v1806
        %2016 = vmatprep.subr.mxu0 %v1811
        %2017 = vmatpush1.msra.mxu0 %v1810
        %2018 = vmatprep.subr.mxu0 %v1815
        %2019 = vmatpush1.msra.mxu0 %v1814
        %2020 = vmatprep.subr.mxu0 %v1819
        %2021 = vmatpush1.msra.mxu0 %v1818
        %2022 = vmatprep.subr.mxu0 %v1823
        %2023 = vmatpush1.msra.mxu0 %v1822
        %2024 = vmatprep.subr.mxu0 %v1827
        %2025 = vmatpush1.msra.mxu0 %v1826
        %2026 = vmatprep.subr.mxu0 %v1831
        %2027 = vmatpush1.msra.mxu0 %v1830
        %2028 = vmatprep.subr.mxu0 %v1835
        %2029 = vmatpush1.msra.mxu0 %v1834
        %2030 = vmatprep.subr.mxu0 %v1839
        %2031 = vmatpush1.msra.mxu0 %v1838
        %2032 = vmatprep.subr.mxu0 %v1843
        %2033 = vmatpush1.msra.mxu0 %v1842
        %2034 = vmatprep.subr.mxu0 %v1847
        %2035 = vmatpush1.msra.mxu0 %v1846
        %2036 = vmatprep.subr.mxu0 %v1851
        %2037 = vmatpush1.msra.mxu0 %v1850
        %2038 = vmatprep.subr.mxu0 %v1855
        %2039 = vmatpush1.msra.mxu0 %v1854
        %2040 = vmatprep.subr.mxu0 %v1859
        %2041 = vmatpush1.msra.mxu0 %v1858
        %2042 = vmatprep.subr.mxu0 %v1863
        %2043 = vmatpush1.msra.mxu0 %v1862
        %2044 = vmatprep.subr.mxu0 %v1867
        %2045 = vmatpush1.msra.mxu0 %v1866
        %2046 = vmatprep.subr.mxu0 %v1871
        %2047 = vmatpush1.msra.mxu0 %v1870
        %2048 = vmatprep.subr.mxu0 %v1875
        %2049 = vmatpush1.msra.mxu0 %v1874
        %2050 = vmatprep.subr.mxu0 %v1879
        %2051 = vmatpush1.msra.mxu0 %v1878
        %2052 = vmatprep.subr.mxu0 %v1883
        %2053 = vmatpush1.msra.mxu0 %v1882
        %2054 = vmatprep.subr.mxu0 %v1887
        %2055 = vmatpush1.msra.mxu0 %v1886
        %2056 = vmatprep.subr.mxu0 %v1891
        %2057 = vmatpush1.msra.mxu0 %v1890
        %2058 = vmatprep.subr.mxu0 %v1895
        %2059 = vmatpush1.msra.mxu0 %v1894
        %2060 = vmatprep.subr.mxu0 %v1899
        %2061 = vmatpush1.msra.mxu0 %v1898
        %2062 = vmatprep.subr.mxu0 %v1903
        %2063 = vmatpush1.msra.mxu0 %v1902
        %2064 = vmatprep.subr.mxu0 %v1907
        %2065 = vmatpush1.msra.mxu0 %v1906
        %2066 = vmatprep.subr.mxu0 %v1911
        %2067 = vmatpush1.msra.mxu0 %v1910
        %2068 = vmatprep.subr.mxu0 %v1915
        %2069 = vmatpush1.msra.mxu0 %v1914
        %2070 = vmatprep.subr.mxu0 %v1919
        %2071 = vmatpush1.msra.mxu0 %v1918
        %2072 = vmatprep.subr.mxu0 %v1923
        %2073 = vmatpush1.msra.mxu0 %v1922
        %2074 = vmatprep.subr.mxu0 %v1927
        %2075 = vmatpush1.msra.mxu0 %v1926
        %2076 = vmatprep.mubr.f32.mxu0 %v1938
        %2077 = vmatmul.mubr.f32.gmra.mrb[0].mxu0 %v1935
        %v2078 = vpop.f32.mrb[0].mxu0
        %v2079 = vadd.f32 0.0, %v2078
        %v2080 = vpop.f32.mrb[0].mxu0
        %v2081 = vadd.f32 0.0, %v2080
        %2082 = vdwg.mxu0
        %2083 = vmatprep.subr.mxu0 %v1673
        %2084 = vmatpush1.msra.mxu0 %v1672
        %2085 = vmatprep.subr.mxu0 %v1677
        %2086 = vmatpush1.msra.mxu0 %v1676
        %2087 = vmatprep.subr.mxu0 %v1681
        %2088 = vmatpush1.msra.mxu0 %v1680
        %2089 = vmatprep.subr.mxu0 %v1685
        %2090 = vmatpush1.msra.mxu0 %v1684
        %2091 = vmatprep.subr.mxu0 %v1689
        %2092 = vmatpush1.msra.mxu0 %v1688
        %2093 = vmatprep.subr.mxu0 %v1693
        %2094 = vmatpush1.msra.mxu0 %v1692
        %2095 = vmatprep.subr.mxu0 %v1697
        %2096 = vmatpush1.msra.mxu0 %v1696
        %2097 = vmatprep.subr.mxu0 %v1701
        %2098 = vmatpush1.msra.mxu0 %v1700
        %2099 = vmatprep.subr.mxu0 %v1705
        %2100 = vmatpush1.msra.mxu0 %v1704
        %2101 = vmatprep.subr.mxu0 %v1709
        %2102 = vmatpush1.msra.mxu0 %v1708
        %2103 = vmatprep.subr.mxu0 %v1713
        %2104 = vmatpush1.msra.mxu0 %v1712
        %2105 = vmatprep.subr.mxu0 %v1717
        %2106 = vmatpush1.msra.mxu0 %v1716
        %2107 = vmatprep.subr.mxu0 %v1721
        %2108 = vmatpush1.msra.mxu0 %v1720
        %2109 = vmatprep.subr.mxu0 %v1725
        %2110 = vmatpush1.msra.mxu0 %v1724
        %2111 = vmatprep.subr.mxu0 %v1729
        %2112 = vmatpush1.msra.mxu0 %v1728
        %2113 = vmatprep.subr.mxu0 %v1733
        %2114 = vmatpush1.msra.mxu0 %v1732
        %2115 = vmatprep.subr.mxu0 %v1737
        %2116 = vmatpush1.msra.mxu0 %v1736
        %2117 = vmatprep.subr.mxu0 %v1741
        %2118 = vmatpush1.msra.mxu0 %v1740
        %2119 = vmatprep.subr.mxu0 %v1745
        %2120 = vmatpush1.msra.mxu0 %v1744
        %2121 = vmatprep.subr.mxu0 %v1749
        %2122 = vmatpush1.msra.mxu0 %v1748
        %2123 = vmatprep.subr.mxu0 %v1753
        %2124 = vmatpush1.msra.mxu0 %v1752
        %2125 = vmatprep.subr.mxu0 %v1757
        %2126 = vmatpush1.msra.mxu0 %v1756
        %2127 = vmatprep.subr.mxu0 %v1761
        %2128 = vmatpush1.msra.mxu0 %v1760
        %2129 = vmatprep.subr.mxu0 %v1765
        %2130 = vmatpush1.msra.mxu0 %v1764
        %2131 = vmatprep.subr.mxu0 %v1769
        %2132 = vmatpush1.msra.mxu0 %v1768
        %2133 = vmatprep.subr.mxu0 %v1773
        %2134 = vmatpush1.msra.mxu0 %v1772
        %2135 = vmatprep.subr.mxu0 %v1777
        %2136 = vmatpush1.msra.mxu0 %v1776
        %2137 = vmatprep.subr.mxu0 %v1781
        %2138 = vmatpush1.msra.mxu0 %v1780
        %2139 = vmatprep.subr.mxu0 %v1785
        %2140 = vmatpush1.msra.mxu0 %v1784
        %2141 = vmatprep.subr.mxu0 %v1789
        %2142 = vmatpush1.msra.mxu0 %v1788
        %2143 = vmatprep.subr.mxu0 %v1793
        %2144 = vmatpush1.msra.mxu0 %v1792
        %2145 = vmatprep.subr.mxu0 %v1797
        %2146 = vmatpush1.msra.mxu0 %v1796
        %2147 = vmatprep.mubr.f32.mxu0 %v1667
        %2148 = vmatmul.mubr.f32.gmra.mrb[0].mxu0 %v1666
        %v2149 = vpop.f32.mrb[0].mxu0
        %v2150 = vadd.f32 %v2008, %v2149
        %v2151 = vpop.f32.mrb[0].mxu0
        %v2152 = vadd.f32 %v2010, %v2151
        %2153 = vdwg.mxu0
        %2154 = vmatprep.subr.mxu0 %v1675
        %2155 = vmatpush1.msra.mxu0 %v1674
        %2156 = vmatprep.subr.mxu0 %v1679
        %2157 = vmatpush1.msra.mxu0 %v1678
        %2158 = vmatprep.subr.mxu0 %v1683
        %2159 = vmatpush1.msra.mxu0 %v1682
        %2160 = vmatprep.subr.mxu0 %v1687
        %2161 = vmatpush1.msra.mxu0 %v1686
        %2162 = vmatprep.subr.mxu0 %v1691
        %2163 = vmatpush1.msra.mxu0 %v1690
        %2164 = vmatprep.subr.mxu0 %v1695
        %2165 = vmatpush1.msra.mxu0 %v1694
        %2166 = vmatprep.subr.mxu0 %v1699
        %2167 = vmatpush1.msra.mxu0 %v1698
        %2168 = vmatprep.subr.mxu0 %v1703
        %2169 = vmatpush1.msra.mxu0 %v1702
        %2170 = vmatprep.subr.mxu0 %v1707
        %2171 = vmatpush1.msra.mxu0 %v1706
        %2172 = vmatprep.subr.mxu0 %v1711
        %2173 = vmatpush1.msra.mxu0 %v1710
        %2174 = vmatprep.subr.mxu0 %v1715
        %2175 = vmatpush1.msra.mxu0 %v1714
        %2176 = vmatprep.subr.mxu0 %v1719
        %2177 = vmatpush1.msra.mxu0 %v1718
        %2178 = vmatprep.subr.mxu0 %v1723
        %2179 = vmatpush1.msra.mxu0 %v1722
        %2180 = vmatprep.subr.mxu0 %v1727
        %2181 = vmatpush1.msra.mxu0 %v1726
        %2182 = vmatprep.subr.mxu0 %v1731
        %2183 = vmatpush1.msra.mxu0 %v1730
        %2184 = vmatprep.subr.mxu0 %v1735
        %2185 = vmatpush1.msra.mxu0 %v1734
        %2186 = vmatprep.subr.mxu0 %v1739
        %2187 = vmatpush1.msra.mxu0 %v1738
        %2188 = vmatprep.subr.mxu0 %v1743
        %2189 = vmatpush1.msra.mxu0 %v1742
        %2190 = vmatprep.subr.mxu0 %v1747
        %2191 = vmatpush1.msra.mxu0 %v1746
        %2192 = vmatprep.subr.mxu0 %v1751
        %2193 = vmatpush1.msra.mxu0 %v1750
        %2194 = vmatprep.subr.mxu0 %v1755
        %2195 = vmatpush1.msra.mxu0 %v1754
        %2196 = vmatprep.subr.mxu0 %v1759
        %2197 = vmatpush1.msra.mxu0 %v1758
        %2198 = vmatprep.subr.mxu0 %v1763
        %2199 = vmatpush1.msra.mxu0 %v1762
        %2200 = vmatprep.subr.mxu0 %v1767
        %2201 = vmatpush1.msra.mxu0 %v1766
        %2202 = vmatprep.subr.mxu0 %v1771
        %2203 = vmatpush1.msra.mxu0 %v1770
        %2204 = vmatprep.subr.mxu0 %v1775
        %2205 = vmatpush1.msra.mxu0 %v1774
        %2206 = vmatprep.subr.mxu0 %v1779
        %2207 = vmatpush1.msra.mxu0 %v1778
        %2208 = vmatprep.subr.mxu0 %v1783
        %2209 = vmatpush1.msra.mxu0 %v1782
        %2210 = vmatprep.subr.mxu0 %v1787
        %2211 = vmatpush1.msra.mxu0 %v1786
        %2212 = vmatprep.subr.mxu0 %v1791
        %2213 = vmatpush1.msra.mxu0 %v1790
        %2214 = vmatprep.subr.mxu0 %v1795
        %2215 = vmatpush1.msra.mxu0 %v1794
        %2216 = vmatprep.subr.mxu0 %v1799
        %2217 = vmatpush1.msra.mxu0 %v1798
        %2218 = vmatprep.mubr.f32.mxu0 %v1667
        %2219 = vmatmul.mubr.f32.gmra.mrb[0].mxu0 %v1666
        %v2220 = vpop.f32.mrb[0].mxu0
        %v2221 = vadd.f32 %v2079, %v2220
        %v2222 = vpop.f32.mrb[0].mxu0
        %v2223 = vadd.f32 %v2081, %v2222
        %2224 = vdwg.mxu0
        %v2225 = vld [vmem:[#allocation9] sm:$0xf]
        %v2227 = vlaneseq
        %v2228 = vshrl.u32 %v2227, 7
        %v2229 = vsub.s32 0, %v2228
        %v2230 = vrot.slane %v2225, %v2229
        %v2231 = vlaneseq
        %v2232 = vshrl.u32 %v2231, 7
        %v2233 = vsub.s32 1, %v2232
        %v2234 = vrot.slane %v2225, %v2233
        %v2235 = vlaneseq
        %v2236 = vshrl.u32 %v2235, 7
        %v2237 = vsub.s32 2, %v2236
        %v2238 = vrot.slane %v2225, %v2237
        %v2239 = vlaneseq
        %v2240 = vshrl.u32 %v2239, 7
        %v2241 = vsub.s32 3, %v2240
        %v2242 = vrot.slane %v2225, %v2241
        %v2247 = vadd.f32 %v2150, %v2230
        %v2248 = vadd.f32 %v2152, %v2234
        %v2249 = vadd.f32 %v2221, %v2238
        %v2250 = vadd.f32 %v2223, %v2242
        %v2251 = vmax.f32 %v2247, 0.0
        %v2252 = vmax.f32 %v2248, 0.0
        %v2253 = vmax.f32 %v2249, 0.0
        %v2254 = vmax.f32 %v2250, 0.0
        %s2255 = scalar_lea.vmem [#allocation3], 16
        %2256 = vst.msk [vmem:[%s2255] ss:$8 sm:$0x3] %vm1452, 0.0
        %2257 = vst.msk [vmem:[%s2255] ss:$8 sm:$0x0] %vm1452, 0.0
        %2258 = vst [vmem:[#allocation3] sm:$0xff] %v2251
        %2259 = vst [vmem:[#allocation3 + $0x8] sm:$0xff] %v2252
        %v2260 = vld [vmem:[#allocation3] sm:$0xfe]
        %v2261 = vld [vmem:[#allocation3 + $0x8] sm:$0xfe]
        %v2262 = vld [vmem:[#allocation3 + $0x10] sm:$0x1]
        %v2263 = vld [vmem:[#allocation3 + $0x18] sm:$0x1]
        %v2264 = vld [vmem:[#allocation11] sm:$0xff]
        %v2265 = vld [vmem:[#allocation11 + $0x8] sm:$0xff]
        %v2266 = vld [vmem:[#allocation11 + $0x10] sm:$0xff]
        %v2267 = vld [vmem:[#allocation11 + $0x18] sm:$0xff]
        %v2268 = vld [vmem:[#allocation11 + $0x20] sm:$0xff]
        %v2269 = vld [vmem:[#allocation11 + $0x28] sm:$0xff]
        %v2270 = vld [vmem:[#allocation11 + $0x30] sm:$0xff]
        %v2271 = vld [vmem:[#allocation11 + $0x38] sm:$0xff]
        %v2272 = vld [vmem:[#allocation11 + $0x40] sm:$0xff]
        %v2273 = vld [vmem:[#allocation11 + $0x48] sm:$0xff]
        %v2274 = vld [vmem:[#allocation11 + $0x50] sm:$0xff]
        %v2275 = vld [vmem:[#allocation11 + $0x58] sm:$0xff]
        %v2276 = vld [vmem:[#allocation11 + $0x60] sm:$0xff]
        %v2277 = vld [vmem:[#allocation11 + $0x68] sm:$0xff]
        %v2278 = vld [vmem:[#allocation11 + $0x70] sm:$0xff]
        %v2279 = vld [vmem:[#allocation11 + $0x78] sm:$0xff]
        %v2280 = vld [vmem:[#allocation11 + $0x80] sm:$0xff]
        %v2281 = vld [vmem:[#allocation11 + $0x88] sm:$0xff]
        %v2282 = vld [vmem:[#allocation11 + $0x90] sm:$0xff]
        %v2283 = vld [vmem:[#allocation11 + $0x98] sm:$0xff]
        %v2284 = vld [vmem:[#allocation11 + $0xa0] sm:$0xff]
        %v2285 = vld [vmem:[#allocation11 + $0xa8] sm:$0xff]
        %v2286 = vld [vmem:[#allocation11 + $0xb0] sm:$0xff]
        %v2287 = vld [vmem:[#allocation11 + $0xb8] sm:$0xff]
        %v2288 = vld [vmem:[#allocation11 + $0xc0] sm:$0xff]
        %v2289 = vld [vmem:[#allocation11 + $0xc8] sm:$0xff]
        %v2290 = vld [vmem:[#allocation11 + $0xd0] sm:$0xff]
        %v2291 = vld [vmem:[#allocation11 + $0xd8] sm:$0xff]
        %v2292 = vld [vmem:[#allocation11 + $0xe0] sm:$0xff]
        %v2293 = vld [vmem:[#allocation11 + $0xe8] sm:$0xff]
        %v2294 = vld [vmem:[#allocation11 + $0xf0] sm:$0xff]
        %v2295 = vld [vmem:[#allocation11 + $0xf8] sm:$0xff]
        %v2296 = vld [vmem:[#allocation11 + $0x100] sm:$0xff]
        %v2297 = vld [vmem:[#allocation11 + $0x108] sm:$0xff]
        %v2298 = vld [vmem:[#allocation11 + $0x110] sm:$0xff]
        %v2299 = vld [vmem:[#allocation11 + $0x118] sm:$0xff]
        %v2300 = vld [vmem:[#allocation11 + $0x120] sm:$0xff]
        %v2301 = vld [vmem:[#allocation11 + $0x128] sm:$0xff]
        %v2302 = vld [vmem:[#allocation11 + $0x130] sm:$0xff]
        %v2303 = vld [vmem:[#allocation11 + $0x138] sm:$0xff]
        %v2304 = vld [vmem:[#allocation11 + $0x140] sm:$0xff]
        %v2305 = vld [vmem:[#allocation11 + $0x148] sm:$0xff]
        %v2306 = vld [vmem:[#allocation11 + $0x150] sm:$0xff]
        %v2307 = vld [vmem:[#allocation11 + $0x158] sm:$0xff]
        %v2308 = vld [vmem:[#allocation11 + $0x160] sm:$0xff]
        %v2309 = vld [vmem:[#allocation11 + $0x168] sm:$0xff]
        %v2310 = vld [vmem:[#allocation11 + $0x170] sm:$0xff]
        %v2311 = vld [vmem:[#allocation11 + $0x178] sm:$0xff]
        %v2312 = vld [vmem:[#allocation11 + $0x180] sm:$0xff]
        %v2313 = vld [vmem:[#allocation11 + $0x188] sm:$0xff]
        %v2314 = vld [vmem:[#allocation11 + $0x190] sm:$0xff]
        %v2315 = vld [vmem:[#allocation11 + $0x198] sm:$0xff]
        %v2316 = vld [vmem:[#allocation11 + $0x1a0] sm:$0xff]
        %v2317 = vld [vmem:[#allocation11 + $0x1a8] sm:$0xff]
        %v2318 = vld [vmem:[#allocation11 + $0x1b0] sm:$0xff]
        %v2319 = vld [vmem:[#allocation11 + $0x1b8] sm:$0xff]
        %v2320 = vld [vmem:[#allocation11 + $0x1c0] sm:$0xff]
        %v2321 = vld [vmem:[#allocation11 + $0x1c8] sm:$0xff]
        %v2322 = vld [vmem:[#allocation11 + $0x1d0] sm:$0xff]
        %v2323 = vld [vmem:[#allocation11 + $0x1d8] sm:$0xff]
        %v2324 = vld [vmem:[#allocation11 + $0x1e0] sm:$0xff]
        %v2325 = vld [vmem:[#allocation11 + $0x1e8] sm:$0xff]
        %v2326 = vld [vmem:[#allocation11 + $0x1f0] sm:$0xff]
        %v2327 = vld [vmem:[#allocation11 + $0x1f8] sm:$0xff]
        %v2328 = vld [vmem:[#allocation11 + $0x200] sm:$0xff]
        %v2329 = vld [vmem:[#allocation11 + $0x208] sm:$0xff]
        %v2330 = vld [vmem:[#allocation11 + $0x210] sm:$0xff]
        %v2331 = vld [vmem:[#allocation11 + $0x218] sm:$0xff]
        %v2332 = vld [vmem:[#allocation11 + $0x220] sm:$0xff]
        %v2333 = vld [vmem:[#allocation11 + $0x228] sm:$0xff]
        %v2334 = vld [vmem:[#allocation11 + $0x230] sm:$0xff]
        %v2335 = vld [vmem:[#allocation11 + $0x238] sm:$0xff]
        %v2336 = vld [vmem:[#allocation11 + $0x240] sm:$0xff]
        %v2337 = vld [vmem:[#allocation11 + $0x248] sm:$0xff]
        %v2338 = vld [vmem:[#allocation11 + $0x250] sm:$0xff]
        %v2339 = vld [vmem:[#allocation11 + $0x258] sm:$0xff]
        %v2340 = vld [vmem:[#allocation11 + $0x260] sm:$0xff]
        %v2341 = vld [vmem:[#allocation11 + $0x268] sm:$0xff]
        %v2342 = vld [vmem:[#allocation11 + $0x270] sm:$0xff]
        %v2343 = vld [vmem:[#allocation11 + $0x278] sm:$0xff]
        %v2344 = vld [vmem:[#allocation11 + $0x280] sm:$0xff]
        %v2345 = vld [vmem:[#allocation11 + $0x288] sm:$0xff]
        %v2346 = vld [vmem:[#allocation11 + $0x290] sm:$0xff]
        %v2347 = vld [vmem:[#allocation11 + $0x298] sm:$0xff]
        %v2348 = vld [vmem:[#allocation11 + $0x2a0] sm:$0xff]
        %v2349 = vld [vmem:[#allocation11 + $0x2a8] sm:$0xff]
        %v2350 = vld [vmem:[#allocation11 + $0x2b0] sm:$0xff]
        %v2351 = vld [vmem:[#allocation11 + $0x2b8] sm:$0xff]
        %v2352 = vld [vmem:[#allocation11 + $0x2c0] sm:$0xff]
        %v2353 = vld [vmem:[#allocation11 + $0x2c8] sm:$0xff]
        %v2354 = vld [vmem:[#allocation11 + $0x2d0] sm:$0xff]
        %v2355 = vld [vmem:[#allocation11 + $0x2d8] sm:$0xff]
        %v2356 = vld [vmem:[#allocation11 + $0x2e0] sm:$0xff]
        %v2357 = vld [vmem:[#allocation11 + $0x2e8] sm:$0xff]
        %v2358 = vld [vmem:[#allocation11 + $0x2f0] sm:$0xff]
        %v2359 = vld [vmem:[#allocation11 + $0x2f8] sm:$0xff]
        %v2364 = vrot.slane %v2260, 1
        %v2365 = vrot.slane %v2262, 1
        %v2366 = vsel %vm1932, %v2364, %v2365
        %v2367 = vrot.slane %v2261, 1
        %v2368 = vrot.slane %v2263, 1
        %v2369 = vsel %vm1932, %v2367, %v2368
        %2372 = vmatprep.subr.mxu0 0.0
        %2373 = vmatpush1.msra.mxu0 %v2328
        %2374 = vmatprep.subr.mxu0 0.0
        %2375 = vmatpush1.msra.mxu0 %v2329
        %2376 = vmatprep.subr.mxu0 0.0
        %2377 = vmatpush1.msra.mxu0 %v2330
        %2378 = vmatprep.subr.mxu0 0.0
        %2379 = vmatpush1.msra.mxu0 %v2331
        %2380 = vmatprep.subr.mxu0 0.0
        %2381 = vmatpush1.msra.mxu0 %v2332
        %2382 = vmatprep.subr.mxu0 0.0
        %2383 = vmatpush1.msra.mxu0 %v2333
        %2384 = vmatprep.subr.mxu0 0.0
        %2385 = vmatpush1.msra.mxu0 %v2334
        %2386 = vmatprep.subr.mxu0 0.0
        %2387 = vmatpush1.msra.mxu0 %v2335
        %2388 = vmatprep.subr.mxu0 0.0
        %2389 = vmatpush1.msra.mxu0 %v2336
        %2390 = vmatprep.subr.mxu0 0.0
        %2391 = vmatpush1.msra.mxu0 %v2337
        %2392 = vmatprep.subr.mxu0 0.0
        %2393 = vmatpush1.msra.mxu0 %v2338
        %2394 = vmatprep.subr.mxu0 0.0
        %2395 = vmatpush1.msra.mxu0 %v2339
        %2396 = vmatprep.subr.mxu0 0.0
        %2397 = vmatpush1.msra.mxu0 %v2340
        %2398 = vmatprep.subr.mxu0 0.0
        %2399 = vmatpush1.msra.mxu0 %v2341
        %2400 = vmatprep.subr.mxu0 0.0
        %2401 = vmatpush1.msra.mxu0 %v2342
        %2402 = vmatprep.subr.mxu0 0.0
        %2403 = vmatpush1.msra.mxu0 %v2343
        %2404 = vmatprep.subr.mxu0 0.0
        %2405 = vmatpush1.msra.mxu0 %v2344
        %2406 = vmatprep.subr.mxu0 0.0
        %2407 = vmatpush1.msra.mxu0 %v2345
        %2408 = vmatprep.subr.mxu0 0.0
        %2409 = vmatpush1.msra.mxu0 %v2346
        %2410 = vmatprep.subr.mxu0 0.0
        %2411 = vmatpush1.msra.mxu0 %v2347
        %2412 = vmatprep.subr.mxu0 0.0
        %2413 = vmatpush1.msra.mxu0 %v2348
        %2414 = vmatprep.subr.mxu0 0.0
        %2415 = vmatpush1.msra.mxu0 %v2349
        %2416 = vmatprep.subr.mxu0 0.0
        %2417 = vmatpush1.msra.mxu0 %v2350
        %2418 = vmatprep.subr.mxu0 0.0
        %2419 = vmatpush1.msra.mxu0 %v2351
        %2420 = vmatprep.subr.mxu0 0.0
        %2421 = vmatpush1.msra.mxu0 %v2352
        %2422 = vmatprep.subr.mxu0 0.0
        %2423 = vmatpush1.msra.mxu0 %v2353
        %2424 = vmatprep.subr.mxu0 0.0
        %2425 = vmatpush1.msra.mxu0 %v2354
        %2426 = vmatprep.subr.mxu0 0.0
        %2427 = vmatpush1.msra.mxu0 %v2355
        %2428 = vmatprep.subr.mxu0 0.0
        %2429 = vmatpush1.msra.mxu0 %v2356
        %2430 = vmatprep.subr.mxu0 0.0
        %2431 = vmatpush1.msra.mxu0 %v2357
        %2432 = vmatprep.subr.mxu0 0.0
        %2433 = vmatpush1.msra.mxu0 %v2358
        %2434 = vmatprep.subr.mxu0 0.0
        %2435 = vmatpush1.msra.mxu0 %v2359
        %2436 = vmatprep.mubr.f32.mxu0 %v2369
        %2437 = vmatmul.mubr.f32.gmra.mrb[0].mxu0 %v2366
        %v2438 = vpop.f32.mrb[0].mxu0
        %v2439 = vadd.f32 0.0, %v2438
        %v2440 = vpop.f32.mrb[0].mxu0
        %2441 = vdwg.mxu0
        %2442 = vmatprep.subr.mxu0 0.0
        %2443 = vmatpush1.msra.mxu0 %v2264
        %2444 = vmatprep.subr.mxu0 0.0
        %2445 = vmatpush1.msra.mxu0 %v2265
        %2446 = vmatprep.subr.mxu0 0.0
        %2447 = vmatpush1.msra.mxu0 %v2266
        %2448 = vmatprep.subr.mxu0 0.0
        %2449 = vmatpush1.msra.mxu0 %v2267
        %2450 = vmatprep.subr.mxu0 0.0
        %2451 = vmatpush1.msra.mxu0 %v2268
        %2452 = vmatprep.subr.mxu0 0.0
        %2453 = vmatpush1.msra.mxu0 %v2269
        %2454 = vmatprep.subr.mxu0 0.0
        %2455 = vmatpush1.msra.mxu0 %v2270
        %2456 = vmatprep.subr.mxu0 0.0
        %2457 = vmatpush1.msra.mxu0 %v2271
        %2458 = vmatprep.subr.mxu0 0.0
        %2459 = vmatpush1.msra.mxu0 %v2272
        %2460 = vmatprep.subr.mxu0 0.0
        %2461 = vmatpush1.msra.mxu0 %v2273
        %2462 = vmatprep.subr.mxu0 0.0
        %2463 = vmatpush1.msra.mxu0 %v2274
        %2464 = vmatprep.subr.mxu0 0.0
        %2465 = vmatpush1.msra.mxu0 %v2275
        %2466 = vmatprep.subr.mxu0 0.0
        %2467 = vmatpush1.msra.mxu0 %v2276
        %2468 = vmatprep.subr.mxu0 0.0
        %2469 = vmatpush1.msra.mxu0 %v2277
        %2470 = vmatprep.subr.mxu0 0.0
        %2471 = vmatpush1.msra.mxu0 %v2278
        %2472 = vmatprep.subr.mxu0 0.0
        %2473 = vmatpush1.msra.mxu0 %v2279
        %2474 = vmatprep.subr.mxu0 0.0
        %2475 = vmatpush1.msra.mxu0 %v2280
        %2476 = vmatprep.subr.mxu0 0.0
        %2477 = vmatpush1.msra.mxu0 %v2281
        %2478 = vmatprep.subr.mxu0 0.0
        %2479 = vmatpush1.msra.mxu0 %v2282
        %2480 = vmatprep.subr.mxu0 0.0
        %2481 = vmatpush1.msra.mxu0 %v2283
        %2482 = vmatprep.subr.mxu0 0.0
        %2483 = vmatpush1.msra.mxu0 %v2284
        %2484 = vmatprep.subr.mxu0 0.0
        %2485 = vmatpush1.msra.mxu0 %v2285
        %2486 = vmatprep.subr.mxu0 0.0
        %2487 = vmatpush1.msra.mxu0 %v2286
        %2488 = vmatprep.subr.mxu0 0.0
        %2489 = vmatpush1.msra.mxu0 %v2287
        %2490 = vmatprep.subr.mxu0 0.0
        %2491 = vmatpush1.msra.mxu0 %v2288
        %2492 = vmatprep.subr.mxu0 0.0
        %2493 = vmatpush1.msra.mxu0 %v2289
        %2494 = vmatprep.subr.mxu0 0.0
        %2495 = vmatpush1.msra.mxu0 %v2290
        %2496 = vmatprep.subr.mxu0 0.0
        %2497 = vmatpush1.msra.mxu0 %v2291
        %2498 = vmatprep.subr.mxu0 0.0
        %2499 = vmatpush1.msra.mxu0 %v2292
        %2500 = vmatprep.subr.mxu0 0.0
        %2501 = vmatpush1.msra.mxu0 %v2293
        %2502 = vmatprep.subr.mxu0 0.0
        %2503 = vmatpush1.msra.mxu0 %v2294
        %2504 = vmatprep.subr.mxu0 0.0
        %2505 = vmatpush1.msra.mxu0 %v2295
        %2506 = vmatprep.mubr.f32.mxu0 %v2252
        %2507 = vmatmul.mubr.f32.gmra.mrb[0].mxu0 %v2251
        %v2508 = vpop.f32.mrb[0].mxu0
        %v2509 = vadd.f32 %v2439, %v2508
        %v2510 = vpop.f32.mrb[0].mxu0
        %2511 = vdwg.mxu0
        %2512 = vmatprep.subr.mxu0 0.0
        %2513 = vmatpush1.msra.mxu0 %v2296
        %2514 = vmatprep.subr.mxu0 0.0
        %2515 = vmatpush1.msra.mxu0 %v2297
        %2516 = vmatprep.subr.mxu0 0.0
        %2517 = vmatpush1.msra.mxu0 %v2298
        %2518 = vmatprep.subr.mxu0 0.0
        %2519 = vmatpush1.msra.mxu0 %v2299
        %2520 = vmatprep.subr.mxu0 0.0
        %2521 = vmatpush1.msra.mxu0 %v2300
        %2522 = vmatprep.subr.mxu0 0.0
        %2523 = vmatpush1.msra.mxu0 %v2301
        %2524 = vmatprep.subr.mxu0 0.0
        %2525 = vmatpush1.msra.mxu0 %v2302
        %2526 = vmatprep.subr.mxu0 0.0
        %2527 = vmatpush1.msra.mxu0 %v2303
        %2528 = vmatprep.subr.mxu0 0.0
        %2529 = vmatpush1.msra.mxu0 %v2304
        %2530 = vmatprep.subr.mxu0 0.0
        %2531 = vmatpush1.msra.mxu0 %v2305
        %2532 = vmatprep.subr.mxu0 0.0
        %2533 = vmatpush1.msra.mxu0 %v2306
        %2534 = vmatprep.subr.mxu0 0.0
        %2535 = vmatpush1.msra.mxu0 %v2307
        %2536 = vmatprep.subr.mxu0 0.0
        %2537 = vmatpush1.msra.mxu0 %v2308
        %2538 = vmatprep.subr.mxu0 0.0
        %2539 = vmatpush1.msra.mxu0 %v2309
        %2540 = vmatprep.subr.mxu0 0.0
        %2541 = vmatpush1.msra.mxu0 %v2310
        %2542 = vmatprep.subr.mxu0 0.0
        %2543 = vmatpush1.msra.mxu0 %v2311
        %2544 = vmatprep.subr.mxu0 0.0
        %2545 = vmatpush1.msra.mxu0 %v2312
        %2546 = vmatprep.subr.mxu0 0.0
        %2547 = vmatpush1.msra.mxu0 %v2313
        %2548 = vmatprep.subr.mxu0 0.0
        %2549 = vmatpush1.msra.mxu0 %v2314
        %2550 = vmatprep.subr.mxu0 0.0
        %2551 = vmatpush1.msra.mxu0 %v2315
        %2552 = vmatprep.subr.mxu0 0.0
        %2553 = vmatpush1.msra.mxu0 %v2316
        %2554 = vmatprep.subr.mxu0 0.0
        %2555 = vmatpush1.msra.mxu0 %v2317
        %2556 = vmatprep.subr.mxu0 0.0
        %2557 = vmatpush1.msra.mxu0 %v2318
        %2558 = vmatprep.subr.mxu0 0.0
        %2559 = vmatpush1.msra.mxu0 %v2319
        %2560 = vmatprep.subr.mxu0 0.0
        %2561 = vmatpush1.msra.mxu0 %v2320
        %2562 = vmatprep.subr.mxu0 0.0
        %2563 = vmatpush1.msra.mxu0 %v2321
        %2564 = vmatprep.subr.mxu0 0.0
        %2565 = vmatpush1.msra.mxu0 %v2322
        %2566 = vmatprep.subr.mxu0 0.0
        %2567 = vmatpush1.msra.mxu0 %v2323
        %2568 = vmatprep.subr.mxu0 0.0
        %2569 = vmatpush1.msra.mxu0 %v2324
        %2570 = vmatprep.subr.mxu0 0.0
        %2571 = vmatpush1.msra.mxu0 %v2325
        %2572 = vmatprep.subr.mxu0 0.0
        %2573 = vmatpush1.msra.mxu0 %v2326
        %2574 = vmatprep.subr.mxu0 0.0
        %2575 = vmatpush1.msra.mxu0 %v2327
        %2576 = vmatprep.mubr.f32.mxu0 %v2254
        %2577 = vmatmul.mubr.f32.gmra.mrb[0].mxu0 %v2253
        %v2578 = vpop.f32.mrb[0].mxu0
        %v2579 = vadd.f32 %v2509, %v2578
        %v2580 = vpop.f32.mrb[0].mxu0
        %2581 = vdwg.mxu0
        %v2582 = vld [vmem:[#allocation12] sm:$0x1]
        %v2584 = vlaneseq
        %v2585 = vshrl.u32 %v2584, 7
        %v2586 = vsub.s32 0, %v2585
        %v2587 = vrot.slane %v2582, %v2586
        %v2589 = vadd.f32 %v2579, %v2587
        %v2590 = vxor.u32 %v2589, 2147483648
        %v2591 = vmul.f32 %v2590, 1.442695
        %v2592 = vpow.pop %v2591
        %v2593 = vadd.f32 %v2592, 1.0
        %v2594 = vrcp.pop %v2593
        %v2595 = vmul.f32 1.0, %v2594
        %2596 = vst [vmem:[%s355] sm:$0xff] %v2595
        %p2597 = scmp.lt.s32.totalorder %s22, 1
        %s2598 = scalar_select %p2597, %s22, 1
        %s2599 = smul.addr %s2598, 8
        %s2600 = scalar_lea.vmem %s7, %s2599
        // Predicated region
        $region73: #{decoder_forward.1} parent=47 // pred_check
          %p2601 = pneg %p192
        $region74: #{decoder_forward.1} parent=47 // pred_check_branch
          %2603 = sbr.rel (%p2601) target = $region76
        $region75: #{decoder_forward.1} parent=47 // pred_region
          _
        $region76: #{decoder_forward.1} parent=47 // pred_fallthru
          _
      $region48: #{decoder_forward.1} parent=5 // pred_fallthru
        _
      %p2604 = scmp.le.s32.totalorder 2, %s17
      // Predicated region
      $region77: #{decoder_forward.1} parent=5 // pred_check
        %p2605 = pneg %p2604
      $region78: #{decoder_forward.1} parent=5 // pred_check_branch
        %2607 = sbr.rel (%p2605) target = $region80
      $region79: #{decoder_forward.1} parent=5 // pred_region
        %s2608 = ssub.s32 %s17, 2
        // Predicated region
        $region81: #{decoder_forward.1} parent=79 // pred_check
          %p2609 = pneg %p198
        $region82: #{decoder_forward.1} parent=79 // pred_check_branch
          %2611 = sbr.rel (%p2609) target = $region84
        $region83: #{decoder_forward.1} parent=79 // pred_region
          %p2612 = scmp.lt.s32.totalorder %s23, 1
          %s2613 = scalar_select %p2612, %s23, 1
          %s2614 = smul.addr %s2613, 8
          %s2615 = scalar_lea.vmem %s7, %s2614
        $region84: #{decoder_forward.1} parent=79 // pred_fallthru
          _
      $region80: #{decoder_forward.1} parent=5 // pred_fallthru
        _
    $region6: #{decoder_forward.1} parent=1 // loop_footer
      %s21 = sadd.s32 1, %s17
    $region7: #{decoder_forward.1} parent=1 // loop_footer_branch
      %16 = sbr.rel target = $region3
    $region8: #{decoder_forward.1} parent=1 // loop_exit
      _
    %2616 = vsyncpa [#allocation5], 1
    %s2617 = scalar_lea.sflag [#allocation5], 1
    %2618 = vsyncpa %s2617, 1
    %2619 = vsyncpa [#allocation7], 1
    %2620 = vsyncpa [#allocation10], 1
    %2621 = vsyncpa [#allocation13], 1

</llo_original>
